<compile_context>
chip_gen: v5e
topology: v5e:2x2
jax: 0.10.0
libtpu: 0.0.40
codegen_flags: <defaults>
</compile_context>

<pallas_src>
import math

import jax
import jax.numpy as jnp
from jax.experimental import pallas as pl
from jax.experimental.pallas import tpu as pltpu


# ---------------- compile-time scalar helpers (plain Python) ----------------
def _sh_renormalization(l, m):
    return math.sqrt(
        (2.0 * l + 1.0) * math.factorial(l - m) / (4.0 * math.pi * math.factorial(l + m))
    )


# ---------------- Pallas kernel ----------------
def _make_sh_kernel(L):
    deg2rad = math.pi / 180.0
    sqrt2 = math.sqrt(2.0)
    # Precompute renormalization constants at trace time (exact for L=10).
    K = [[_sh_renormalization(l, m) for m in range(l + 1)] for l in range(L)]

    def kernel(lonlat_ref, out_ref):
        # lonlat_ref: [2, S, 128]  (plane 0 = lon_deg, plane 1 = lat_deg)
        # out_ref   : [L*L, S, 128]
        lon = lonlat_ref[0]                            # [S, 128]
        lat = lonlat_ref[1]                            # [S, 128]
        phi = (lon + 180.0) * deg2rad
        theta = (lat + 90.0) * deg2rad

        ct = jnp.cos(theta)                            # cos(theta)
        # sin(theta) = sqrt((1-ct)(1+ct))  (theta in [0, pi]); matches torch ref.
        st = jnp.sqrt((1.0 - ct) * (1.0 + ct))
        cphi = jnp.cos(phi)
        sphi = jnp.sin(phi)

        def emit(l, m, p_lm, cm, sm):
            # +m column (cosine branch; m == 0 has no sqrt(2) factor / no cos).
            idx_pos = l * l + l + m
            if m == 0:
                out_ref[idx_pos] = K[l][0] * p_lm
            else:
                c = sqrt2 * K[l][m]
                out_ref[idx_pos] = (c * cm) * p_lm
                # -m column (sine branch) reuses the same P_l^m.
                out_ref[l * l + l - m] = (c * sm) * p_lm

        # Outer sweep over m. Chebyshev recurrence for cos(m*phi)/sin(m*phi) is
        # carried as 4 running values; associated Legendre P_l^m is one upward-l
        # recurrence per m, with each P_l^m reused for the +m and -m columns.
        cos_m = jnp.ones_like(phi)                     # cos(0*phi)
        sin_m = jnp.zeros_like(phi)                    # sin(0*phi)
        cos_prev = cos_m
        sin_prev = sin_m
        pmm = jnp.ones_like(ct)                        # P_0^0
        for m in range(L):
            if m == 1:
                cos_prev, cos_m = cos_m, cphi
                sin_prev, sin_m = sin_m, sphi
            elif m >= 2:
                cos_new = 2.0 * cphi * cos_m - cos_prev
                sin_new = 2.0 * cphi * sin_m - sin_prev
                cos_prev, cos_m = cos_m, cos_new
                sin_prev, sin_m = sin_m, sin_new
            if m > 0:
                pmm = pmm * (-(2.0 * m - 1.0)) * st    # P_m^m from P_{m-1}^{m-1}

            p_prev = pmm                               # P_m^m
            emit(m, m, p_prev, cos_m, sin_m)
            if m + 1 < L:
                p_curr = (2.0 * m + 1.0) * ct * pmm    # P_{m+1}^m
                emit(m + 1, m, p_curr, cos_m, sin_m)
                for l in range(m + 2, L):
                    a = (2.0 * l - 1.0) / (l - m)      # trace-time constants
                    b = (l + m - 1.0) / (l - m)
                    p_next = a * ct * p_curr - b * p_prev
                    p_prev = p_curr
                    p_curr = p_next
                    emit(l, m, p_curr, cos_m, sin_m)

    return kernel


# ---------------- wrapper ----------------
def spherical_harmonics(lonlat, legendre_polys=10, tile_lanes=2048):
    """lonlat: [N, 2] (lon_deg, lat_deg) float -> [N, L*L] float32."""
    L = int(legendre_polys)
    L2 = L * L
    lonlat = jnp.asarray(lonlat, jnp.float32)
    N = lonlat.shape[0]

    # Tile must be a multiple of 1024 points (8 sublanes x 128 lanes).
    tile = max(1024, (int(tile_lanes) // 1024) * 1024)
    # Cap the tile so that sufficiently large inputs produce >= 2 grid steps
    # (lets "parallel" shard across both TensorCores on v7x).
    n_up = ((N + 1023) // 1024) * 1024
    if n_up >= 2048:
        tile = min(tile, max(1024, ((n_up // 2) // 1024) * 1024))
    S = tile // 128

    Np = ((N + tile - 1) // tile) * tile
    lonlat_t = lonlat.T                                # [2, N]
    if Np != N:
        lonlat_t = jnp.pad(lonlat_t, ((0, 0), (0, Np - N)))
    lonlat_b = lonlat_t.reshape(2, Np // 128, 128)     # points sublane-dense

    out_b = pl.pallas_call(
        _make_sh_kernel(L),
        out_shape=jax.ShapeDtypeStruct((L2, Np // 128, 128), jnp.float32),
        grid=(Np // tile,),
        in_specs=[pl.BlockSpec((2, S, 128), lambda i: (0, i, 0))],
        out_specs=pl.BlockSpec((L2, S, 128), lambda i: (0, i, 0)),
        compiler_params=pltpu.CompilerParams(dimension_semantics=("parallel",)),
    )(lonlat_b)

    # [L*L, Np//128, 128] -> [L*L, Np] -> [N, L*L]   (PyTorch layout).
    return out_b.reshape(L2, Np)[:, :N].T


# ---------------- pure-JAX reference (sanity check only) ----------------
def _assoc_legendre_ref(l, m, x):
    pmm = jnp.ones_like(x)
    if m > 0:
        somx2 = jnp.sqrt((1.0 - x) * (1.0 + x))
        fact = 1.0
        for _ in range(1, m + 1):
            pmm = pmm * (-fact) * somx2
            fact += 2.0
    if l == m:
        return pmm
    pmmp1 = x * (2.0 * m + 1.0) * pmm
    if l == m + 1:
        return pmmp1
    pll = jnp.zeros_like(x)
    for ll in range(m + 2, l + 1):
        pll = ((2.0 * ll - 1.0) * x * pmmp1 - (ll + m - 1.0) * pmm) / (ll - m)
        pmm = pmmp1
        pmmp1 = pll
    return pll


def _sh_closed_form_ref(m, l, phi, theta):
    ct = jnp.cos(theta)
    if m == 0:
        return _sh_renormalization(l, m) * _assoc_legendre_ref(l, m, ct)
    elif m > 0:
        return (math.sqrt(2.0) * _sh_renormalization(l, m)
                * jnp.cos(m * phi) * _assoc_legendre_ref(l, m, ct))
    else:
        return (math.sqrt(2.0) * _sh_renormalization(l, -m)
                * jnp.sin(-m * phi) * _assoc_legendre_ref(l, -m, ct))


def _reference(lonlat, legendre_polys=10):
    L = int(legendre_polys)
    lon, lat = lonlat[:, 0], lonlat[:, 1]
    phi = jnp.deg2rad(lon + 180.0)
    theta = jnp.deg2rad(lat + 90.0)
    Y = []
    for l in range(L):
        for m in range(-l, l + 1):
            Y.append(_sh_closed_form_ref(m, l, phi, theta))
    return jnp.stack(Y, axis=-1)


if __name__ == "__main__":
    key = jax.random.PRNGKey(0)
    k1, k2 = jax.random.split(key)
    N, L = 8, 10
    lon = jax.random.uniform(k1, (N,), jnp.float32, -180.0, 180.0)
    lat = jax.random.uniform(k2, (N,), jnp.float32, -90.0, 90.0)
    lonlat = jnp.stack([lon, lat], axis=-1)            # [N, 2]

    out = spherical_harmonics(lonlat, legendre_polys=L)
    out = jax.block_until_ready(out)

    ref = _reference(lonlat, legendre_polys=L)
    assert out.shape == (N, L * L), out.shape
    assert jnp.allclose(out, ref, atol=1e-4, rtol=1e-4), float(
        jnp.max(jnp.abs(out - ref))
    )
    print("KERNEL_OK")
</pallas_src>

<mosaic_0001>
module attributes {stable_mosaic.version = 11 : i64} {
  func.func @kernel(%arg0: i32, %arg1: memref<2x16x128xf32, #tpu.memory_space<vmem>>, %arg2: memref<100x16x128xf32, #tpu.memory_space<vmem>>) attributes {dimension_semantics = [#tpu.dimension_semantics<parallel>], iteration_bounds = array<i64: 1>, scalar_prefetch = 0 : i64, scratch_operands = 0 : i64, tpu.core_type = #tpu.core_type<tc>, window_params = [{transform_indices = @transform_0, window_bounds = array<i64: 2, 16, 128>}, {transform_indices = @transform_1, window_bounds = array<i64: 100, 16, 128>}]} {
    %c0 = arith.constant 0 : index
    %c0_0 = arith.constant 0 : index
    %c0_1 = arith.constant 0 : index
    %0 = vector.load %arg1[%c0, %c0_0, %c0_1] : memref<2x16x128xf32, #tpu.memory_space<vmem>>, vector<1x16x128xf32>
    %1 = vector.shape_cast %0 : vector<1x16x128xf32> to vector<16x128xf32>
    %c1 = arith.constant 1 : index
    %c0_2 = arith.constant 0 : index
    %c0_3 = arith.constant 0 : index
    %2 = vector.load %arg1[%c1, %c0_2, %c0_3] : memref<2x16x128xf32, #tpu.memory_space<vmem>>, vector<1x16x128xf32>
    %3 = vector.shape_cast %2 : vector<1x16x128xf32> to vector<16x128xf32>
    %cst = arith.constant 1.800000e+02 : f32
    %4 = vector.broadcast %cst : f32 to vector<16x128xf32>
    %5 = arith.addf %1, %4 : vector<16x128xf32>
    %cst_4 = arith.constant 0.0174532924 : f32
    %6 = vector.broadcast %cst_4 : f32 to vector<16x128xf32>
    %7 = arith.mulf %5, %6 : vector<16x128xf32>
    %cst_5 = arith.constant 9.000000e+01 : f32
    %8 = vector.broadcast %cst_5 : f32 to vector<16x128xf32>
    %9 = arith.addf %3, %8 : vector<16x128xf32>
    %cst_6 = arith.constant 0.0174532924 : f32
    %10 = vector.broadcast %cst_6 : f32 to vector<16x128xf32>
    %11 = arith.mulf %9, %10 : vector<16x128xf32>
    %12 = math.cos %11 : vector<16x128xf32>
    %cst_7 = arith.constant 1.000000e+00 : f32
    %13 = vector.broadcast %cst_7 : f32 to vector<16x128xf32>
    %14 = arith.subf %13, %12 : vector<16x128xf32>
    %cst_8 = arith.constant 1.000000e+00 : f32
    %15 = vector.broadcast %cst_8 : f32 to vector<16x128xf32>
    %16 = arith.addf %15, %12 : vector<16x128xf32>
    %17 = arith.mulf %14, %16 : vector<16x128xf32>
    %18 = math.sqrt %17 : vector<16x128xf32>
    %19 = math.cos %7 : vector<16x128xf32>
    %20 = math.sin %7 : vector<16x128xf32>
    %cst_9 = arith.constant 1.000000e+00 : f32
    %21 = vector.broadcast %cst_9 : f32 to vector<16x128xf32>
    %cst_10 = arith.constant 0.000000e+00 : f32
    %22 = vector.broadcast %cst_10 : f32 to vector<16x128xf32>
    %cst_11 = arith.constant 1.000000e+00 : f32
    %23 = vector.broadcast %cst_11 : f32 to vector<16x128xf32>
    %cst_12 = arith.constant 0.282094806 : f32
    %24 = vector.broadcast %cst_12 : f32 to vector<16x128xf32>
    %25 = arith.mulf %24, %23 : vector<16x128xf32>
    %c0_13 = arith.constant 0 : index
    %c0_14 = arith.constant 0 : index
    %c0_15 = arith.constant 0 : index
    %26 = vector.load %arg2[%c0_13, %c0_14, %c0_15] : memref<100x16x128xf32, #tpu.memory_space<vmem>>, vector<1x16x128xf32>
    %27 = vector.shape_cast %26 : vector<1x16x128xf32> to vector<16x128xf32>
    %28 = vector.shape_cast %25 : vector<16x128xf32> to vector<1x16x128xf32>
    tpu.vector_store %arg2[%c0_13, %c0_14, %c0_15], %28 {strides = array<i32>} : memref<100x16x128xf32, #tpu.memory_space<vmem>>, vector<1x16x128xf32>,
    %cst_16 = arith.constant 1.000000e+00 : f32
    %29 = vector.broadcast %cst_16 : f32 to vector<16x128xf32>
    %30 = arith.mulf %29, %12 : vector<16x128xf32>
    %31 = arith.mulf %30, %23 : vector<16x128xf32>
    %cst_17 = arith.constant 0.488602519 : f32
    %32 = vector.broadcast %cst_17 : f32 to vector<16x128xf32>
    %33 = arith.mulf %32, %31 : vector<16x128xf32>
    %c2 = arith.constant 2 : index
    %c0_18 = arith.constant 0 : index
    %c0_19 = arith.constant 0 : index
    %34 = vector.load %arg2[%c2, %c0_18, %c0_19] : memref<100x16x128xf32, #tpu.memory_space<vmem>>, vector<1x16x128xf32>
    %35 = vector.shape_cast %34 : vector<1x16x128xf32> to vector<16x128xf32>
    %36 = vector.shape_cast %33 : vector<16x128xf32> to vector<1x16x128xf32>
    tpu.vector_store %arg2[%c2, %c0_18, %c0_19], %36 {strides = array<i32>} : memref<100x16x128xf32, #tpu.memory_space<vmem>>, vector<1x16x128xf32>,
    %cst_20 = arith.constant 1.500000e+00 : f32
    %37 = vector.broadcast %cst_20 : f32 to vector<16x128xf32>
    %38 = arith.mulf %37, %12 : vector<16x128xf32>
    %39 = arith.mulf %38, %31 : vector<16x128xf32>
    %cst_21 = arith.constant 5.000000e-01 : f32
    %40 = vector.broadcast %cst_21 : f32 to vector<16x128xf32>
    %41 = arith.mulf %40, %23 : vector<16x128xf32>
    %42 = arith.subf %39, %41 : vector<16x128xf32>
    %cst_22 = arith.constant 0.63078314 : f32
    %43 = vector.broadcast %cst_22 : f32 to vector<16x128xf32>
    %44 = arith.mulf %43, %42 : vector<16x128xf32>
    %c6 = arith.constant 6 : index
    %c0_23 = arith.constant 0 : index
    %c0_24 = arith.constant 0 : index
    %45 = vector.load %arg2[%c6, %c0_23, %c0_24] : memref<100x16x128xf32, #tpu.memory_space<vmem>>, vector<1x16x128xf32>
    %46 = vector.shape_cast %45 : vector<1x16x128xf32> to vector<16x128xf32>
    %47 = vector.shape_cast %44 : vector<16x128xf32> to vector<1x16x128xf32>
    tpu.vector_store %arg2[%c6, %c0_23, %c0_24], %47 {strides = array<i32>} : memref<100x16x128xf32, #tpu.memory_space<vmem>>, vector<1x16x128xf32>,
    %cst_25 = arith.constant 1.66666663 : f32
    %48 = vector.broadcast %cst_25 : f32 to vector<16x128xf32>
    %49 = arith.mulf %48, %12 : vector<16x128xf32>
    %50 = arith.mulf %49, %42 : vector<16x128xf32>
    %cst_26 = arith.constant 0.666666686 : f32
    %51 = vector.broadcast %cst_26 : f32 to vector<16x128xf32>
    %52 = arith.mulf %51, %31 : vector<16x128xf32>
    %53 = arith.subf %50, %52 : vector<16x128xf32>
    %cst_27 = arith.constant 0.746352672 : f32
    %54 = vector.broadcast %cst_27 : f32 to vector<16x128xf32>
    %55 = arith.mulf %54, %53 : vector<16x128xf32>
    %c12 = arith.constant 12 : index
    %c0_28 = arith.constant 0 : index
    %c0_29 = arith.constant 0 : index
    %56 = vector.load %arg2[%c12, %c0_28, %c0_29] : memref<100x16x128xf32, #tpu.memory_space<vmem>>, vector<1x16x128xf32>
    %57 = vector.shape_cast %56 : vector<1x16x128xf32> to vector<16x128xf32>
    %58 = vector.shape_cast %55 : vector<16x128xf32> to vector<1x16x128xf32>
    tpu.vector_store %arg2[%c12, %c0_28, %c0_29], %58 {strides = array<i32>} : memref<100x16x128xf32, #tpu.memory_space<vmem>>, vector<1x16x128xf32>,
    %cst_30 = arith.constant 1.750000e+00 : f32
    %59 = vector.broadcast %cst_30 : f32 to vector<16x128xf32>
    %60 = arith.mulf %59, %12 : vector<16x128xf32>
    %61 = arith.mulf %60, %53 : vector<16x128xf32>
    %cst_31 = arith.constant 7.500000e-01 : f32
    %62 = vector.broadcast %cst_31 : f32 to vector<16x128xf32>
    %63 = arith.mulf %62, %42 : vector<16x128xf32>
    %64 = arith.subf %61, %63 : vector<16x128xf32>
    %cst_32 = arith.constant 0.846284389 : f32
    %65 = vector.broadcast %cst_32 : f32 to vector<16x128xf32>
    %66 = arith.mulf %65, %64 : vector<16x128xf32>
    %c20 = arith.constant 20 : index
    %c0_33 = arith.constant 0 : index
    %c0_34 = arith.constant 0 : index
    %67 = vector.load %arg2[%c20, %c0_33, %c0_34] : memref<100x16x128xf32, #tpu.memory_space<vmem>>, vector<1x16x128xf32>
    %68 = vector.shape_cast %67 : vector<1x16x128xf32> to vector<16x128xf32>
    %69 = vector.shape_cast %66 : vector<16x128xf32> to vector<1x16x128xf32>
    tpu.vector_store %arg2[%c20, %c0_33, %c0_34], %69 {strides = array<i32>} : memref<100x16x128xf32, #tpu.memory_space<vmem>>, vector<1x16x128xf32>,
    %cst_35 = arith.constant 1.800000e+00 : f32
    %70 = vector.broadcast %cst_35 : f32 to vector<16x128xf32>
    %71 = arith.mulf %70, %12 : vector<16x128xf32>
    %72 = arith.mulf %71, %64 : vector<16x128xf32>
    %cst_36 = arith.constant 8.000000e-01 : f32
    %73 = vector.broadcast %cst_36 : f32 to vector<16x128xf32>
    %74 = arith.mulf %73, %53 : vector<16x128xf32>
    %75 = arith.subf %72, %74 : vector<16x128xf32>
    %cst_37 = arith.constant 0.935602605 : f32
    %76 = vector.broadcast %cst_37 : f32 to vector<16x128xf32>
    %77 = arith.mulf %76, %75 : vector<16x128xf32>
    %c30 = arith.constant 30 : index
    %c0_38 = arith.constant 0 : index
    %c0_39 = arith.constant 0 : index
    %78 = vector.load %arg2[%c30, %c0_38, %c0_39] : memref<100x16x128xf32, #tpu.memory_space<vmem>>, vector<1x16x128xf32>
    %79 = vector.shape_cast %78 : vector<1x16x128xf32> to vector<16x128xf32>
    %80 = vector.shape_cast %77 : vector<16x128xf32> to vector<1x16x128xf32>
    tpu.vector_store %arg2[%c30, %c0_38, %c0_39], %80 {strides = array<i32>} : memref<100x16x128xf32, #tpu.memory_space<vmem>>, vector<1x16x128xf32>,
    %cst_40 = arith.constant 1.83333337 : f32
    %81 = vector.broadcast %cst_40 : f32 to vector<16x128xf32>
    %82 = arith.mulf %81, %12 : vector<16x128xf32>
    %83 = arith.mulf %82, %75 : vector<16x128xf32>
    %cst_41 = arith.constant 0.833333313 : f32
    %84 = vector.broadcast %cst_41 : f32 to vector<16x128xf32>
    %85 = arith.mulf %84, %64 : vector<16x128xf32>
    %86 = arith.subf %83, %85 : vector<16x128xf32>
    %cst_42 = arith.constant 1.01710725 : f32
    %87 = vector.broadcast %cst_42 : f32 to vector<16x128xf32>
    %88 = arith.mulf %87, %86 : vector<16x128xf32>
    %c42 = arith.constant 42 : index
    %c0_43 = arith.constant 0 : index
    %c0_44 = arith.constant 0 : index
    %89 = vector.load %arg2[%c42, %c0_43, %c0_44] : memref<100x16x128xf32, #tpu.memory_space<vmem>>, vector<1x16x128xf32>
    %90 = vector.shape_cast %89 : vector<1x16x128xf32> to vector<16x128xf32>
    %91 = vector.shape_cast %88 : vector<16x128xf32> to vector<1x16x128xf32>
    tpu.vector_store %arg2[%c42, %c0_43, %c0_44], %91 {strides = array<i32>} : memref<100x16x128xf32, #tpu.memory_space<vmem>>, vector<1x16x128xf32>,
    %cst_45 = arith.constant 1.85714281 : f32
    %92 = vector.broadcast %cst_45 : f32 to vector<16x128xf32>
    %93 = arith.mulf %92, %12 : vector<16x128xf32>
    %94 = arith.mulf %93, %86 : vector<16x128xf32>
    %cst_46 = arith.constant 0.857142865 : f32
    %95 = vector.broadcast %cst_46 : f32 to vector<16x128xf32>
    %96 = arith.mulf %95, %75 : vector<16x128xf32>
    %97 = arith.subf %94, %96 : vector<16x128xf32>
    %cst_47 = arith.constant 1.09254849 : f32
    %98 = vector.broadcast %cst_47 : f32 to vector<16x128xf32>
    %99 = arith.mulf %98, %97 : vector<16x128xf32>
    %c56 = arith.constant 56 : index
    %c0_48 = arith.constant 0 : index
    %c0_49 = arith.constant 0 : index
    %100 = vector.load %arg2[%c56, %c0_48, %c0_49] : memref<100x16x128xf32, #tpu.memory_space<vmem>>, vector<1x16x128xf32>
    %101 = vector.shape_cast %100 : vector<1x16x128xf32> to vector<16x128xf32>
    %102 = vector.shape_cast %99 : vector<16x128xf32> to vector<1x16x128xf32>
    tpu.vector_store %arg2[%c56, %c0_48, %c0_49], %102 {strides = array<i32>} : memref<100x16x128xf32, #tpu.memory_space<vmem>>, vector<1x16x128xf32>,
    %cst_50 = arith.constant 1.875000e+00 : f32
    %103 = vector.broadcast %cst_50 : f32 to vector<16x128xf32>
    %104 = arith.mulf %103, %12 : vector<16x128xf32>
    %105 = arith.mulf %104, %97 : vector<16x128xf32>
    %cst_51 = arith.constant 8.750000e-01 : f32
    %106 = vector.broadcast %cst_51 : f32 to vector<16x128xf32>
    %107 = arith.mulf %106, %86 : vector<16x128xf32>
    %108 = arith.subf %105, %107 : vector<16x128xf32>
    %cst_52 = arith.constant 1.16310668 : f32
    %109 = vector.broadcast %cst_52 : f32 to vector<16x128xf32>
    %110 = arith.mulf %109, %108 : vector<16x128xf32>
    %c72 = arith.constant 72 : index
    %c0_53 = arith.constant 0 : index
    %c0_54 = arith.constant 0 : index
    %111 = vector.load %arg2[%c72, %c0_53, %c0_54] : memref<100x16x128xf32, #tpu.memory_space<vmem>>, vector<1x16x128xf32>
    %112 = vector.shape_cast %111 : vector<1x16x128xf32> to vector<16x128xf32>
    %113 = vector.shape_cast %110 : vector<16x128xf32> to vector<1x16x128xf32>
    tpu.vector_store %arg2[%c72, %c0_53, %c0_54], %113 {strides = array<i32>} : memref<100x16x128xf32, #tpu.memory_space<vmem>>, vector<1x16x128xf32>,
    %cst_55 = arith.constant 1.88888884 : f32
    %114 = vector.broadcast %cst_55 : f32 to vector<16x128xf32>
    %115 = arith.mulf %114, %12 : vector<16x128xf32>
    %116 = arith.mulf %115, %108 : vector<16x128xf32>
    %cst_56 = arith.constant 0.888888895 : f32
    %117 = vector.broadcast %cst_56 : f32 to vector<16x128xf32>
    %118 = arith.mulf %117, %97 : vector<16x128xf32>
    %119 = arith.subf %116, %118 : vector<16x128xf32>
    %cst_57 = arith.constant 1.22962272 : f32
    %120 = vector.broadcast %cst_57 : f32 to vector<16x128xf32>
    %121 = arith.mulf %120, %119 : vector<16x128xf32>
    %c90 = arith.constant 90 : index
    %c0_58 = arith.constant 0 : index
    %c0_59 = arith.constant 0 : index
    %122 = vector.load %arg2[%c90, %c0_58, %c0_59] : memref<100x16x128xf32, #tpu.memory_space<vmem>>, vector<1x16x128xf32>
    %123 = vector.shape_cast %122 : vector<1x16x128xf32> to vector<16x128xf32>
    %124 = vector.shape_cast %121 : vector<16x128xf32> to vector<1x16x128xf32>
    tpu.vector_store %arg2[%c90, %c0_58, %c0_59], %124 {strides = array<i32>} : memref<100x16x128xf32, #tpu.memory_space<vmem>>, vector<1x16x128xf32>,
    %cst_60 = arith.constant -1.000000e+00 : f32
    %125 = vector.broadcast %cst_60 : f32 to vector<16x128xf32>
    %126 = arith.mulf %23, %125 : vector<16x128xf32>
    %127 = arith.mulf %126, %18 : vector<16x128xf32>
    %cst_61 = arith.constant 0.488602519 : f32
    %128 = vector.broadcast %cst_61 : f32 to vector<16x128xf32>
    %129 = arith.mulf %128, %19 : vector<16x128xf32>
    %130 = arith.mulf %129, %127 : vector<16x128xf32>
    %c3 = arith.constant 3 : index
    %c0_62 = arith.constant 0 : index
    %c0_63 = arith.constant 0 : index
    %131 = vector.load %arg2[%c3, %c0_62, %c0_63] : memref<100x16x128xf32, #tpu.memory_space<vmem>>, vector<1x16x128xf32>
    %132 = vector.shape_cast %131 : vector<1x16x128xf32> to vector<16x128xf32>
    %133 = vector.shape_cast %130 : vector<16x128xf32> to vector<1x16x128xf32>
    tpu.vector_store %arg2[%c3, %c0_62, %c0_63], %133 {strides = array<i32>} : memref<100x16x128xf32, #tpu.memory_space<vmem>>, vector<1x16x128xf32>,
    %cst_64 = arith.constant 0.488602519 : f32
    %134 = vector.broadcast %cst_64 : f32 to vector<16x128xf32>
    %135 = arith.mulf %134, %20 : vector<16x128xf32>
    %136 = arith.mulf %135, %127 : vector<16x128xf32>
    %c1_65 = arith.constant 1 : index
    %c0_66 = arith.constant 0 : index
    %c0_67 = arith.constant 0 : index
    %137 = vector.load %arg2[%c1_65, %c0_66, %c0_67] : memref<100x16x128xf32, #tpu.memory_space<vmem>>, vector<1x16x128xf32>
    %138 = vector.shape_cast %137 : vector<1x16x128xf32> to vector<16x128xf32>
    %139 = vector.shape_cast %136 : vector<16x128xf32> to vector<1x16x128xf32>
    tpu.vector_store %arg2[%c1_65, %c0_66, %c0_67], %139 {strides = array<i32>} : memref<100x16x128xf32, #tpu.memory_space<vmem>>, vector<1x16x128xf32>,
    %cst_68 = arith.constant 3.000000e+00 : f32
    %140 = vector.broadcast %cst_68 : f32 to vector<16x128xf32>
    %141 = arith.mulf %140, %12 : vector<16x128xf32>
    %142 = arith.mulf %141, %127 : vector<16x128xf32>
    %cst_69 = arith.constant 0.3641828 : f32
    %143 = vector.broadcast %cst_69 : f32 to vector<16x128xf32>
    %144 = arith.mulf %143, %19 : vector<16x128xf32>
    %145 = arith.mulf %144, %142 : vector<16x128xf32>
    %c7 = arith.constant 7 : index
    %c0_70 = arith.constant 0 : index
    %c0_71 = arith.constant 0 : index
    %146 = vector.load %arg2[%c7, %c0_70, %c0_71] : memref<100x16x128xf32, #tpu.memory_space<vmem>>, vector<1x16x128xf32>
    %147 = vector.shape_cast %146 : vector<1x16x128xf32> to vector<16x128xf32>
    %148 = vector.shape_cast %145 : vector<16x128xf32> to vector<1x16x128xf32>
    tpu.vector_store %arg2[%c7, %c0_70, %c0_71], %148 {strides = array<i32>} : memref<100x16x128xf32, #tpu.memory_space<vmem>>, vector<1x16x128xf32>,
    %cst_72 = arith.constant 0.3641828 : f32
    %149 = vector.broadcast %cst_72 : f32 to vector<16x128xf32>
    %150 = arith.mulf %149, %20 : vector<16x128xf32>
    %151 = arith.mulf %150, %142 : vector<16x128xf32>
    %c5 = arith.constant 5 : index
    %c0_73 = arith.constant 0 : index
    %c0_74 = arith.constant 0 : index
    %152 = vector.load %arg2[%c5, %c0_73, %c0_74] : memref<100x16x128xf32, #tpu.memory_space<vmem>>, vector<1x16x128xf32>
    %153 = vector.shape_cast %152 : vector<1x16x128xf32> to vector<16x128xf32>
    %154 = vector.shape_cast %151 : vector<16x128xf32> to vector<1x16x128xf32>
    tpu.vector_store %arg2[%c5, %c0_73, %c0_74], %154 {strides = array<i32>} : memref<100x16x128xf32, #tpu.memory_space<vmem>>, vector<1x16x128xf32>,
    %cst_75 = arith.constant 2.500000e+00 : f32
    %155 = vector.broadcast %cst_75 : f32 to vector<16x128xf32>
    %156 = arith.mulf %155, %12 : vector<16x128xf32>
    %157 = arith.mulf %156, %142 : vector<16x128xf32>
    %cst_76 = arith.constant 1.500000e+00 : f32
    %158 = vector.broadcast %cst_76 : f32 to vector<16x128xf32>
    %159 = arith.mulf %158, %127 : vector<16x128xf32>
    %160 = arith.subf %157, %159 : vector<16x128xf32>
    %cst_77 = arith.constant 0.304697186 : f32
    %161 = vector.broadcast %cst_77 : f32 to vector<16x128xf32>
    %162 = arith.mulf %161, %19 : vector<16x128xf32>
    %163 = arith.mulf %162, %160 : vector<16x128xf32>
    %c13 = arith.constant 13 : index
    %c0_78 = arith.constant 0 : index
    %c0_79 = arith.constant 0 : index
    %164 = vector.load %arg2[%c13, %c0_78, %c0_79] : memref<100x16x128xf32, #tpu.memory_space<vmem>>, vector<1x16x128xf32>
    %165 = vector.shape_cast %164 : vector<1x16x128xf32> to vector<16x128xf32>
    %166 = vector.shape_cast %163 : vector<16x128xf32> to vector<1x16x128xf32>
    tpu.vector_store %arg2[%c13, %c0_78, %c0_79], %166 {strides = array<i32>} : memref<100x16x128xf32, #tpu.memory_space<vmem>>, vector<1x16x128xf32>,
    %cst_80 = arith.constant 0.304697186 : f32
    %167 = vector.broadcast %cst_80 : f32 to vector<16x128xf32>
    %168 = arith.mulf %167, %20 : vector<16x128xf32>
    %169 = arith.mulf %168, %160 : vector<16x128xf32>
    %c11 = arith.constant 11 : index
    %c0_81 = arith.constant 0 : index
    %c0_82 = arith.constant 0 : index
    %170 = vector.load %arg2[%c11, %c0_81, %c0_82] : memref<100x16x128xf32, #tpu.memory_space<vmem>>, vector<1x16x128xf32>
    %171 = vector.shape_cast %170 : vector<1x16x128xf32> to vector<16x128xf32>
    %172 = vector.shape_cast %169 : vector<16x128xf32> to vector<1x16x128xf32>
    tpu.vector_store %arg2[%c11, %c0_81, %c0_82], %172 {strides = array<i32>} : memref<100x16x128xf32, #tpu.memory_space<vmem>>, vector<1x16x128xf32>,
    %cst_83 = arith.constant 2.33333325 : f32
    %173 = vector.broadcast %cst_83 : f32 to vector<16x128xf32>
    %174 = arith.mulf %173, %12 : vector<16x128xf32>
    %175 = arith.mulf %174, %160 : vector<16x128xf32>
    %cst_84 = arith.constant 1.33333337 : f32
    %176 = vector.broadcast %cst_84 : f32 to vector<16x128xf32>
    %177 = arith.mulf %176, %142 : vector<16x128xf32>
    %178 = arith.subf %175, %177 : vector<16x128xf32>
    %cst_85 = arith.constant 0.267618626 : f32
    %179 = vector.broadcast %cst_85 : f32 to vector<16x128xf32>
    %180 = arith.mulf %179, %19 : vector<16x128xf32>
    %181 = arith.mulf %180, %178 : vector<16x128xf32>
    %c21 = arith.constant 21 : index
    %c0_86 = arith.constant 0 : index
    %c0_87 = arith.constant 0 : index
    %182 = vector.load %arg2[%c21, %c0_86, %c0_87] : memref<100x16x128xf32, #tpu.memory_space<vmem>>, vector<1x16x128xf32>
    %183 = vector.shape_cast %182 : vector<1x16x128xf32> to vector<16x128xf32>
    %184 = vector.shape_cast %181 : vector<16x128xf32> to vector<1x16x128xf32>
    tpu.vector_store %arg2[%c21, %c0_86, %c0_87], %184 {strides = array<i32>} : memref<100x16x128xf32, #tpu.memory_space<vmem>>, vector<1x16x128xf32>,
    %cst_88 = arith.constant 0.267618626 : f32
    %185 = vector.broadcast %cst_88 : f32 to vector<16x128xf32>
    %186 = arith.mulf %185, %20 : vector<16x128xf32>
    %187 = arith.mulf %186, %178 : vector<16x128xf32>
    %c19 = arith.constant 19 : index
    %c0_89 = arith.constant 0 : index
    %c0_90 = arith.constant 0 : index
    %188 = vector.load %arg2[%c19, %c0_89, %c0_90] : memref<100x16x128xf32, #tpu.memory_space<vmem>>, vector<1x16x128xf32>
    %189 = vector.shape_cast %188 : vector<1x16x128xf32> to vector<16x128xf32>
    %190 = vector.shape_cast %187 : vector<16x128xf32> to vector<1x16x128xf32>
    tpu.vector_store %arg2[%c19, %c0_89, %c0_90], %190 {strides = array<i32>} : memref<100x16x128xf32, #tpu.memory_space<vmem>>, vector<1x16x128xf32>,
    %cst_91 = arith.constant 2.250000e+00 : f32
    %191 = vector.broadcast %cst_91 : f32 to vector<16x128xf32>
    %192 = arith.mulf %191, %12 : vector<16x128xf32>
    %193 = arith.mulf %192, %178 : vector<16x128xf32>
    %cst_92 = arith.constant 1.250000e+00 : f32
    %194 = vector.broadcast %cst_92 : f32 to vector<16x128xf32>
    %195 = arith.mulf %194, %160 : vector<16x128xf32>
    %196 = arith.subf %193, %195 : vector<16x128xf32>
    %cst_93 = arith.constant 0.241571546 : f32
    %197 = vector.broadcast %cst_93 : f32 to vector<16x128xf32>
    %198 = arith.mulf %197, %19 : vector<16x128xf32>
    %199 = arith.mulf %198, %196 : vector<16x128xf32>
    %c31 = arith.constant 31 : index
    %c0_94 = arith.constant 0 : index
    %c0_95 = arith.constant 0 : index
    %200 = vector.load %arg2[%c31, %c0_94, %c0_95] : memref<100x16x128xf32, #tpu.memory_space<vmem>>, vector<1x16x128xf32>
    %201 = vector.shape_cast %200 : vector<1x16x128xf32> to vector<16x128xf32>
    %202 = vector.shape_cast %199 : vector<16x128xf32> to vector<1x16x128xf32>
    tpu.vector_store %arg2[%c31, %c0_94, %c0_95], %202 {strides = array<i32>} : memref<100x16x128xf32, #tpu.memory_space<vmem>>, vector<1x16x128xf32>,
    %cst_96 = arith.constant 0.241571546 : f32
    %203 = vector.broadcast %cst_96 : f32 to vector<16x128xf32>
    %204 = arith.mulf %203, %20 : vector<16x128xf32>
    %205 = arith.mulf %204, %196 : vector<16x128xf32>
    %c29 = arith.constant 29 : index
    %c0_97 = arith.constant 0 : index
    %c0_98 = arith.constant 0 : index
    %206 = vector.load %arg2[%c29, %c0_97, %c0_98] : memref<100x16x128xf32, #tpu.memory_space<vmem>>, vector<1x16x128xf32>
    %207 = vector.shape_cast %206 : vector<1x16x128xf32> to vector<16x128xf32>
    %208 = vector.shape_cast %205 : vector<16x128xf32> to vector<1x16x128xf32>
    tpu.vector_store %arg2[%c29, %c0_97, %c0_98], %208 {strides = array<i32>} : memref<100x16x128xf32, #tpu.memory_space<vmem>>, vector<1x16x128xf32>,
    %cst_99 = arith.constant 2.200000e+00 : f32
    %209 = vector.broadcast %cst_99 : f32 to vector<16x128xf32>
    %210 = arith.mulf %209, %12 : vector<16x128xf32>
    %211 = arith.mulf %210, %196 : vector<16x128xf32>
    %cst_100 = arith.constant 1.200000e+00 : f32
    %212 = vector.broadcast %cst_100 : f32 to vector<16x128xf32>
    %213 = arith.mulf %212, %178 : vector<16x128xf32>
    %214 = arith.subf %211, %213 : vector<16x128xf32>
    %cst_101 = arith.constant 2.219510e-01 : f32
    %215 = vector.broadcast %cst_101 : f32 to vector<16x128xf32>
    %216 = arith.mulf %215, %19 : vector<16x128xf32>
    %217 = arith.mulf %216, %214 : vector<16x128xf32>
    %c43 = arith.constant 43 : index
    %c0_102 = arith.constant 0 : index
    %c0_103 = arith.constant 0 : index
    %218 = vector.load %arg2[%c43, %c0_102, %c0_103] : memref<100x16x128xf32, #tpu.memory_space<vmem>>, vector<1x16x128xf32>
    %219 = vector.shape_cast %218 : vector<1x16x128xf32> to vector<16x128xf32>
    %220 = vector.shape_cast %217 : vector<16x128xf32> to vector<1x16x128xf32>
    tpu.vector_store %arg2[%c43, %c0_102, %c0_103], %220 {strides = array<i32>} : memref<100x16x128xf32, #tpu.memory_space<vmem>>, vector<1x16x128xf32>,
    %cst_104 = arith.constant 2.219510e-01 : f32
    %221 = vector.broadcast %cst_104 : f32 to vector<16x128xf32>
    %222 = arith.mulf %221, %20 : vector<16x128xf32>
    %223 = arith.mulf %222, %214 : vector<16x128xf32>
    %c41 = arith.constant 41 : index
    %c0_105 = arith.constant 0 : index
    %c0_106 = arith.constant 0 : index
    %224 = vector.load %arg2[%c41, %c0_105, %c0_106] : memref<100x16x128xf32, #tpu.memory_space<vmem>>, vector<1x16x128xf32>
    %225 = vector.shape_cast %224 : vector<1x16x128xf32> to vector<16x128xf32>
    %226 = vector.shape_cast %223 : vector<16x128xf32> to vector<1x16x128xf32>
    tpu.vector_store %arg2[%c41, %c0_105, %c0_106], %226 {strides = array<i32>} : memref<100x16x128xf32, #tpu.memory_space<vmem>>, vector<1x16x128xf32>,
    %cst_107 = arith.constant 2.16666675 : f32
    %227 = vector.broadcast %cst_107 : f32 to vector<16x128xf32>
    %228 = arith.mulf %227, %12 : vector<16x128xf32>
    %229 = arith.mulf %228, %214 : vector<16x128xf32>
    %cst_108 = arith.constant 1.16666663 : f32
    %230 = vector.broadcast %cst_108 : f32 to vector<16x128xf32>
    %231 = arith.mulf %230, %196 : vector<16x128xf32>
    %232 = arith.subf %229, %231 : vector<16x128xf32>
    %cst_109 = arith.constant 0.206472248 : f32
    %233 = vector.broadcast %cst_109 : f32 to vector<16x128xf32>
    %234 = arith.mulf %233, %19 : vector<16x128xf32>
    %235 = arith.mulf %234, %232 : vector<16x128xf32>
    %c57 = arith.constant 57 : index
    %c0_110 = arith.constant 0 : index
    %c0_111 = arith.constant 0 : index
    %236 = vector.load %arg2[%c57, %c0_110, %c0_111] : memref<100x16x128xf32, #tpu.memory_space<vmem>>, vector<1x16x128xf32>
    %237 = vector.shape_cast %236 : vector<1x16x128xf32> to vector<16x128xf32>
    %238 = vector.shape_cast %235 : vector<16x128xf32> to vector<1x16x128xf32>
    tpu.vector_store %arg2[%c57, %c0_110, %c0_111], %238 {strides = array<i32>} : memref<100x16x128xf32, #tpu.memory_space<vmem>>, vector<1x16x128xf32>,
    %cst_112 = arith.constant 0.206472248 : f32
    %239 = vector.broadcast %cst_112 : f32 to vector<16x128xf32>
    %240 = arith.mulf %239, %20 : vector<16x128xf32>
    %241 = arith.mulf %240, %232 : vector<16x128xf32>
    %c55 = arith.constant 55 : index
    %c0_113 = arith.constant 0 : index
    %c0_114 = arith.constant 0 : index
    %242 = vector.load %arg2[%c55, %c0_113, %c0_114] : memref<100x16x128xf32, #tpu.memory_space<vmem>>, vector<1x16x128xf32>
    %243 = vector.shape_cast %242 : vector<1x16x128xf32> to vector<16x128xf32>
    %244 = vector.shape_cast %241 : vector<16x128xf32> to vector<1x16x128xf32>
    tpu.vector_store %arg2[%c55, %c0_113, %c0_114], %244 {strides = array<i32>} : memref<100x16x128xf32, #tpu.memory_space<vmem>>, vector<1x16x128xf32>,
    %cst_115 = arith.constant 2.14285707 : f32
    %245 = vector.broadcast %cst_115 : f32 to vector<16x128xf32>
    %246 = arith.mulf %245, %12 : vector<16x128xf32>
    %247 = arith.mulf %246, %232 : vector<16x128xf32>
    %cst_116 = arith.constant 1.14285719 : f32
    %248 = vector.broadcast %cst_116 : f32 to vector<16x128xf32>
    %249 = arith.mulf %248, %214 : vector<16x128xf32>
    %250 = arith.subf %247, %249 : vector<16x128xf32>
    %cst_117 = arith.constant 0.193851098 : f32
    %251 = vector.broadcast %cst_117 : f32 to vector<16x128xf32>
    %252 = arith.mulf %251, %19 : vector<16x128xf32>
    %253 = arith.mulf %252, %250 : vector<16x128xf32>
    %c73 = arith.constant 73 : index
    %c0_118 = arith.constant 0 : index
    %c0_119 = arith.constant 0 : index
    %254 = vector.load %arg2[%c73, %c0_118, %c0_119] : memref<100x16x128xf32, #tpu.memory_space<vmem>>, vector<1x16x128xf32>
    %255 = vector.shape_cast %254 : vector<1x16x128xf32> to vector<16x128xf32>
    %256 = vector.shape_cast %253 : vector<16x128xf32> to vector<1x16x128xf32>
    tpu.vector_store %arg2[%c73, %c0_118, %c0_119], %256 {strides = array<i32>} : memref<100x16x128xf32, #tpu.memory_space<vmem>>, vector<1x16x128xf32>,
    %cst_120 = arith.constant 0.193851098 : f32
    %257 = vector.broadcast %cst_120 : f32 to vector<16x128xf32>
    %258 = arith.mulf %257, %20 : vector<16x128xf32>
    %259 = arith.mulf %258, %250 : vector<16x128xf32>
    %c71 = arith.constant 71 : index
    %c0_121 = arith.constant 0 : index
    %c0_122 = arith.constant 0 : index
    %260 = vector.load %arg2[%c71, %c0_121, %c0_122] : memref<100x16x128xf32, #tpu.memory_space<vmem>>, vector<1x16x128xf32>
    %261 = vector.shape_cast %260 : vector<1x16x128xf32> to vector<16x128xf32>
    %262 = vector.shape_cast %259 : vector<16x128xf32> to vector<1x16x128xf32>
    tpu.vector_store %arg2[%c71, %c0_121, %c0_122], %262 {strides = array<i32>} : memref<100x16x128xf32, #tpu.memory_space<vmem>>, vector<1x16x128xf32>,
    %cst_123 = arith.constant 2.125000e+00 : f32
    %263 = vector.broadcast %cst_123 : f32 to vector<16x128xf32>
    %264 = arith.mulf %263, %12 : vector<16x128xf32>
    %265 = arith.mulf %264, %250 : vector<16x128xf32>
    %cst_124 = arith.constant 1.125000e+00 : f32
    %266 = vector.broadcast %cst_124 : f32 to vector<16x128xf32>
    %267 = arith.mulf %266, %232 : vector<16x128xf32>
    %268 = arith.subf %265, %267 : vector<16x128xf32>
    %cst_125 = arith.constant 0.18330133 : f32
    %269 = vector.broadcast %cst_125 : f32 to vector<16x128xf32>
    %270 = arith.mulf %269, %19 : vector<16x128xf32>
    %271 = arith.mulf %270, %268 : vector<16x128xf32>
    %c91 = arith.constant 91 : index
    %c0_126 = arith.constant 0 : index
    %c0_127 = arith.constant 0 : index
    %272 = vector.load %arg2[%c91, %c0_126, %c0_127] : memref<100x16x128xf32, #tpu.memory_space<vmem>>, vector<1x16x128xf32>
    %273 = vector.shape_cast %272 : vector<1x16x128xf32> to vector<16x128xf32>
    %274 = vector.shape_cast %271 : vector<16x128xf32> to vector<1x16x128xf32>
    tpu.vector_store %arg2[%c91, %c0_126, %c0_127], %274 {strides = array<i32>} : memref<100x16x128xf32, #tpu.memory_space<vmem>>, vector<1x16x128xf32>,
    %cst_128 = arith.constant 0.18330133 : f32
    %275 = vector.broadcast %cst_128 : f32 to vector<16x128xf32>
    %276 = arith.mulf %275, %20 : vector<16x128xf32>
    %277 = arith.mulf %276, %268 : vector<16x128xf32>
    %c89 = arith.constant 89 : index
    %c0_129 = arith.constant 0 : index
    %c0_130 = arith.constant 0 : index
    %278 = vector.load %arg2[%c89, %c0_129, %c0_130] : memref<100x16x128xf32, #tpu.memory_space<vmem>>, vector<1x16x128xf32>
    %279 = vector.shape_cast %278 : vector<1x16x128xf32> to vector<16x128xf32>
    %280 = vector.shape_cast %277 : vector<16x128xf32> to vector<1x16x128xf32>
    tpu.vector_store %arg2[%c89, %c0_129, %c0_130], %280 {strides = array<i32>} : memref<100x16x128xf32, #tpu.memory_space<vmem>>, vector<1x16x128xf32>,
    %cst_131 = arith.constant 2.000000e+00 : f32
    %281 = vector.broadcast %cst_131 : f32 to vector<16x128xf32>
    %282 = arith.mulf %281, %19 : vector<16x128xf32>
    %283 = arith.mulf %282, %19 : vector<16x128xf32>
    %284 = arith.subf %283, %21 : vector<16x128xf32>
    %cst_132 = arith.constant 2.000000e+00 : f32
    %285 = vector.broadcast %cst_132 : f32 to vector<16x128xf32>
    %286 = arith.mulf %285, %19 : vector<16x128xf32>
    %287 = arith.mulf %286, %20 : vector<16x128xf32>
    %288 = arith.subf %287, %22 : vector<16x128xf32>
    %cst_133 = arith.constant -3.000000e+00 : f32
    %289 = vector.broadcast %cst_133 : f32 to vector<16x128xf32>
    %290 = arith.mulf %127, %289 : vector<16x128xf32>
    %291 = arith.mulf %290, %18 : vector<16x128xf32>
    %cst_134 = arith.constant 0.1820914 : f32
    %292 = vector.broadcast %cst_134 : f32 to vector<16x128xf32>
    %293 = arith.mulf %292, %284 : vector<16x128xf32>
    %294 = arith.mulf %293, %291 : vector<16x128xf32>
    %c8 = arith.constant 8 : index
    %c0_135 = arith.constant 0 : index
    %c0_136 = arith.constant 0 : index
    %295 = vector.load %arg2[%c8, %c0_135, %c0_136] : memref<100x16x128xf32, #tpu.memory_space<vmem>>, vector<1x16x128xf32>
    %296 = vector.shape_cast %295 : vector<1x16x128xf32> to vector<16x128xf32>
    %297 = vector.shape_cast %294 : vector<16x128xf32> to vector<1x16x128xf32>
    tpu.vector_store %arg2[%c8, %c0_135, %c0_136], %297 {strides = array<i32>} : memref<100x16x128xf32, #tpu.memory_space<vmem>>, vector<1x16x128xf32>,
    %cst_137 = arith.constant 0.1820914 : f32
    %298 = vector.broadcast %cst_137 : f32 to vector<16x128xf32>
    %299 = arith.mulf %298, %288 : vector<16x128xf32>
    %300 = arith.mulf %299, %291 : vector<16x128xf32>
    %c4 = arith.constant 4 : index
    %c0_138 = arith.constant 0 : index
    %c0_139 = arith.constant 0 : index
    %301 = vector.load %arg2[%c4, %c0_138, %c0_139] : memref<100x16x128xf32, #tpu.memory_space<vmem>>, vector<1x16x128xf32>
    %302 = vector.shape_cast %301 : vector<1x16x128xf32> to vector<16x128xf32>
    %303 = vector.shape_cast %300 : vector<16x128xf32> to vector<1x16x128xf32>
    tpu.vector_store %arg2[%c4, %c0_138, %c0_139], %303 {strides = array<i32>} : memref<100x16x128xf32, #tpu.memory_space<vmem>>, vector<1x16x128xf32>,
    %cst_140 = arith.constant 5.000000e+00 : f32
    %304 = vector.broadcast %cst_140 : f32 to vector<16x128xf32>
    %305 = arith.mulf %304, %12 : vector<16x128xf32>
    %306 = arith.mulf %305, %291 : vector<16x128xf32>
    %cst_141 = arith.constant 0.0963537171 : f32
    %307 = vector.broadcast %cst_141 : f32 to vector<16x128xf32>
    %308 = arith.mulf %307, %284 : vector<16x128xf32>
    %309 = arith.mulf %308, %306 : vector<16x128xf32>
    %c14 = arith.constant 14 : index
    %c0_142 = arith.constant 0 : index
    %c0_143 = arith.constant 0 : index
    %310 = vector.load %arg2[%c14, %c0_142, %c0_143] : memref<100x16x128xf32, #tpu.memory_space<vmem>>, vector<1x16x128xf32>
    %311 = vector.shape_cast %310 : vector<1x16x128xf32> to vector<16x128xf32>
    %312 = vector.shape_cast %309 : vector<16x128xf32> to vector<1x16x128xf32>
    tpu.vector_store %arg2[%c14, %c0_142, %c0_143], %312 {strides = array<i32>} : memref<100x16x128xf32, #tpu.memory_space<vmem>>, vector<1x16x128xf32>,
    %cst_144 = arith.constant 0.0963537171 : f32
    %313 = vector.broadcast %cst_144 : f32 to vector<16x128xf32>
    %314 = arith.mulf %313, %288 : vector<16x128xf32>
    %315 = arith.mulf %314, %306 : vector<16x128xf32>
    %c10 = arith.constant 10 : index
    %c0_145 = arith.constant 0 : index
    %c0_146 = arith.constant 0 : index
    %316 = vector.load %arg2[%c10, %c0_145, %c0_146] : memref<100x16x128xf32, #tpu.memory_space<vmem>>, vector<1x16x128xf32>
    %317 = vector.shape_cast %316 : vector<1x16x128xf32> to vector<16x128xf32>
    %318 = vector.shape_cast %315 : vector<16x128xf32> to vector<1x16x128xf32>
    tpu.vector_store %arg2[%c10, %c0_145, %c0_146], %318 {strides = array<i32>} : memref<100x16x128xf32, #tpu.memory_space<vmem>>, vector<1x16x128xf32>,
    %cst_147 = arith.constant 3.500000e+00 : f32
    %319 = vector.broadcast %cst_147 : f32 to vector<16x128xf32>
    %320 = arith.mulf %319, %12 : vector<16x128xf32>
    %321 = arith.mulf %320, %306 : vector<16x128xf32>
    %cst_148 = arith.constant 2.500000e+00 : f32
    %322 = vector.broadcast %cst_148 : f32 to vector<16x128xf32>
    %323 = arith.mulf %322, %291 : vector<16x128xf32>
    %324 = arith.subf %321, %323 : vector<16x128xf32>
    %cst_149 = arith.constant 0.063078314 : f32
    %325 = vector.broadcast %cst_149 : f32 to vector<16x128xf32>
    %326 = arith.mulf %325, %284 : vector<16x128xf32>
    %327 = arith.mulf %326, %324 : vector<16x128xf32>
    %c22 = arith.constant 22 : index
    %c0_150 = arith.constant 0 : index
    %c0_151 = arith.constant 0 : index
    %328 = vector.load %arg2[%c22, %c0_150, %c0_151] : memref<100x16x128xf32, #tpu.memory_space<vmem>>, vector<1x16x128xf32>
    %329 = vector.shape_cast %328 : vector<1x16x128xf32> to vector<16x128xf32>
    %330 = vector.shape_cast %327 : vector<16x128xf32> to vector<1x16x128xf32>
    tpu.vector_store %arg2[%c22, %c0_150, %c0_151], %330 {strides = array<i32>} : memref<100x16x128xf32, #tpu.memory_space<vmem>>, vector<1x16x128xf32>,
    %cst_152 = arith.constant 0.063078314 : f32
    %331 = vector.broadcast %cst_152 : f32 to vector<16x128xf32>
    %332 = arith.mulf %331, %288 : vector<16x128xf32>
    %333 = arith.mulf %332, %324 : vector<16x128xf32>
    %c18 = arith.constant 18 : index
    %c0_153 = arith.constant 0 : index
    %c0_154 = arith.constant 0 : index
    %334 = vector.load %arg2[%c18, %c0_153, %c0_154] : memref<100x16x128xf32, #tpu.memory_space<vmem>>, vector<1x16x128xf32>
    %335 = vector.shape_cast %334 : vector<1x16x128xf32> to vector<16x128xf32>
    %336 = vector.shape_cast %333 : vector<16x128xf32> to vector<1x16x128xf32>
    tpu.vector_store %arg2[%c18, %c0_153, %c0_154], %336 {strides = array<i32>} : memref<100x16x128xf32, #tpu.memory_space<vmem>>, vector<1x16x128xf32>,
    %cst_155 = arith.constant 3.000000e+00 : f32
    %337 = vector.broadcast %cst_155 : f32 to vector<16x128xf32>
    %338 = arith.mulf %337, %12 : vector<16x128xf32>
    %339 = arith.mulf %338, %324 : vector<16x128xf32>
    %cst_156 = arith.constant 2.000000e+00 : f32
    %340 = vector.broadcast %cst_156 : f32 to vector<16x128xf32>
    %341 = arith.mulf %340, %306 : vector<16x128xf32>
    %342 = arith.subf %339, %341 : vector<16x128xf32>
    %cst_157 = arith.constant 0.0456527323 : f32
    %343 = vector.broadcast %cst_157 : f32 to vector<16x128xf32>
    %344 = arith.mulf %343, %284 : vector<16x128xf32>
    %345 = arith.mulf %344, %342 : vector<16x128xf32>
    %c32 = arith.constant 32 : index
    %c0_158 = arith.constant 0 : index
    %c0_159 = arith.constant 0 : index
    %346 = vector.load %arg2[%c32, %c0_158, %c0_159] : memref<100x16x128xf32, #tpu.memory_space<vmem>>, vector<1x16x128xf32>
    %347 = vector.shape_cast %346 : vector<1x16x128xf32> to vector<16x128xf32>
    %348 = vector.shape_cast %345 : vector<16x128xf32> to vector<1x16x128xf32>
    tpu.vector_store %arg2[%c32, %c0_158, %c0_159], %348 {strides = array<i32>} : memref<100x16x128xf32, #tpu.memory_space<vmem>>, vector<1x16x128xf32>,
    %cst_160 = arith.constant 0.0456527323 : f32
    %349 = vector.broadcast %cst_160 : f32 to vector<16x128xf32>
    %350 = arith.mulf %349, %288 : vector<16x128xf32>
    %351 = arith.mulf %350, %342 : vector<16x128xf32>
    %c28 = arith.constant 28 : index
    %c0_161 = arith.constant 0 : index
    %c0_162 = arith.constant 0 : index
    %352 = vector.load %arg2[%c28, %c0_161, %c0_162] : memref<100x16x128xf32, #tpu.memory_space<vmem>>, vector<1x16x128xf32>
    %353 = vector.shape_cast %352 : vector<1x16x128xf32> to vector<16x128xf32>
    %354 = vector.shape_cast %351 : vector<16x128xf32> to vector<1x16x128xf32>
    tpu.vector_store %arg2[%c28, %c0_161, %c0_162], %354 {strides = array<i32>} : memref<100x16x128xf32, #tpu.memory_space<vmem>>, vector<1x16x128xf32>,
    %cst_163 = arith.constant 2.750000e+00 : f32
    %355 = vector.broadcast %cst_163 : f32 to vector<16x128xf32>
    %356 = arith.mulf %355, %12 : vector<16x128xf32>
    %357 = arith.mulf %356, %342 : vector<16x128xf32>
    %cst_164 = arith.constant 1.750000e+00 : f32
    %358 = vector.broadcast %cst_164 : f32 to vector<16x128xf32>
    %359 = arith.mulf %358, %324 : vector<16x128xf32>
    %360 = arith.subf %357, %359 : vector<16x128xf32>
    %cst_165 = arith.constant 0.0350935347 : f32
    %361 = vector.broadcast %cst_165 : f32 to vector<16x128xf32>
    %362 = arith.mulf %361, %284 : vector<16x128xf32>
    %363 = arith.mulf %362, %360 : vector<16x128xf32>
    %c44 = arith.constant 44 : index
    %c0_166 = arith.constant 0 : index
    %c0_167 = arith.constant 0 : index
    %364 = vector.load %arg2[%c44, %c0_166, %c0_167] : memref<100x16x128xf32, #tpu.memory_space<vmem>>, vector<1x16x128xf32>
    %365 = vector.shape_cast %364 : vector<1x16x128xf32> to vector<16x128xf32>
    %366 = vector.shape_cast %363 : vector<16x128xf32> to vector<1x16x128xf32>
    tpu.vector_store %arg2[%c44, %c0_166, %c0_167], %366 {strides = array<i32>} : memref<100x16x128xf32, #tpu.memory_space<vmem>>, vector<1x16x128xf32>,
    %cst_168 = arith.constant 0.0350935347 : f32
    %367 = vector.broadcast %cst_168 : f32 to vector<16x128xf32>
    %368 = arith.mulf %367, %288 : vector<16x128xf32>
    %369 = arith.mulf %368, %360 : vector<16x128xf32>
    %c40 = arith.constant 40 : index
    %c0_169 = arith.constant 0 : index
    %c0_170 = arith.constant 0 : index
    %370 = vector.load %arg2[%c40, %c0_169, %c0_170] : memref<100x16x128xf32, #tpu.memory_space<vmem>>, vector<1x16x128xf32>
    %371 = vector.shape_cast %370 : vector<1x16x128xf32> to vector<16x128xf32>
    %372 = vector.shape_cast %369 : vector<16x128xf32> to vector<1x16x128xf32>
    tpu.vector_store %arg2[%c40, %c0_169, %c0_170], %372 {strides = array<i32>} : memref<100x16x128xf32, #tpu.memory_space<vmem>>, vector<1x16x128xf32>,
    %cst_171 = arith.constant 2.600000e+00 : f32
    %373 = vector.broadcast %cst_171 : f32 to vector<16x128xf32>
    %374 = arith.mulf %373, %12 : vector<16x128xf32>
    %375 = arith.mulf %374, %360 : vector<16x128xf32>
    %cst_172 = arith.constant 1.600000e+00 : f32
    %376 = vector.broadcast %cst_172 : f32 to vector<16x128xf32>
    %377 = arith.mulf %376, %342 : vector<16x128xf32>
    %378 = arith.subf %375, %377 : vector<16x128xf32>
    %cst_173 = arith.constant 0.0280973129 : f32
    %379 = vector.broadcast %cst_173 : f32 to vector<16x128xf32>
    %380 = arith.mulf %379, %284 : vector<16x128xf32>
    %381 = arith.mulf %380, %378 : vector<16x128xf32>
    %c58 = arith.constant 58 : index
    %c0_174 = arith.constant 0 : index
    %c0_175 = arith.constant 0 : index
    %382 = vector.load %arg2[%c58, %c0_174, %c0_175] : memref<100x16x128xf32, #tpu.memory_space<vmem>>, vector<1x16x128xf32>
    %383 = vector.shape_cast %382 : vector<1x16x128xf32> to vector<16x128xf32>
    %384 = vector.shape_cast %381 : vector<16x128xf32> to vector<1x16x128xf32>
    tpu.vector_store %arg2[%c58, %c0_174, %c0_175], %384 {strides = array<i32>} : memref<100x16x128xf32, #tpu.memory_space<vmem>>, vector<1x16x128xf32>,
    %cst_176 = arith.constant 0.0280973129 : f32
    %385 = vector.broadcast %cst_176 : f32 to vector<16x128xf32>
    %386 = arith.mulf %385, %288 : vector<16x128xf32>
    %387 = arith.mulf %386, %378 : vector<16x128xf32>
    %c54 = arith.constant 54 : index
    %c0_177 = arith.constant 0 : index
    %c0_178 = arith.constant 0 : index
    %388 = vector.load %arg2[%c54, %c0_177, %c0_178] : memref<100x16x128xf32, #tpu.memory_space<vmem>>, vector<1x16x128xf32>
    %389 = vector.shape_cast %388 : vector<1x16x128xf32> to vector<16x128xf32>
    %390 = vector.shape_cast %387 : vector<16x128xf32> to vector<1x16x128xf32>
    tpu.vector_store %arg2[%c54, %c0_177, %c0_178], %390 {strides = array<i32>} : memref<100x16x128xf32, #tpu.memory_space<vmem>>, vector<1x16x128xf32>,
    %cst_179 = arith.constant 2.500000e+00 : f32
    %391 = vector.broadcast %cst_179 : f32 to vector<16x128xf32>
    %392 = arith.mulf %391, %12 : vector<16x128xf32>
    %393 = arith.mulf %392, %378 : vector<16x128xf32>
    %cst_180 = arith.constant 1.500000e+00 : f32
    %394 = vector.broadcast %cst_180 : f32 to vector<16x128xf32>
    %395 = arith.mulf %394, %360 : vector<16x128xf32>
    %396 = arith.subf %393, %395 : vector<16x128xf32>
    %cst_181 = arith.constant 0.0231696386 : f32
    %397 = vector.broadcast %cst_181 : f32 to vector<16x128xf32>
    %398 = arith.mulf %397, %284 : vector<16x128xf32>
    %399 = arith.mulf %398, %396 : vector<16x128xf32>
    %c74 = arith.constant 74 : index
    %c0_182 = arith.constant 0 : index
    %c0_183 = arith.constant 0 : index
    %400 = vector.load %arg2[%c74, %c0_182, %c0_183] : memref<100x16x128xf32, #tpu.memory_space<vmem>>, vector<1x16x128xf32>
    %401 = vector.shape_cast %400 : vector<1x16x128xf32> to vector<16x128xf32>
    %402 = vector.shape_cast %399 : vector<16x128xf32> to vector<1x16x128xf32>
    tpu.vector_store %arg2[%c74, %c0_182, %c0_183], %402 {strides = array<i32>} : memref<100x16x128xf32, #tpu.memory_space<vmem>>, vector<1x16x128xf32>,
    %cst_184 = arith.constant 0.0231696386 : f32
    %403 = vector.broadcast %cst_184 : f32 to vector<16x128xf32>
    %404 = arith.mulf %403, %288 : vector<16x128xf32>
    %405 = arith.mulf %404, %396 : vector<16x128xf32>
    %c70 = arith.constant 70 : index
    %c0_185 = arith.constant 0 : index
    %c0_186 = arith.constant 0 : index
    %406 = vector.load %arg2[%c70, %c0_185, %c0_186] : memref<100x16x128xf32, #tpu.memory_space<vmem>>, vector<1x16x128xf32>
    %407 = vector.shape_cast %406 : vector<1x16x128xf32> to vector<16x128xf32>
    %408 = vector.shape_cast %405 : vector<16x128xf32> to vector<1x16x128xf32>
    tpu.vector_store %arg2[%c70, %c0_185, %c0_186], %408 {strides = array<i32>} : memref<100x16x128xf32, #tpu.memory_space<vmem>>, vector<1x16x128xf32>,
    %cst_187 = arith.constant 2.42857146 : f32
    %409 = vector.broadcast %cst_187 : f32 to vector<16x128xf32>
    %410 = arith.mulf %409, %12 : vector<16x128xf32>
    %411 = arith.mulf %410, %396 : vector<16x128xf32>
    %cst_188 = arith.constant 1.42857146 : f32
    %412 = vector.broadcast %cst_188 : f32 to vector<16x128xf32>
    %413 = arith.mulf %412, %378 : vector<16x128xf32>
    %414 = arith.subf %411, %413 : vector<16x128xf32>
    %cst_189 = arith.constant 0.0195399877 : f32
    %415 = vector.broadcast %cst_189 : f32 to vector<16x128xf32>
    %416 = arith.mulf %415, %284 : vector<16x128xf32>
    %417 = arith.mulf %416, %414 : vector<16x128xf32>
    %c92 = arith.constant 92 : index
    %c0_190 = arith.constant 0 : index
    %c0_191 = arith.constant 0 : index
    %418 = vector.load %arg2[%c92, %c0_190, %c0_191] : memref<100x16x128xf32, #tpu.memory_space<vmem>>, vector<1x16x128xf32>
    %419 = vector.shape_cast %418 : vector<1x16x128xf32> to vector<16x128xf32>
    %420 = vector.shape_cast %417 : vector<16x128xf32> to vector<1x16x128xf32>
    tpu.vector_store %arg2[%c92, %c0_190, %c0_191], %420 {strides = array<i32>} : memref<100x16x128xf32, #tpu.memory_space<vmem>>, vector<1x16x128xf32>,
    %cst_192 = arith.constant 0.0195399877 : f32
    %421 = vector.broadcast %cst_192 : f32 to vector<16x128xf32>
    %422 = arith.mulf %421, %288 : vector<16x128xf32>
    %423 = arith.mulf %422, %414 : vector<16x128xf32>
    %c88 = arith.constant 88 : index
    %c0_193 = arith.constant 0 : index
    %c0_194 = arith.constant 0 : index
    %424 = vector.load %arg2[%c88, %c0_193, %c0_194] : memref<100x16x128xf32, #tpu.memory_space<vmem>>, vector<1x16x128xf32>
    %425 = vector.shape_cast %424 : vector<1x16x128xf32> to vector<16x128xf32>
    %426 = vector.shape_cast %423 : vector<16x128xf32> to vector<1x16x128xf32>
    tpu.vector_store %arg2[%c88, %c0_193, %c0_194], %426 {strides = array<i32>} : memref<100x16x128xf32, #tpu.memory_space<vmem>>, vector<1x16x128xf32>,
    %cst_195 = arith.constant 2.000000e+00 : f32
    %427 = vector.broadcast %cst_195 : f32 to vector<16x128xf32>
    %428 = arith.mulf %427, %19 : vector<16x128xf32>
    %429 = arith.mulf %428, %284 : vector<16x128xf32>
    %430 = arith.subf %429, %19 : vector<16x128xf32>
    %cst_196 = arith.constant 2.000000e+00 : f32
    %431 = vector.broadcast %cst_196 : f32 to vector<16x128xf32>
    %432 = arith.mulf %431, %19 : vector<16x128xf32>
    %433 = arith.mulf %432, %288 : vector<16x128xf32>
    %434 = arith.subf %433, %20 : vector<16x128xf32>
    %cst_197 = arith.constant -5.000000e+00 : f32
    %435 = vector.broadcast %cst_197 : f32 to vector<16x128xf32>
    %436 = arith.mulf %291, %435 : vector<16x128xf32>
    %437 = arith.mulf %436, %18 : vector<16x128xf32>
    %cst_198 = arith.constant 0.0393362381 : f32
    %438 = vector.broadcast %cst_198 : f32 to vector<16x128xf32>
    %439 = arith.mulf %438, %430 : vector<16x128xf32>
    %440 = arith.mulf %439, %437 : vector<16x128xf32>
    %c15 = arith.constant 15 : index
    %c0_199 = arith.constant 0 : index
    %c0_200 = arith.constant 0 : index
    %441 = vector.load %arg2[%c15, %c0_199, %c0_200] : memref<100x16x128xf32, #tpu.memory_space<vmem>>, vector<1x16x128xf32>
    %442 = vector.shape_cast %441 : vector<1x16x128xf32> to vector<16x128xf32>
    %443 = vector.shape_cast %440 : vector<16x128xf32> to vector<1x16x128xf32>
    tpu.vector_store %arg2[%c15, %c0_199, %c0_200], %443 {strides = array<i32>} : memref<100x16x128xf32, #tpu.memory_space<vmem>>, vector<1x16x128xf32>,
    %cst_201 = arith.constant 0.0393362381 : f32
    %444 = vector.broadcast %cst_201 : f32 to vector<16x128xf32>
    %445 = arith.mulf %444, %434 : vector<16x128xf32>
    %446 = arith.mulf %445, %437 : vector<16x128xf32>
    %c9 = arith.constant 9 : index
    %c0_202 = arith.constant 0 : index
    %c0_203 = arith.constant 0 : index
    %447 = vector.load %arg2[%c9, %c0_202, %c0_203] : memref<100x16x128xf32, #tpu.memory_space<vmem>>, vector<1x16x128xf32>
    %448 = vector.shape_cast %447 : vector<1x16x128xf32> to vector<16x128xf32>
    %449 = vector.shape_cast %446 : vector<16x128xf32> to vector<1x16x128xf32>
    tpu.vector_store %arg2[%c9, %c0_202, %c0_203], %449 {strides = array<i32>} : memref<100x16x128xf32, #tpu.memory_space<vmem>>, vector<1x16x128xf32>,
    %cst_204 = arith.constant 7.000000e+00 : f32
    %450 = vector.broadcast %cst_204 : f32 to vector<16x128xf32>
    %451 = arith.mulf %450, %12 : vector<16x128xf32>
    %452 = arith.mulf %451, %437 : vector<16x128xf32>
    %cst_205 = arith.constant 0.0168583877 : f32
    %453 = vector.broadcast %cst_205 : f32 to vector<16x128xf32>
    %454 = arith.mulf %453, %430 : vector<16x128xf32>
    %455 = arith.mulf %454, %452 : vector<16x128xf32>
    %c23 = arith.constant 23 : index
    %c0_206 = arith.constant 0 : index
    %c0_207 = arith.constant 0 : index
    %456 = vector.load %arg2[%c23, %c0_206, %c0_207] : memref<100x16x128xf32, #tpu.memory_space<vmem>>, vector<1x16x128xf32>
    %457 = vector.shape_cast %456 : vector<1x16x128xf32> to vector<16x128xf32>
    %458 = vector.shape_cast %455 : vector<16x128xf32> to vector<1x16x128xf32>
    tpu.vector_store %arg2[%c23, %c0_206, %c0_207], %458 {strides = array<i32>} : memref<100x16x128xf32, #tpu.memory_space<vmem>>, vector<1x16x128xf32>,
    %cst_208 = arith.constant 0.0168583877 : f32
    %459 = vector.broadcast %cst_208 : f32 to vector<16x128xf32>
    %460 = arith.mulf %459, %434 : vector<16x128xf32>
    %461 = arith.mulf %460, %452 : vector<16x128xf32>
    %c17 = arith.constant 17 : index
    %c0_209 = arith.constant 0 : index
    %c0_210 = arith.constant 0 : index
    %462 = vector.load %arg2[%c17, %c0_209, %c0_210] : memref<100x16x128xf32, #tpu.memory_space<vmem>>, vector<1x16x128xf32>
    %463 = vector.shape_cast %462 : vector<1x16x128xf32> to vector<16x128xf32>
    %464 = vector.shape_cast %461 : vector<16x128xf32> to vector<1x16x128xf32>
    tpu.vector_store %arg2[%c17, %c0_209, %c0_210], %464 {strides = array<i32>} : memref<100x16x128xf32, #tpu.memory_space<vmem>>, vector<1x16x128xf32>,
    %cst_211 = arith.constant 4.500000e+00 : f32
    %465 = vector.broadcast %cst_211 : f32 to vector<16x128xf32>
    %466 = arith.mulf %465, %12 : vector<16x128xf32>
    %467 = arith.mulf %466, %452 : vector<16x128xf32>
    %cst_212 = arith.constant 3.500000e+00 : f32
    %468 = vector.broadcast %cst_212 : f32 to vector<16x128xf32>
    %469 = arith.mulf %468, %437 : vector<16x128xf32>
    %470 = arith.subf %467, %469 : vector<16x128xf32>
    %cst_213 = arith.constant 0.00931882485 : f32
    %471 = vector.broadcast %cst_213 : f32 to vector<16x128xf32>
    %472 = arith.mulf %471, %430 : vector<16x128xf32>
    %473 = arith.mulf %472, %470 : vector<16x128xf32>
    %c33 = arith.constant 33 : index
    %c0_214 = arith.constant 0 : index
    %c0_215 = arith.constant 0 : index
    %474 = vector.load %arg2[%c33, %c0_214, %c0_215] : memref<100x16x128xf32, #tpu.memory_space<vmem>>, vector<1x16x128xf32>
    %475 = vector.shape_cast %474 : vector<1x16x128xf32> to vector<16x128xf32>
    %476 = vector.shape_cast %473 : vector<16x128xf32> to vector<1x16x128xf32>
    tpu.vector_store %arg2[%c33, %c0_214, %c0_215], %476 {strides = array<i32>} : memref<100x16x128xf32, #tpu.memory_space<vmem>>, vector<1x16x128xf32>,
    %cst_216 = arith.constant 0.00931882485 : f32
    %477 = vector.broadcast %cst_216 : f32 to vector<16x128xf32>
    %478 = arith.mulf %477, %434 : vector<16x128xf32>
    %479 = arith.mulf %478, %470 : vector<16x128xf32>
    %c27 = arith.constant 27 : index
    %c0_217 = arith.constant 0 : index
    %c0_218 = arith.constant 0 : index
    %480 = vector.load %arg2[%c27, %c0_217, %c0_218] : memref<100x16x128xf32, #tpu.memory_space<vmem>>, vector<1x16x128xf32>
    %481 = vector.shape_cast %480 : vector<1x16x128xf32> to vector<16x128xf32>
    %482 = vector.shape_cast %479 : vector<16x128xf32> to vector<1x16x128xf32>
    tpu.vector_store %arg2[%c27, %c0_217, %c0_218], %482 {strides = array<i32>} : memref<100x16x128xf32, #tpu.memory_space<vmem>>, vector<1x16x128xf32>,
    %cst_219 = arith.constant 3.66666675 : f32
    %483 = vector.broadcast %cst_219 : f32 to vector<16x128xf32>
    %484 = arith.mulf %483, %12 : vector<16x128xf32>
    %485 = arith.mulf %484, %470 : vector<16x128xf32>
    %cst_220 = arith.constant 2.66666675 : f32
    %486 = vector.broadcast %cst_220 : f32 to vector<16x128xf32>
    %487 = arith.mulf %486, %452 : vector<16x128xf32>
    %488 = arith.subf %485, %487 : vector<16x128xf32>
    %cst_221 = arith.constant 0.0058489223 : f32
    %489 = vector.broadcast %cst_221 : f32 to vector<16x128xf32>
    %490 = arith.mulf %489, %430 : vector<16x128xf32>
    %491 = arith.mulf %490, %488 : vector<16x128xf32>
    %c45 = arith.constant 45 : index
    %c0_222 = arith.constant 0 : index
    %c0_223 = arith.constant 0 : index
    %492 = vector.load %arg2[%c45, %c0_222, %c0_223] : memref<100x16x128xf32, #tpu.memory_space<vmem>>, vector<1x16x128xf32>
    %493 = vector.shape_cast %492 : vector<1x16x128xf32> to vector<16x128xf32>
    %494 = vector.shape_cast %491 : vector<16x128xf32> to vector<1x16x128xf32>
    tpu.vector_store %arg2[%c45, %c0_222, %c0_223], %494 {strides = array<i32>} : memref<100x16x128xf32, #tpu.memory_space<vmem>>, vector<1x16x128xf32>,
    %cst_224 = arith.constant 0.0058489223 : f32
    %495 = vector.broadcast %cst_224 : f32 to vector<16x128xf32>
    %496 = arith.mulf %495, %434 : vector<16x128xf32>
    %497 = arith.mulf %496, %488 : vector<16x128xf32>
    %c39 = arith.constant 39 : index
    %c0_225 = arith.constant 0 : index
    %c0_226 = arith.constant 0 : index
    %498 = vector.load %arg2[%c39, %c0_225, %c0_226] : memref<100x16x128xf32, #tpu.memory_space<vmem>>, vector<1x16x128xf32>
    %499 = vector.shape_cast %498 : vector<1x16x128xf32> to vector<16x128xf32>
    %500 = vector.shape_cast %497 : vector<16x128xf32> to vector<1x16x128xf32>
    tpu.vector_store %arg2[%c39, %c0_225, %c0_226], %500 {strides = array<i32>} : memref<100x16x128xf32, #tpu.memory_space<vmem>>, vector<1x16x128xf32>,
    %cst_227 = arith.constant 3.250000e+00 : f32
    %501 = vector.broadcast %cst_227 : f32 to vector<16x128xf32>
    %502 = arith.mulf %501, %12 : vector<16x128xf32>
    %503 = arith.mulf %502, %488 : vector<16x128xf32>
    %cst_228 = arith.constant 2.250000e+00 : f32
    %504 = vector.broadcast %cst_228 : f32 to vector<16x128xf32>
    %505 = arith.mulf %504, %470 : vector<16x128xf32>
    %506 = arith.subf %503, %505 : vector<16x128xf32>
    %cst_229 = arith.constant 0.00397356041 : f32
    %507 = vector.broadcast %cst_229 : f32 to vector<16x128xf32>
    %508 = arith.mulf %507, %430 : vector<16x128xf32>
    %509 = arith.mulf %508, %506 : vector<16x128xf32>
    %c59 = arith.constant 59 : index
    %c0_230 = arith.constant 0 : index
    %c0_231 = arith.constant 0 : index
    %510 = vector.load %arg2[%c59, %c0_230, %c0_231] : memref<100x16x128xf32, #tpu.memory_space<vmem>>, vector<1x16x128xf32>
    %511 = vector.shape_cast %510 : vector<1x16x128xf32> to vector<16x128xf32>
    %512 = vector.shape_cast %509 : vector<16x128xf32> to vector<1x16x128xf32>
    tpu.vector_store %arg2[%c59, %c0_230, %c0_231], %512 {strides = array<i32>} : memref<100x16x128xf32, #tpu.memory_space<vmem>>, vector<1x16x128xf32>,
    %cst_232 = arith.constant 0.00397356041 : f32
    %513 = vector.broadcast %cst_232 : f32 to vector<16x128xf32>
    %514 = arith.mulf %513, %434 : vector<16x128xf32>
    %515 = arith.mulf %514, %506 : vector<16x128xf32>
    %c53 = arith.constant 53 : index
    %c0_233 = arith.constant 0 : index
    %c0_234 = arith.constant 0 : index
    %516 = vector.load %arg2[%c53, %c0_233, %c0_234] : memref<100x16x128xf32, #tpu.memory_space<vmem>>, vector<1x16x128xf32>
    %517 = vector.shape_cast %516 : vector<1x16x128xf32> to vector<16x128xf32>
    %518 = vector.shape_cast %515 : vector<16x128xf32> to vector<1x16x128xf32>
    tpu.vector_store %arg2[%c53, %c0_233, %c0_234], %518 {strides = array<i32>} : memref<100x16x128xf32, #tpu.memory_space<vmem>>, vector<1x16x128xf32>,
    %cst_235 = arith.constant 3.000000e+00 : f32
    %519 = vector.broadcast %cst_235 : f32 to vector<16x128xf32>
    %520 = arith.mulf %519, %12 : vector<16x128xf32>
    %521 = arith.mulf %520, %506 : vector<16x128xf32>
    %cst_236 = arith.constant 2.000000e+00 : f32
    %522 = vector.broadcast %cst_236 : f32 to vector<16x128xf32>
    %523 = arith.mulf %522, %488 : vector<16x128xf32>
    %524 = arith.subf %521, %523 : vector<16x128xf32>
    %cst_237 = arith.constant 0.00285198539 : f32
    %525 = vector.broadcast %cst_237 : f32 to vector<16x128xf32>
    %526 = arith.mulf %525, %430 : vector<16x128xf32>
    %527 = arith.mulf %526, %524 : vector<16x128xf32>
    %c75 = arith.constant 75 : index
    %c0_238 = arith.constant 0 : index
    %c0_239 = arith.constant 0 : index
    %528 = vector.load %arg2[%c75, %c0_238, %c0_239] : memref<100x16x128xf32, #tpu.memory_space<vmem>>, vector<1x16x128xf32>
    %529 = vector.shape_cast %528 : vector<1x16x128xf32> to vector<16x128xf32>
    %530 = vector.shape_cast %527 : vector<16x128xf32> to vector<1x16x128xf32>
    tpu.vector_store %arg2[%c75, %c0_238, %c0_239], %530 {strides = array<i32>} : memref<100x16x128xf32, #tpu.memory_space<vmem>>, vector<1x16x128xf32>,
    %cst_240 = arith.constant 0.00285198539 : f32
    %531 = vector.broadcast %cst_240 : f32 to vector<16x128xf32>
    %532 = arith.mulf %531, %434 : vector<16x128xf32>
    %533 = arith.mulf %532, %524 : vector<16x128xf32>
    %c69 = arith.constant 69 : index
    %c0_241 = arith.constant 0 : index
    %c0_242 = arith.constant 0 : index
    %534 = vector.load %arg2[%c69, %c0_241, %c0_242] : memref<100x16x128xf32, #tpu.memory_space<vmem>>, vector<1x16x128xf32>
    %535 = vector.shape_cast %534 : vector<1x16x128xf32> to vector<16x128xf32>
    %536 = vector.shape_cast %533 : vector<16x128xf32> to vector<1x16x128xf32>
    tpu.vector_store %arg2[%c69, %c0_241, %c0_242], %536 {strides = array<i32>} : memref<100x16x128xf32, #tpu.memory_space<vmem>>, vector<1x16x128xf32>,
    %cst_243 = arith.constant 2.83333325 : f32
    %537 = vector.broadcast %cst_243 : f32 to vector<16x128xf32>
    %538 = arith.mulf %537, %12 : vector<16x128xf32>
    %539 = arith.mulf %538, %524 : vector<16x128xf32>
    %cst_244 = arith.constant 1.83333337 : f32
    %540 = vector.broadcast %cst_244 : f32 to vector<16x128xf32>
    %541 = arith.mulf %540, %506 : vector<16x128xf32>
    %542 = arith.subf %539, %541 : vector<16x128xf32>
    %cst_245 = arith.constant 0.00213198736 : f32
    %543 = vector.broadcast %cst_245 : f32 to vector<16x128xf32>
    %544 = arith.mulf %543, %430 : vector<16x128xf32>
    %545 = arith.mulf %544, %542 : vector<16x128xf32>
    %c93 = arith.constant 93 : index
    %c0_246 = arith.constant 0 : index
    %c0_247 = arith.constant 0 : index
    %546 = vector.load %arg2[%c93, %c0_246, %c0_247] : memref<100x16x128xf32, #tpu.memory_space<vmem>>, vector<1x16x128xf32>
    %547 = vector.shape_cast %546 : vector<1x16x128xf32> to vector<16x128xf32>
    %548 = vector.shape_cast %545 : vector<16x128xf32> to vector<1x16x128xf32>
    tpu.vector_store %arg2[%c93, %c0_246, %c0_247], %548 {strides = array<i32>} : memref<100x16x128xf32, #tpu.memory_space<vmem>>, vector<1x16x128xf32>,
    %cst_248 = arith.constant 0.00213198736 : f32
    %549 = vector.broadcast %cst_248 : f32 to vector<16x128xf32>
    %550 = arith.mulf %549, %434 : vector<16x128xf32>
    %551 = arith.mulf %550, %542 : vector<16x128xf32>
    %c87 = arith.constant 87 : index
    %c0_249 = arith.constant 0 : index
    %c0_250 = arith.constant 0 : index
    %552 = vector.load %arg2[%c87, %c0_249, %c0_250] : memref<100x16x128xf32, #tpu.memory_space<vmem>>, vector<1x16x128xf32>
    %553 = vector.shape_cast %552 : vector<1x16x128xf32> to vector<16x128xf32>
    %554 = vector.shape_cast %551 : vector<16x128xf32> to vector<1x16x128xf32>
    tpu.vector_store %arg2[%c87, %c0_249, %c0_250], %554 {strides = array<i32>} : memref<100x16x128xf32, #tpu.memory_space<vmem>>, vector<1x16x128xf32>,
    %cst_251 = arith.constant 2.000000e+00 : f32
    %555 = vector.broadcast %cst_251 : f32 to vector<16x128xf32>
    %556 = arith.mulf %555, %19 : vector<16x128xf32>
    %557 = arith.mulf %556, %430 : vector<16x128xf32>
    %558 = arith.subf %557, %284 : vector<16x128xf32>
    %cst_252 = arith.constant 2.000000e+00 : f32
    %559 = vector.broadcast %cst_252 : f32 to vector<16x128xf32>
    %560 = arith.mulf %559, %19 : vector<16x128xf32>
    %561 = arith.mulf %560, %434 : vector<16x128xf32>
    %562 = arith.subf %561, %288 : vector<16x128xf32>
    %cst_253 = arith.constant -7.000000e+00 : f32
    %563 = vector.broadcast %cst_253 : f32 to vector<16x128xf32>
    %564 = arith.mulf %437, %563 : vector<16x128xf32>
    %565 = arith.mulf %564, %18 : vector<16x128xf32>
    %cst_254 = arith.constant 5.960340e-03 : f32
    %566 = vector.broadcast %cst_254 : f32 to vector<16x128xf32>
    %567 = arith.mulf %566, %558 : vector<16x128xf32>
    %568 = arith.mulf %567, %565 : vector<16x128xf32>
    %c24 = arith.constant 24 : index
    %c0_255 = arith.constant 0 : index
    %c0_256 = arith.constant 0 : index
    %569 = vector.load %arg2[%c24, %c0_255, %c0_256] : memref<100x16x128xf32, #tpu.memory_space<vmem>>, vector<1x16x128xf32>
    %570 = vector.shape_cast %569 : vector<1x16x128xf32> to vector<16x128xf32>
    %571 = vector.shape_cast %568 : vector<16x128xf32> to vector<1x16x128xf32>
    tpu.vector_store %arg2[%c24, %c0_255, %c0_256], %571 {strides = array<i32>} : memref<100x16x128xf32, #tpu.memory_space<vmem>>, vector<1x16x128xf32>,
    %cst_257 = arith.constant 5.960340e-03 : f32
    %572 = vector.broadcast %cst_257 : f32 to vector<16x128xf32>
    %573 = arith.mulf %572, %562 : vector<16x128xf32>
    %574 = arith.mulf %573, %565 : vector<16x128xf32>
    %c16 = arith.constant 16 : index
    %c0_258 = arith.constant 0 : index
    %c0_259 = arith.constant 0 : index
    %575 = vector.load %arg2[%c16, %c0_258, %c0_259] : memref<100x16x128xf32, #tpu.memory_space<vmem>>, vector<1x16x128xf32>
    %576 = vector.shape_cast %575 : vector<1x16x128xf32> to vector<16x128xf32>
    %577 = vector.shape_cast %574 : vector<16x128xf32> to vector<1x16x128xf32>
    tpu.vector_store %arg2[%c16, %c0_258, %c0_259], %577 {strides = array<i32>} : memref<100x16x128xf32, #tpu.memory_space<vmem>>, vector<1x16x128xf32>,
    %cst_260 = arith.constant 9.000000e+00 : f32
    %578 = vector.broadcast %cst_260 : f32 to vector<16x128xf32>
    %579 = arith.mulf %578, %12 : vector<16x128xf32>
    %580 = arith.mulf %579, %565 : vector<16x128xf32>
    %cst_261 = arith.constant 0.00219646795 : f32
    %581 = vector.broadcast %cst_261 : f32 to vector<16x128xf32>
    %582 = arith.mulf %581, %558 : vector<16x128xf32>
    %583 = arith.mulf %582, %580 : vector<16x128xf32>
    %c34 = arith.constant 34 : index
    %c0_262 = arith.constant 0 : index
    %c0_263 = arith.constant 0 : index
    %584 = vector.load %arg2[%c34, %c0_262, %c0_263] : memref<100x16x128xf32, #tpu.memory_space<vmem>>, vector<1x16x128xf32>
    %585 = vector.shape_cast %584 : vector<1x16x128xf32> to vector<16x128xf32>
    %586 = vector.shape_cast %583 : vector<16x128xf32> to vector<1x16x128xf32>
    tpu.vector_store %arg2[%c34, %c0_262, %c0_263], %586 {strides = array<i32>} : memref<100x16x128xf32, #tpu.memory_space<vmem>>, vector<1x16x128xf32>,
    %cst_264 = arith.constant 0.00219646795 : f32
    %587 = vector.broadcast %cst_264 : f32 to vector<16x128xf32>
    %588 = arith.mulf %587, %562 : vector<16x128xf32>
    %589 = arith.mulf %588, %580 : vector<16x128xf32>
    %c26 = arith.constant 26 : index
    %c0_265 = arith.constant 0 : index
    %c0_266 = arith.constant 0 : index
    %590 = vector.load %arg2[%c26, %c0_265, %c0_266] : memref<100x16x128xf32, #tpu.memory_space<vmem>>, vector<1x16x128xf32>
    %591 = vector.shape_cast %590 : vector<1x16x128xf32> to vector<16x128xf32>
    %592 = vector.shape_cast %589 : vector<16x128xf32> to vector<1x16x128xf32>
    tpu.vector_store %arg2[%c26, %c0_265, %c0_266], %592 {strides = array<i32>} : memref<100x16x128xf32, #tpu.memory_space<vmem>>, vector<1x16x128xf32>,
    %cst_267 = arith.constant 5.500000e+00 : f32
    %593 = vector.broadcast %cst_267 : f32 to vector<16x128xf32>
    %594 = arith.mulf %593, %12 : vector<16x128xf32>
    %595 = arith.mulf %594, %580 : vector<16x128xf32>
    %cst_268 = arith.constant 4.500000e+00 : f32
    %596 = vector.broadcast %cst_268 : f32 to vector<16x128xf32>
    %597 = arith.mulf %596, %565 : vector<16x128xf32>
    %598 = arith.subf %595, %597 : vector<16x128xf32>
    %cst_269 = arith.constant 0.00106786226 : f32
    %599 = vector.broadcast %cst_269 : f32 to vector<16x128xf32>
    %600 = arith.mulf %599, %558 : vector<16x128xf32>
    %601 = arith.mulf %600, %598 : vector<16x128xf32>
    %c46 = arith.constant 46 : index
    %c0_270 = arith.constant 0 : index
    %c0_271 = arith.constant 0 : index
    %602 = vector.load %arg2[%c46, %c0_270, %c0_271] : memref<100x16x128xf32, #tpu.memory_space<vmem>>, vector<1x16x128xf32>
    %603 = vector.shape_cast %602 : vector<1x16x128xf32> to vector<16x128xf32>
    %604 = vector.shape_cast %601 : vector<16x128xf32> to vector<1x16x128xf32>
    tpu.vector_store %arg2[%c46, %c0_270, %c0_271], %604 {strides = array<i32>} : memref<100x16x128xf32, #tpu.memory_space<vmem>>, vector<1x16x128xf32>,
    %cst_272 = arith.constant 0.00106786226 : f32
    %605 = vector.broadcast %cst_272 : f32 to vector<16x128xf32>
    %606 = arith.mulf %605, %562 : vector<16x128xf32>
    %607 = arith.mulf %606, %598 : vector<16x128xf32>
    %c38 = arith.constant 38 : index
    %c0_273 = arith.constant 0 : index
    %c0_274 = arith.constant 0 : index
    %608 = vector.load %arg2[%c38, %c0_273, %c0_274] : memref<100x16x128xf32, #tpu.memory_space<vmem>>, vector<1x16x128xf32>
    %609 = vector.shape_cast %608 : vector<1x16x128xf32> to vector<16x128xf32>
    %610 = vector.shape_cast %607 : vector<16x128xf32> to vector<1x16x128xf32>
    tpu.vector_store %arg2[%c38, %c0_273, %c0_274], %610 {strides = array<i32>} : memref<100x16x128xf32, #tpu.memory_space<vmem>>, vector<1x16x128xf32>,
    %cst_275 = arith.constant 4.33333349 : f32
    %611 = vector.broadcast %cst_275 : f32 to vector<16x128xf32>
    %612 = arith.mulf %611, %12 : vector<16x128xf32>
    %613 = arith.mulf %612, %598 : vector<16x128xf32>
    %cst_276 = arith.constant 3.33333325 : f32
    %614 = vector.broadcast %cst_276 : f32 to vector<16x128xf32>
    %615 = arith.mulf %614, %580 : vector<16x128xf32>
    %616 = arith.subf %613, %615 : vector<16x128xf32>
    %cst_277 = arith.constant 5.9903675E-4 : f32
    %617 = vector.broadcast %cst_277 : f32 to vector<16x128xf32>
    %618 = arith.mulf %617, %558 : vector<16x128xf32>
    %619 = arith.mulf %618, %616 : vector<16x128xf32>
    %c60 = arith.constant 60 : index
    %c0_278 = arith.constant 0 : index
    %c0_279 = arith.constant 0 : index
    %620 = vector.load %arg2[%c60, %c0_278, %c0_279] : memref<100x16x128xf32, #tpu.memory_space<vmem>>, vector<1x16x128xf32>
    %621 = vector.shape_cast %620 : vector<1x16x128xf32> to vector<16x128xf32>
    %622 = vector.shape_cast %619 : vector<16x128xf32> to vector<1x16x128xf32>
    tpu.vector_store %arg2[%c60, %c0_278, %c0_279], %622 {strides = array<i32>} : memref<100x16x128xf32, #tpu.memory_space<vmem>>, vector<1x16x128xf32>,
    %cst_280 = arith.constant 5.9903675E-4 : f32
    %623 = vector.broadcast %cst_280 : f32 to vector<16x128xf32>
    %624 = arith.mulf %623, %562 : vector<16x128xf32>
    %625 = arith.mulf %624, %616 : vector<16x128xf32>
    %c52 = arith.constant 52 : index
    %c0_281 = arith.constant 0 : index
    %c0_282 = arith.constant 0 : index
    %626 = vector.load %arg2[%c52, %c0_281, %c0_282] : memref<100x16x128xf32, #tpu.memory_space<vmem>>, vector<1x16x128xf32>
    %627 = vector.shape_cast %626 : vector<1x16x128xf32> to vector<16x128xf32>
    %628 = vector.shape_cast %625 : vector<16x128xf32> to vector<1x16x128xf32>
    tpu.vector_store %arg2[%c52, %c0_281, %c0_282], %628 {strides = array<i32>} : memref<100x16x128xf32, #tpu.memory_space<vmem>>, vector<1x16x128xf32>,
    %cst_283 = arith.constant 3.750000e+00 : f32
    %629 = vector.broadcast %cst_283 : f32 to vector<16x128xf32>
    %630 = arith.mulf %629, %12 : vector<16x128xf32>
    %631 = arith.mulf %630, %616 : vector<16x128xf32>
    %cst_284 = arith.constant 2.750000e+00 : f32
    %632 = vector.broadcast %cst_284 : f32 to vector<16x128xf32>
    %633 = arith.mulf %632, %598 : vector<16x128xf32>
    %634 = arith.subf %631, %633 : vector<16x128xf32>
    %cst_285 = arith.constant 3.68189736E-4 : f32
    %635 = vector.broadcast %cst_285 : f32 to vector<16x128xf32>
    %636 = arith.mulf %635, %558 : vector<16x128xf32>
    %637 = arith.mulf %636, %634 : vector<16x128xf32>
    %c76 = arith.constant 76 : index
    %c0_286 = arith.constant 0 : index
    %c0_287 = arith.constant 0 : index
    %638 = vector.load %arg2[%c76, %c0_286, %c0_287] : memref<100x16x128xf32, #tpu.memory_space<vmem>>, vector<1x16x128xf32>
    %639 = vector.shape_cast %638 : vector<1x16x128xf32> to vector<16x128xf32>
    %640 = vector.shape_cast %637 : vector<16x128xf32> to vector<1x16x128xf32>
    tpu.vector_store %arg2[%c76, %c0_286, %c0_287], %640 {strides = array<i32>} : memref<100x16x128xf32, #tpu.memory_space<vmem>>, vector<1x16x128xf32>,
    %cst_288 = arith.constant 3.68189736E-4 : f32
    %641 = vector.broadcast %cst_288 : f32 to vector<16x128xf32>
    %642 = arith.mulf %641, %562 : vector<16x128xf32>
    %643 = arith.mulf %642, %634 : vector<16x128xf32>
    %c68 = arith.constant 68 : index
    %c0_289 = arith.constant 0 : index
    %c0_290 = arith.constant 0 : index
    %644 = vector.load %arg2[%c68, %c0_289, %c0_290] : memref<100x16x128xf32, #tpu.memory_space<vmem>>, vector<1x16x128xf32>
    %645 = vector.shape_cast %644 : vector<1x16x128xf32> to vector<16x128xf32>
    %646 = vector.shape_cast %643 : vector<16x128xf32> to vector<1x16x128xf32>
    tpu.vector_store %arg2[%c68, %c0_289, %c0_290], %646 {strides = array<i32>} : memref<100x16x128xf32, #tpu.memory_space<vmem>>, vector<1x16x128xf32>,
    %cst_291 = arith.constant 3.400000e+00 : f32
    %647 = vector.broadcast %cst_291 : f32 to vector<16x128xf32>
    %648 = arith.mulf %647, %12 : vector<16x128xf32>
    %649 = arith.mulf %648, %634 : vector<16x128xf32>
    %cst_292 = arith.constant 2.400000e+00 : f32
    %650 = vector.broadcast %cst_292 : f32 to vector<16x128xf32>
    %651 = arith.mulf %650, %616 : vector<16x128xf32>
    %652 = arith.subf %649, %651 : vector<16x128xf32>
    %cst_293 = arith.constant 2.41400034E-4 : f32
    %653 = vector.broadcast %cst_293 : f32 to vector<16x128xf32>
    %654 = arith.mulf %653, %558 : vector<16x128xf32>
    %655 = arith.mulf %654, %652 : vector<16x128xf32>
    %c94 = arith.constant 94 : index
    %c0_294 = arith.constant 0 : index
    %c0_295 = arith.constant 0 : index
    %656 = vector.load %arg2[%c94, %c0_294, %c0_295] : memref<100x16x128xf32, #tpu.memory_space<vmem>>, vector<1x16x128xf32>
    %657 = vector.shape_cast %656 : vector<1x16x128xf32> to vector<16x128xf32>
    %658 = vector.shape_cast %655 : vector<16x128xf32> to vector<1x16x128xf32>
    tpu.vector_store %arg2[%c94, %c0_294, %c0_295], %658 {strides = array<i32>} : memref<100x16x128xf32, #tpu.memory_space<vmem>>, vector<1x16x128xf32>,
    %cst_296 = arith.constant 2.41400034E-4 : f32
    %659 = vector.broadcast %cst_296 : f32 to vector<16x128xf32>
    %660 = arith.mulf %659, %562 : vector<16x128xf32>
    %661 = arith.mulf %660, %652 : vector<16x128xf32>
    %c86 = arith.constant 86 : index
    %c0_297 = arith.constant 0 : index
    %c0_298 = arith.constant 0 : index
    %662 = vector.load %arg2[%c86, %c0_297, %c0_298] : memref<100x16x128xf32, #tpu.memory_space<vmem>>, vector<1x16x128xf32>
    %663 = vector.shape_cast %662 : vector<1x16x128xf32> to vector<16x128xf32>
    %664 = vector.shape_cast %661 : vector<16x128xf32> to vector<1x16x128xf32>
    tpu.vector_store %arg2[%c86, %c0_297, %c0_298], %664 {strides = array<i32>} : memref<100x16x128xf32, #tpu.memory_space<vmem>>, vector<1x16x128xf32>,
    %cst_299 = arith.constant 2.000000e+00 : f32
    %665 = vector.broadcast %cst_299 : f32 to vector<16x128xf32>
    %666 = arith.mulf %665, %19 : vector<16x128xf32>
    %667 = arith.mulf %666, %558 : vector<16x128xf32>
    %668 = arith.subf %667, %430 : vector<16x128xf32>
    %cst_300 = arith.constant 2.000000e+00 : f32
    %669 = vector.broadcast %cst_300 : f32 to vector<16x128xf32>
    %670 = arith.mulf %669, %19 : vector<16x128xf32>
    %671 = arith.mulf %670, %562 : vector<16x128xf32>
    %672 = arith.subf %671, %434 : vector<16x128xf32>
    %cst_301 = arith.constant -9.000000e+00 : f32
    %673 = vector.broadcast %cst_301 : f32 to vector<16x128xf32>
    %674 = arith.mulf %565, %673 : vector<16x128xf32>
    %675 = arith.mulf %674, %18 : vector<16x128xf32>
    %cst_302 = arith.constant 6.9458416E-4 : f32
    %676 = vector.broadcast %cst_302 : f32 to vector<16x128xf32>
    %677 = arith.mulf %676, %668 : vector<16x128xf32>
    %678 = arith.mulf %677, %675 : vector<16x128xf32>
    %c35 = arith.constant 35 : index
    %c0_303 = arith.constant 0 : index
    %c0_304 = arith.constant 0 : index
    %679 = vector.load %arg2[%c35, %c0_303, %c0_304] : memref<100x16x128xf32, #tpu.memory_space<vmem>>, vector<1x16x128xf32>
    %680 = vector.shape_cast %679 : vector<1x16x128xf32> to vector<16x128xf32>
    %681 = vector.shape_cast %678 : vector<16x128xf32> to vector<1x16x128xf32>
    tpu.vector_store %arg2[%c35, %c0_303, %c0_304], %681 {strides = array<i32>} : memref<100x16x128xf32, #tpu.memory_space<vmem>>, vector<1x16x128xf32>,
    %cst_305 = arith.constant 6.9458416E-4 : f32
    %682 = vector.broadcast %cst_305 : f32 to vector<16x128xf32>
    %683 = arith.mulf %682, %672 : vector<16x128xf32>
    %684 = arith.mulf %683, %675 : vector<16x128xf32>
    %c25 = arith.constant 25 : index
    %c0_306 = arith.constant 0 : index
    %c0_307 = arith.constant 0 : index
    %685 = vector.load %arg2[%c25, %c0_306, %c0_307] : memref<100x16x128xf32, #tpu.memory_space<vmem>>, vector<1x16x128xf32>
    %686 = vector.shape_cast %685 : vector<1x16x128xf32> to vector<16x128xf32>
    %687 = vector.shape_cast %684 : vector<16x128xf32> to vector<1x16x128xf32>
    tpu.vector_store %arg2[%c25, %c0_306, %c0_307], %687 {strides = array<i32>} : memref<100x16x128xf32, #tpu.memory_space<vmem>>, vector<1x16x128xf32>,
    %cst_308 = arith.constant 1.100000e+01 : f32
    %688 = vector.broadcast %cst_308 : f32 to vector<16x128xf32>
    %689 = arith.mulf %688, %12 : vector<16x128xf32>
    %690 = arith.mulf %689, %675 : vector<16x128xf32>
    %cst_309 = arith.constant 2.27668992E-4 : f32
    %691 = vector.broadcast %cst_309 : f32 to vector<16x128xf32>
    %692 = arith.mulf %691, %668 : vector<16x128xf32>
    %693 = arith.mulf %692, %690 : vector<16x128xf32>
    %c47 = arith.constant 47 : index
    %c0_310 = arith.constant 0 : index
    %c0_311 = arith.constant 0 : index
    %694 = vector.load %arg2[%c47, %c0_310, %c0_311] : memref<100x16x128xf32, #tpu.memory_space<vmem>>, vector<1x16x128xf32>
    %695 = vector.shape_cast %694 : vector<1x16x128xf32> to vector<16x128xf32>
    %696 = vector.shape_cast %693 : vector<16x128xf32> to vector<1x16x128xf32>
    tpu.vector_store %arg2[%c47, %c0_310, %c0_311], %696 {strides = array<i32>} : memref<100x16x128xf32, #tpu.memory_space<vmem>>, vector<1x16x128xf32>,
    %cst_312 = arith.constant 2.27668992E-4 : f32
    %697 = vector.broadcast %cst_312 : f32 to vector<16x128xf32>
    %698 = arith.mulf %697, %672 : vector<16x128xf32>
    %699 = arith.mulf %698, %690 : vector<16x128xf32>
    %c37 = arith.constant 37 : index
    %c0_313 = arith.constant 0 : index
    %c0_314 = arith.constant 0 : index
    %700 = vector.load %arg2[%c37, %c0_313, %c0_314] : memref<100x16x128xf32, #tpu.memory_space<vmem>>, vector<1x16x128xf32>
    %701 = vector.shape_cast %700 : vector<1x16x128xf32> to vector<16x128xf32>
    %702 = vector.shape_cast %699 : vector<16x128xf32> to vector<1x16x128xf32>
    tpu.vector_store %arg2[%c37, %c0_313, %c0_314], %702 {strides = array<i32>} : memref<100x16x128xf32, #tpu.memory_space<vmem>>, vector<1x16x128xf32>,
    %cst_315 = arith.constant 6.500000e+00 : f32
    %703 = vector.broadcast %cst_315 : f32 to vector<16x128xf32>
    %704 = arith.mulf %703, %12 : vector<16x128xf32>
    %705 = arith.mulf %704, %690 : vector<16x128xf32>
    %cst_316 = arith.constant 5.500000e+00 : f32
    %706 = vector.broadcast %cst_316 : f32 to vector<16x128xf32>
    %707 = arith.mulf %706, %675 : vector<16x128xf32>
    %708 = arith.subf %705, %707 : vector<16x128xf32>
    %cst_317 = arith.constant 9.98394607E-5 : f32
    %709 = vector.broadcast %cst_317 : f32 to vector<16x128xf32>
    %710 = arith.mulf %709, %668 : vector<16x128xf32>
    %711 = arith.mulf %710, %708 : vector<16x128xf32>
    %c61 = arith.constant 61 : index
    %c0_318 = arith.constant 0 : index
    %c0_319 = arith.constant 0 : index
    %712 = vector.load %arg2[%c61, %c0_318, %c0_319] : memref<100x16x128xf32, #tpu.memory_space<vmem>>, vector<1x16x128xf32>
    %713 = vector.shape_cast %712 : vector<1x16x128xf32> to vector<16x128xf32>
    %714 = vector.shape_cast %711 : vector<16x128xf32> to vector<1x16x128xf32>
    tpu.vector_store %arg2[%c61, %c0_318, %c0_319], %714 {strides = array<i32>} : memref<100x16x128xf32, #tpu.memory_space<vmem>>, vector<1x16x128xf32>,
    %cst_320 = arith.constant 9.98394607E-5 : f32
    %715 = vector.broadcast %cst_320 : f32 to vector<16x128xf32>
    %716 = arith.mulf %715, %672 : vector<16x128xf32>
    %717 = arith.mulf %716, %708 : vector<16x128xf32>
    %c51 = arith.constant 51 : index
    %c0_321 = arith.constant 0 : index
    %c0_322 = arith.constant 0 : index
    %718 = vector.load %arg2[%c51, %c0_321, %c0_322] : memref<100x16x128xf32, #tpu.memory_space<vmem>>, vector<1x16x128xf32>
    %719 = vector.shape_cast %718 : vector<1x16x128xf32> to vector<16x128xf32>
    %720 = vector.shape_cast %717 : vector<16x128xf32> to vector<1x16x128xf32>
    tpu.vector_store %arg2[%c51, %c0_321, %c0_322], %720 {strides = array<i32>} : memref<100x16x128xf32, #tpu.memory_space<vmem>>, vector<1x16x128xf32>,
    %cst_323 = arith.constant 5.000000e+00 : f32
    %721 = vector.broadcast %cst_323 : f32 to vector<16x128xf32>
    %722 = arith.mulf %721, %12 : vector<16x128xf32>
    %723 = arith.mulf %722, %708 : vector<16x128xf32>
    %cst_324 = arith.constant 4.000000e+00 : f32
    %724 = vector.broadcast %cst_324 : f32 to vector<16x128xf32>
    %725 = arith.mulf %724, %690 : vector<16x128xf32>
    %726 = arith.subf %723, %725 : vector<16x128xf32>
    %cst_325 = arith.constant 5.1058727E-5 : f32
    %727 = vector.broadcast %cst_325 : f32 to vector<16x128xf32>
    %728 = arith.mulf %727, %668 : vector<16x128xf32>
    %729 = arith.mulf %728, %726 : vector<16x128xf32>
    %c77 = arith.constant 77 : index
    %c0_326 = arith.constant 0 : index
    %c0_327 = arith.constant 0 : index
    %730 = vector.load %arg2[%c77, %c0_326, %c0_327] : memref<100x16x128xf32, #tpu.memory_space<vmem>>, vector<1x16x128xf32>
    %731 = vector.shape_cast %730 : vector<1x16x128xf32> to vector<16x128xf32>
    %732 = vector.shape_cast %729 : vector<16x128xf32> to vector<1x16x128xf32>
    tpu.vector_store %arg2[%c77, %c0_326, %c0_327], %732 {strides = array<i32>} : memref<100x16x128xf32, #tpu.memory_space<vmem>>, vector<1x16x128xf32>,
    %cst_328 = arith.constant 5.1058727E-5 : f32
    %733 = vector.broadcast %cst_328 : f32 to vector<16x128xf32>
    %734 = arith.mulf %733, %672 : vector<16x128xf32>
    %735 = arith.mulf %734, %726 : vector<16x128xf32>
    %c67 = arith.constant 67 : index
    %c0_329 = arith.constant 0 : index
    %c0_330 = arith.constant 0 : index
    %736 = vector.load %arg2[%c67, %c0_329, %c0_330] : memref<100x16x128xf32, #tpu.memory_space<vmem>>, vector<1x16x128xf32>
    %737 = vector.shape_cast %736 : vector<1x16x128xf32> to vector<16x128xf32>
    %738 = vector.shape_cast %735 : vector<16x128xf32> to vector<1x16x128xf32>
    tpu.vector_store %arg2[%c67, %c0_329, %c0_330], %738 {strides = array<i32>} : memref<100x16x128xf32, #tpu.memory_space<vmem>>, vector<1x16x128xf32>,
    %cst_331 = arith.constant 4.250000e+00 : f32
    %739 = vector.broadcast %cst_331 : f32 to vector<16x128xf32>
    %740 = arith.mulf %739, %12 : vector<16x128xf32>
    %741 = arith.mulf %740, %726 : vector<16x128xf32>
    %cst_332 = arith.constant 3.250000e+00 : f32
    %742 = vector.broadcast %cst_332 : f32 to vector<16x128xf32>
    %743 = arith.mulf %742, %708 : vector<16x128xf32>
    %744 = arith.subf %741, %743 : vector<16x128xf32>
    %cst_333 = arith.constant 2.88528227E-5 : f32
    %745 = vector.broadcast %cst_333 : f32 to vector<16x128xf32>
    %746 = arith.mulf %745, %668 : vector<16x128xf32>
    %747 = arith.mulf %746, %744 : vector<16x128xf32>
    %c95 = arith.constant 95 : index
    %c0_334 = arith.constant 0 : index
    %c0_335 = arith.constant 0 : index
    %748 = vector.load %arg2[%c95, %c0_334, %c0_335] : memref<100x16x128xf32, #tpu.memory_space<vmem>>, vector<1x16x128xf32>
    %749 = vector.shape_cast %748 : vector<1x16x128xf32> to vector<16x128xf32>
    %750 = vector.shape_cast %747 : vector<16x128xf32> to vector<1x16x128xf32>
    tpu.vector_store %arg2[%c95, %c0_334, %c0_335], %750 {strides = array<i32>} : memref<100x16x128xf32, #tpu.memory_space<vmem>>, vector<1x16x128xf32>,
    %cst_336 = arith.constant 2.88528227E-5 : f32
    %751 = vector.broadcast %cst_336 : f32 to vector<16x128xf32>
    %752 = arith.mulf %751, %672 : vector<16x128xf32>
    %753 = arith.mulf %752, %744 : vector<16x128xf32>
    %c85 = arith.constant 85 : index
    %c0_337 = arith.constant 0 : index
    %c0_338 = arith.constant 0 : index
    %754 = vector.load %arg2[%c85, %c0_337, %c0_338] : memref<100x16x128xf32, #tpu.memory_space<vmem>>, vector<1x16x128xf32>
    %755 = vector.shape_cast %754 : vector<1x16x128xf32> to vector<16x128xf32>
    %756 = vector.shape_cast %753 : vector<16x128xf32> to vector<1x16x128xf32>
    tpu.vector_store %arg2[%c85, %c0_337, %c0_338], %756 {strides = array<i32>} : memref<100x16x128xf32, #tpu.memory_space<vmem>>, vector<1x16x128xf32>,
    %cst_339 = arith.constant 2.000000e+00 : f32
    %757 = vector.broadcast %cst_339 : f32 to vector<16x128xf32>
    %758 = arith.mulf %757, %19 : vector<16x128xf32>
    %759 = arith.mulf %758, %668 : vector<16x128xf32>
    %760 = arith.subf %759, %558 : vector<16x128xf32>
    %cst_340 = arith.constant 2.000000e+00 : f32
    %761 = vector.broadcast %cst_340 : f32 to vector<16x128xf32>
    %762 = arith.mulf %761, %19 : vector<16x128xf32>
    %763 = arith.mulf %762, %672 : vector<16x128xf32>
    %764 = arith.subf %763, %562 : vector<16x128xf32>
    %cst_341 = arith.constant -1.100000e+01 : f32
    %765 = vector.broadcast %cst_341 : f32 to vector<16x128xf32>
    %766 = arith.mulf %675, %765 : vector<16x128xf32>
    %767 = arith.mulf %766, %18 : vector<16x128xf32>
    %cst_342 = arith.constant 6.5722379E-5 : f32
    %768 = vector.broadcast %cst_342 : f32 to vector<16x128xf32>
    %769 = arith.mulf %768, %760 : vector<16x128xf32>
    %770 = arith.mulf %769, %767 : vector<16x128xf32>
    %c48 = arith.constant 48 : index
    %c0_343 = arith.constant 0 : index
    %c0_344 = arith.constant 0 : index
    %771 = vector.load %arg2[%c48, %c0_343, %c0_344] : memref<100x16x128xf32, #tpu.memory_space<vmem>>, vector<1x16x128xf32>
    %772 = vector.shape_cast %771 : vector<1x16x128xf32> to vector<16x128xf32>
    %773 = vector.shape_cast %770 : vector<16x128xf32> to vector<1x16x128xf32>
    tpu.vector_store %arg2[%c48, %c0_343, %c0_344], %773 {strides = array<i32>} : memref<100x16x128xf32, #tpu.memory_space<vmem>>, vector<1x16x128xf32>,
    %cst_345 = arith.constant 6.5722379E-5 : f32
    %774 = vector.broadcast %cst_345 : f32 to vector<16x128xf32>
    %775 = arith.mulf %774, %764 : vector<16x128xf32>
    %776 = arith.mulf %775, %767 : vector<16x128xf32>
    %c36 = arith.constant 36 : index
    %c0_346 = arith.constant 0 : index
    %c0_347 = arith.constant 0 : index
    %777 = vector.load %arg2[%c36, %c0_346, %c0_347] : memref<100x16x128xf32, #tpu.memory_space<vmem>>, vector<1x16x128xf32>
    %778 = vector.shape_cast %777 : vector<1x16x128xf32> to vector<16x128xf32>
    %779 = vector.shape_cast %776 : vector<16x128xf32> to vector<1x16x128xf32>
    tpu.vector_store %arg2[%c36, %c0_346, %c0_347], %779 {strides = array<i32>} : memref<100x16x128xf32, #tpu.memory_space<vmem>>, vector<1x16x128xf32>,
    %cst_348 = arith.constant 1.300000e+01 : f32
    %780 = vector.broadcast %cst_348 : f32 to vector<16x128xf32>
    %781 = arith.mulf %780, %12 : vector<16x128xf32>
    %782 = arith.mulf %781, %767 : vector<16x128xf32>
    %cst_349 = arith.constant 1.95801276E-5 : f32
    %783 = vector.broadcast %cst_349 : f32 to vector<16x128xf32>
    %784 = arith.mulf %783, %760 : vector<16x128xf32>
    %785 = arith.mulf %784, %782 : vector<16x128xf32>
    %c62 = arith.constant 62 : index
    %c0_350 = arith.constant 0 : index
    %c0_351 = arith.constant 0 : index
    %786 = vector.load %arg2[%c62, %c0_350, %c0_351] : memref<100x16x128xf32, #tpu.memory_space<vmem>>, vector<1x16x128xf32>
    %787 = vector.shape_cast %786 : vector<1x16x128xf32> to vector<16x128xf32>
    %788 = vector.shape_cast %785 : vector<16x128xf32> to vector<1x16x128xf32>
    tpu.vector_store %arg2[%c62, %c0_350, %c0_351], %788 {strides = array<i32>} : memref<100x16x128xf32, #tpu.memory_space<vmem>>, vector<1x16x128xf32>,
    %cst_352 = arith.constant 1.95801276E-5 : f32
    %789 = vector.broadcast %cst_352 : f32 to vector<16x128xf32>
    %790 = arith.mulf %789, %764 : vector<16x128xf32>
    %791 = arith.mulf %790, %782 : vector<16x128xf32>
    %c50 = arith.constant 50 : index
    %c0_353 = arith.constant 0 : index
    %c0_354 = arith.constant 0 : index
    %792 = vector.load %arg2[%c50, %c0_353, %c0_354] : memref<100x16x128xf32, #tpu.memory_space<vmem>>, vector<1x16x128xf32>
    %793 = vector.shape_cast %792 : vector<1x16x128xf32> to vector<16x128xf32>
    %794 = vector.shape_cast %791 : vector<16x128xf32> to vector<1x16x128xf32>
    tpu.vector_store %arg2[%c50, %c0_353, %c0_354], %794 {strides = array<i32>} : memref<100x16x128xf32, #tpu.memory_space<vmem>>, vector<1x16x128xf32>,
    %cst_355 = arith.constant 7.500000e+00 : f32
    %795 = vector.broadcast %cst_355 : f32 to vector<16x128xf32>
    %796 = arith.mulf %795, %12 : vector<16x128xf32>
    %797 = arith.mulf %796, %782 : vector<16x128xf32>
    %cst_356 = arith.constant 6.500000e+00 : f32
    %798 = vector.broadcast %cst_356 : f32 to vector<16x128xf32>
    %799 = arith.mulf %798, %767 : vector<16x128xf32>
    %800 = arith.subf %797, %799 : vector<16x128xf32>
    %cst_357 = arith.constant 7.87853241E-6 : f32
    %801 = vector.broadcast %cst_357 : f32 to vector<16x128xf32>
    %802 = arith.mulf %801, %760 : vector<16x128xf32>
    %803 = arith.mulf %802, %800 : vector<16x128xf32>
    %c78 = arith.constant 78 : index
    %c0_358 = arith.constant 0 : index
    %c0_359 = arith.constant 0 : index
    %804 = vector.load %arg2[%c78, %c0_358, %c0_359] : memref<100x16x128xf32, #tpu.memory_space<vmem>>, vector<1x16x128xf32>
    %805 = vector.shape_cast %804 : vector<1x16x128xf32> to vector<16x128xf32>
    %806 = vector.shape_cast %803 : vector<16x128xf32> to vector<1x16x128xf32>
    tpu.vector_store %arg2[%c78, %c0_358, %c0_359], %806 {strides = array<i32>} : memref<100x16x128xf32, #tpu.memory_space<vmem>>, vector<1x16x128xf32>,
    %cst_360 = arith.constant 7.87853241E-6 : f32
    %807 = vector.broadcast %cst_360 : f32 to vector<16x128xf32>
    %808 = arith.mulf %807, %764 : vector<16x128xf32>
    %809 = arith.mulf %808, %800 : vector<16x128xf32>
    %c66 = arith.constant 66 : index
    %c0_361 = arith.constant 0 : index
    %c0_362 = arith.constant 0 : index
    %810 = vector.load %arg2[%c66, %c0_361, %c0_362] : memref<100x16x128xf32, #tpu.memory_space<vmem>>, vector<1x16x128xf32>
    %811 = vector.shape_cast %810 : vector<1x16x128xf32> to vector<16x128xf32>
    %812 = vector.shape_cast %809 : vector<16x128xf32> to vector<1x16x128xf32>
    tpu.vector_store %arg2[%c66, %c0_361, %c0_362], %812 {strides = array<i32>} : memref<100x16x128xf32, #tpu.memory_space<vmem>>, vector<1x16x128xf32>,
    %cst_363 = arith.constant 5.66666651 : f32
    %813 = vector.broadcast %cst_363 : f32 to vector<16x128xf32>
    %814 = arith.mulf %813, %12 : vector<16x128xf32>
    %815 = arith.mulf %814, %800 : vector<16x128xf32>
    %cst_364 = arith.constant 4.66666651 : f32
    %816 = vector.broadcast %cst_364 : f32 to vector<16x128xf32>
    %817 = arith.mulf %816, %782 : vector<16x128xf32>
    %818 = arith.subf %815, %817 : vector<16x128xf32>
    %cst_365 = arith.constant 3.72488353E-6 : f32
    %819 = vector.broadcast %cst_365 : f32 to vector<16x128xf32>
    %820 = arith.mulf %819, %760 : vector<16x128xf32>
    %821 = arith.mulf %820, %818 : vector<16x128xf32>
    %c96 = arith.constant 96 : index
    %c0_366 = arith.constant 0 : index
    %c0_367 = arith.constant 0 : index
    %822 = vector.load %arg2[%c96, %c0_366, %c0_367] : memref<100x16x128xf32, #tpu.memory_space<vmem>>, vector<1x16x128xf32>
    %823 = vector.shape_cast %822 : vector<1x16x128xf32> to vector<16x128xf32>
    %824 = vector.shape_cast %821 : vector<16x128xf32> to vector<1x16x128xf32>
    tpu.vector_store %arg2[%c96, %c0_366, %c0_367], %824 {strides = array<i32>} : memref<100x16x128xf32, #tpu.memory_space<vmem>>, vector<1x16x128xf32>,
    %cst_368 = arith.constant 3.72488353E-6 : f32
    %825 = vector.broadcast %cst_368 : f32 to vector<16x128xf32>
    %826 = arith.mulf %825, %764 : vector<16x128xf32>
    %827 = arith.mulf %826, %818 : vector<16x128xf32>
    %c84 = arith.constant 84 : index
    %c0_369 = arith.constant 0 : index
    %c0_370 = arith.constant 0 : index
    %828 = vector.load %arg2[%c84, %c0_369, %c0_370] : memref<100x16x128xf32, #tpu.memory_space<vmem>>, vector<1x16x128xf32>
    %829 = vector.shape_cast %828 : vector<1x16x128xf32> to vector<16x128xf32>
    %830 = vector.shape_cast %827 : vector<16x128xf32> to vector<1x16x128xf32>
    tpu.vector_store %arg2[%c84, %c0_369, %c0_370], %830 {strides = array<i32>} : memref<100x16x128xf32, #tpu.memory_space<vmem>>, vector<1x16x128xf32>,
    %cst_371 = arith.constant 2.000000e+00 : f32
    %831 = vector.broadcast %cst_371 : f32 to vector<16x128xf32>
    %832 = arith.mulf %831, %19 : vector<16x128xf32>
    %833 = arith.mulf %832, %760 : vector<16x128xf32>
    %834 = arith.subf %833, %668 : vector<16x128xf32>
    %cst_372 = arith.constant 2.000000e+00 : f32
    %835 = vector.broadcast %cst_372 : f32 to vector<16x128xf32>
    %836 = arith.mulf %835, %19 : vector<16x128xf32>
    %837 = arith.mulf %836, %764 : vector<16x128xf32>
    %838 = arith.subf %837, %672 : vector<16x128xf32>
    %cst_373 = arith.constant -1.300000e+01 : f32
    %839 = vector.broadcast %cst_373 : f32 to vector<16x128xf32>
    %840 = arith.mulf %767, %839 : vector<16x128xf32>
    %841 = arith.mulf %840, %18 : vector<16x128xf32>
    %cst_374 = arith.constant 5.23300923E-6 : f32
    %842 = vector.broadcast %cst_374 : f32 to vector<16x128xf32>
    %843 = arith.mulf %842, %834 : vector<16x128xf32>
    %844 = arith.mulf %843, %841 : vector<16x128xf32>
    %c63 = arith.constant 63 : index
    %c0_375 = arith.constant 0 : index
    %c0_376 = arith.constant 0 : index
    %845 = vector.load %arg2[%c63, %c0_375, %c0_376] : memref<100x16x128xf32, #tpu.memory_space<vmem>>, vector<1x16x128xf32>
    %846 = vector.shape_cast %845 : vector<1x16x128xf32> to vector<16x128xf32>
    %847 = vector.shape_cast %844 : vector<16x128xf32> to vector<1x16x128xf32>
    tpu.vector_store %arg2[%c63, %c0_375, %c0_376], %847 {strides = array<i32>} : memref<100x16x128xf32, #tpu.memory_space<vmem>>, vector<1x16x128xf32>,
    %cst_377 = arith.constant 5.23300923E-6 : f32
    %848 = vector.broadcast %cst_377 : f32 to vector<16x128xf32>
    %849 = arith.mulf %848, %838 : vector<16x128xf32>
    %850 = arith.mulf %849, %841 : vector<16x128xf32>
    %c49 = arith.constant 49 : index
    %c0_378 = arith.constant 0 : index
    %c0_379 = arith.constant 0 : index
    %851 = vector.load %arg2[%c49, %c0_378, %c0_379] : memref<100x16x128xf32, #tpu.memory_space<vmem>>, vector<1x16x128xf32>
    %852 = vector.shape_cast %851 : vector<1x16x128xf32> to vector<16x128xf32>
    %853 = vector.shape_cast %850 : vector<16x128xf32> to vector<1x16x128xf32>
    tpu.vector_store %arg2[%c49, %c0_378, %c0_379], %853 {strides = array<i32>} : memref<100x16x128xf32, #tpu.memory_space<vmem>>, vector<1x16x128xf32>,
    %cst_380 = arith.constant 1.500000e+01 : f32
    %854 = vector.broadcast %cst_380 : f32 to vector<16x128xf32>
    %855 = arith.mulf %854, %12 : vector<16x128xf32>
    %856 = arith.mulf %855, %841 : vector<16x128xf32>
    %cst_381 = arith.constant 1.43841669E-6 : f32
    %857 = vector.broadcast %cst_381 : f32 to vector<16x128xf32>
    %858 = arith.mulf %857, %834 : vector<16x128xf32>
    %859 = arith.mulf %858, %856 : vector<16x128xf32>
    %c79 = arith.constant 79 : index
    %c0_382 = arith.constant 0 : index
    %c0_383 = arith.constant 0 : index
    %860 = vector.load %arg2[%c79, %c0_382, %c0_383] : memref<100x16x128xf32, #tpu.memory_space<vmem>>, vector<1x16x128xf32>
    %861 = vector.shape_cast %860 : vector<1x16x128xf32> to vector<16x128xf32>
    %862 = vector.shape_cast %859 : vector<16x128xf32> to vector<1x16x128xf32>
    tpu.vector_store %arg2[%c79, %c0_382, %c0_383], %862 {strides = array<i32>} : memref<100x16x128xf32, #tpu.memory_space<vmem>>, vector<1x16x128xf32>,
    %cst_384 = arith.constant 1.43841669E-6 : f32
    %863 = vector.broadcast %cst_384 : f32 to vector<16x128xf32>
    %864 = arith.mulf %863, %838 : vector<16x128xf32>
    %865 = arith.mulf %864, %856 : vector<16x128xf32>
    %c65 = arith.constant 65 : index
    %c0_385 = arith.constant 0 : index
    %c0_386 = arith.constant 0 : index
    %866 = vector.load %arg2[%c65, %c0_385, %c0_386] : memref<100x16x128xf32, #tpu.memory_space<vmem>>, vector<1x16x128xf32>
    %867 = vector.shape_cast %866 : vector<1x16x128xf32> to vector<16x128xf32>
    %868 = vector.shape_cast %865 : vector<16x128xf32> to vector<1x16x128xf32>
    tpu.vector_store %arg2[%c65, %c0_385, %c0_386], %868 {strides = array<i32>} : memref<100x16x128xf32, #tpu.memory_space<vmem>>, vector<1x16x128xf32>,
    %cst_387 = arith.constant 8.500000e+00 : f32
    %869 = vector.broadcast %cst_387 : f32 to vector<16x128xf32>
    %870 = arith.mulf %869, %12 : vector<16x128xf32>
    %871 = arith.mulf %870, %856 : vector<16x128xf32>
    %cst_388 = arith.constant 7.500000e+00 : f32
    %872 = vector.broadcast %cst_388 : f32 to vector<16x128xf32>
    %873 = arith.mulf %872, %841 : vector<16x128xf32>
    %874 = arith.subf %871, %873 : vector<16x128xf32>
    %cst_389 = arith.constant 5.37640631E-7 : f32
    %875 = vector.broadcast %cst_389 : f32 to vector<16x128xf32>
    %876 = arith.mulf %875, %834 : vector<16x128xf32>
    %877 = arith.mulf %876, %874 : vector<16x128xf32>
    %c97 = arith.constant 97 : index
    %c0_390 = arith.constant 0 : index
    %c0_391 = arith.constant 0 : index
    %878 = vector.load %arg2[%c97, %c0_390, %c0_391] : memref<100x16x128xf32, #tpu.memory_space<vmem>>, vector<1x16x128xf32>
    %879 = vector.shape_cast %878 : vector<1x16x128xf32> to vector<16x128xf32>
    %880 = vector.shape_cast %877 : vector<16x128xf32> to vector<1x16x128xf32>
    tpu.vector_store %arg2[%c97, %c0_390, %c0_391], %880 {strides = array<i32>} : memref<100x16x128xf32, #tpu.memory_space<vmem>>, vector<1x16x128xf32>,
    %cst_392 = arith.constant 5.37640631E-7 : f32
    %881 = vector.broadcast %cst_392 : f32 to vector<16x128xf32>
    %882 = arith.mulf %881, %838 : vector<16x128xf32>
    %883 = arith.mulf %882, %874 : vector<16x128xf32>
    %c83 = arith.constant 83 : index
    %c0_393 = arith.constant 0 : index
    %c0_394 = arith.constant 0 : index
    %884 = vector.load %arg2[%c83, %c0_393, %c0_394] : memref<100x16x128xf32, #tpu.memory_space<vmem>>, vector<1x16x128xf32>
    %885 = vector.shape_cast %884 : vector<1x16x128xf32> to vector<16x128xf32>
    %886 = vector.shape_cast %883 : vector<16x128xf32> to vector<1x16x128xf32>
    tpu.vector_store %arg2[%c83, %c0_393, %c0_394], %886 {strides = array<i32>} : memref<100x16x128xf32, #tpu.memory_space<vmem>>, vector<1x16x128xf32>,
    %cst_395 = arith.constant 2.000000e+00 : f32
    %887 = vector.broadcast %cst_395 : f32 to vector<16x128xf32>
    %888 = arith.mulf %887, %19 : vector<16x128xf32>
    %889 = arith.mulf %888, %834 : vector<16x128xf32>
    %890 = arith.subf %889, %760 : vector<16x128xf32>
    %cst_396 = arith.constant 2.000000e+00 : f32
    %891 = vector.broadcast %cst_396 : f32 to vector<16x128xf32>
    %892 = arith.mulf %891, %19 : vector<16x128xf32>
    %893 = arith.mulf %892, %838 : vector<16x128xf32>
    %894 = arith.subf %893, %764 : vector<16x128xf32>
    %cst_397 = arith.constant -1.500000e+01 : f32
    %895 = vector.broadcast %cst_397 : f32 to vector<16x128xf32>
    %896 = arith.mulf %841, %895 : vector<16x128xf32>
    %897 = arith.mulf %896, %18 : vector<16x128xf32>
    %cst_398 = arith.constant 3.59604172E-7 : f32
    %898 = vector.broadcast %cst_398 : f32 to vector<16x128xf32>
    %899 = arith.mulf %898, %890 : vector<16x128xf32>
    %900 = arith.mulf %899, %897 : vector<16x128xf32>
    %c80 = arith.constant 80 : index
    %c0_399 = arith.constant 0 : index
    %c0_400 = arith.constant 0 : index
    %901 = vector.load %arg2[%c80, %c0_399, %c0_400] : memref<100x16x128xf32, #tpu.memory_space<vmem>>, vector<1x16x128xf32>
    %902 = vector.shape_cast %901 : vector<1x16x128xf32> to vector<16x128xf32>
    %903 = vector.shape_cast %900 : vector<16x128xf32> to vector<1x16x128xf32>
    tpu.vector_store %arg2[%c80, %c0_399, %c0_400], %903 {strides = array<i32>} : memref<100x16x128xf32, #tpu.memory_space<vmem>>, vector<1x16x128xf32>,
    %cst_401 = arith.constant 3.59604172E-7 : f32
    %904 = vector.broadcast %cst_401 : f32 to vector<16x128xf32>
    %905 = arith.mulf %904, %894 : vector<16x128xf32>
    %906 = arith.mulf %905, %897 : vector<16x128xf32>
    %c64 = arith.constant 64 : index
    %c0_402 = arith.constant 0 : index
    %c0_403 = arith.constant 0 : index
    %907 = vector.load %arg2[%c64, %c0_402, %c0_403] : memref<100x16x128xf32, #tpu.memory_space<vmem>>, vector<1x16x128xf32>
    %908 = vector.shape_cast %907 : vector<1x16x128xf32> to vector<16x128xf32>
    %909 = vector.shape_cast %906 : vector<16x128xf32> to vector<1x16x128xf32>
    tpu.vector_store %arg2[%c64, %c0_402, %c0_403], %909 {strides = array<i32>} : memref<100x16x128xf32, #tpu.memory_space<vmem>>, vector<1x16x128xf32>,
    %cst_404 = arith.constant 1.700000e+01 : f32
    %910 = vector.broadcast %cst_404 : f32 to vector<16x128xf32>
    %911 = arith.mulf %910, %12 : vector<16x128xf32>
    %912 = arith.mulf %911, %897 : vector<16x128xf32>
    %cst_405 = arith.constant 9.220460e-08 : f32
    %913 = vector.broadcast %cst_405 : f32 to vector<16x128xf32>
    %914 = arith.mulf %913, %890 : vector<16x128xf32>
    %915 = arith.mulf %914, %912 : vector<16x128xf32>
    %c98 = arith.constant 98 : index
    %c0_406 = arith.constant 0 : index
    %c0_407 = arith.constant 0 : index
    %916 = vector.load %arg2[%c98, %c0_406, %c0_407] : memref<100x16x128xf32, #tpu.memory_space<vmem>>, vector<1x16x128xf32>
    %917 = vector.shape_cast %916 : vector<1x16x128xf32> to vector<16x128xf32>
    %918 = vector.shape_cast %915 : vector<16x128xf32> to vector<1x16x128xf32>
    tpu.vector_store %arg2[%c98, %c0_406, %c0_407], %918 {strides = array<i32>} : memref<100x16x128xf32, #tpu.memory_space<vmem>>, vector<1x16x128xf32>,
    %cst_408 = arith.constant 9.220460e-08 : f32
    %919 = vector.broadcast %cst_408 : f32 to vector<16x128xf32>
    %920 = arith.mulf %919, %894 : vector<16x128xf32>
    %921 = arith.mulf %920, %912 : vector<16x128xf32>
    %c82 = arith.constant 82 : index
    %c0_409 = arith.constant 0 : index
    %c0_410 = arith.constant 0 : index
    %922 = vector.load %arg2[%c82, %c0_409, %c0_410] : memref<100x16x128xf32, #tpu.memory_space<vmem>>, vector<1x16x128xf32>
    %923 = vector.shape_cast %922 : vector<1x16x128xf32> to vector<16x128xf32>
    %924 = vector.shape_cast %921 : vector<16x128xf32> to vector<1x16x128xf32>
    tpu.vector_store %arg2[%c82, %c0_409, %c0_410], %924 {strides = array<i32>} : memref<100x16x128xf32, #tpu.memory_space<vmem>>, vector<1x16x128xf32>,
    %cst_411 = arith.constant 2.000000e+00 : f32
    %925 = vector.broadcast %cst_411 : f32 to vector<16x128xf32>
    %926 = arith.mulf %925, %19 : vector<16x128xf32>
    %927 = arith.mulf %926, %890 : vector<16x128xf32>
    %928 = arith.subf %927, %834 : vector<16x128xf32>
    %cst_412 = arith.constant 2.000000e+00 : f32
    %929 = vector.broadcast %cst_412 : f32 to vector<16x128xf32>
    %930 = arith.mulf %929, %19 : vector<16x128xf32>
    %931 = arith.mulf %930, %894 : vector<16x128xf32>
    %932 = arith.subf %931, %838 : vector<16x128xf32>
    %cst_413 = arith.constant -1.700000e+01 : f32
    %933 = vector.broadcast %cst_413 : f32 to vector<16x128xf32>
    %934 = arith.mulf %897, %933 : vector<16x128xf32>
    %935 = arith.mulf %934, %18 : vector<16x128xf32>
    %cst_414 = arith.constant 2.17328342E-8 : f32
    %936 = vector.broadcast %cst_414 : f32 to vector<16x128xf32>
    %937 = arith.mulf %936, %928 : vector<16x128xf32>
    %938 = arith.mulf %937, %935 : vector<16x128xf32>
    %c99 = arith.constant 99 : index
    %c0_415 = arith.constant 0 : index
    %c0_416 = arith.constant 0 : index
    %939 = vector.load %arg2[%c99, %c0_415, %c0_416] : memref<100x16x128xf32, #tpu.memory_space<vmem>>, vector<1x16x128xf32>
    %940 = vector.shape_cast %939 : vector<1x16x128xf32> to vector<16x128xf32>
    %941 = vector.shape_cast %938 : vector<16x128xf32> to vector<1x16x128xf32>
    tpu.vector_store %arg2[%c99, %c0_415, %c0_416], %941 {strides = array<i32>} : memref<100x16x128xf32, #tpu.memory_space<vmem>>, vector<1x16x128xf32>,
    %cst_417 = arith.constant 2.17328342E-8 : f32
    %942 = vector.broadcast %cst_417 : f32 to vector<16x128xf32>
    %943 = arith.mulf %942, %932 : vector<16x128xf32>
    %944 = arith.mulf %943, %935 : vector<16x128xf32>
    %c81 = arith.constant 81 : index
    %c0_418 = arith.constant 0 : index
    %c0_419 = arith.constant 0 : index
    %945 = vector.load %arg2[%c81, %c0_418, %c0_419] : memref<100x16x128xf32, #tpu.memory_space<vmem>>, vector<1x16x128xf32>
    %946 = vector.shape_cast %945 : vector<1x16x128xf32> to vector<16x128xf32>
    %947 = vector.shape_cast %944 : vector<16x128xf32> to vector<1x16x128xf32>
    tpu.vector_store %arg2[%c81, %c0_418, %c0_419], %947 {strides = array<i32>} : memref<100x16x128xf32, #tpu.memory_space<vmem>>, vector<1x16x128xf32>,
    return
  }
  func.func @transform_0(%arg0: i32) -> (i32, i32, i32) {
    %c0_i32 = arith.constant 0 : i32
    %c0_i32_0 = arith.constant 0 : i32
    %c0_i32_1 = arith.constant 0 : i32
    return %c0_i32, %arg0, %c0_i32_0 : i32, i32, i32
  }
  func.func @transform_1(%arg0: i32) -> (i32, i32, i32) {
    %c0_i32 = arith.constant 0 : i32
    %c0_i32_0 = arith.constant 0 : i32
    %c0_i32_1 = arith.constant 0 : i32
    return %c0_i32, %arg0, %c0_i32_0 : i32, i32, i32
  }
}

</mosaic_0001>

<llo_original>
// kernel: tpu_custom_call.1
$region0: #{tpu_custom_call.1}
  #allocation0 [shape = 'u32[]', space=smem, size = 0x4, offset = 0x4, fixed_abs, tag = 'smem constant byte address 0x4 - core index']
  #allocation1 [shape = 'u32[72,128]{1,0:T(1,128)}', space=vmem, size = 0x9000, scoped, tag = 'internal scratch']
  %s0 = inlined_call_operand.hbm [shape: f32[2,16,128], index: 0, kind: input, shape index: {}]
  %s1 = inlined_call_operand.hbm [shape: f32[100,16,128], index: 1, kind: output, shape index: {}]
  %s2 = sld [smem:[#allocation0]]
  $region18: #{tpu_custom_call.1} parent=0
    _
  %s4 = ssub.s32 1, %s2
  %s5 = scalar_select 0, %s4, %s2
  $region1: #{tpu_custom_call.1} parent=0
    #allocation2 [shape = 'u8[16384]{0}', space=vmem, size = 0x4000, scoped, tag = 'input window, operand 0, single buffered']
    #allocation3 [shape = 's32[1]{0}', space=sflag, size = 0x4, scoped, tag = 'scoped memory for tpu_custom_call.1']
    #allocation4 [shape = 's32[1]{0}', space=sflag, size = 0x4, scoped, tag = 'scoped memory for tpu_custom_call.1']
    #allocation5 [shape = 'u8[819200]{0}', space=vmem, size = 0xc8000, scoped, tag = 'output window, operand 0, single buffered']
    %6 = vsyncpa [#allocation3], 0
    %7 = vsyncpa [#allocation4], 0
    // Predicated region
    $region2: #{tpu_custom_call.1} parent=1 // pred_check
      _
    $region3: #{tpu_custom_call.1} parent=1 // pred_check_branch
      %9 = sbr.rel (0) target = $region5
    $region4: #{tpu_custom_call.1} parent=1 // pred_region
      %11 = vsyncadd [#allocation3], 0
      %s12 = sshll.u32 %s0, 4
      %s13 = int_to_ptr.hbm [resolvable:$true] %s12
      %s14 = sshll.u32 [#allocation2], 4
      %s15 = int_to_ptr.vmem [resolvable:$true] %s14
      %20 = dma.hbm_to_vmem [thread:$0]  %s13, 512, %s15, [#allocation3], 128, 128, 8
    $region5: #{tpu_custom_call.1} parent=1 // pred_fallthru
      _
    // Predicated region
    $region6: #{tpu_custom_call.1} parent=1 // pred_check
      _
    $region7: #{tpu_custom_call.1} parent=1 // pred_check_branch
      %22 = sbr.rel (0) target = $region9
    $region8: #{tpu_custom_call.1} parent=1 // pred_region
      %24 = dma.done [#allocation3], 512
    $region9: #{tpu_custom_call.1} parent=1 // pred_fallthru
      _
    %v25 = vld [vmem:[#allocation2] sm:$0xff]
    %v26 = vld [vmem:[#allocation2 + $0x8] sm:$0xff]
    %s27 = scalar_lea.vmem [#allocation2], 16
    %v28 = vld [vmem:[%s27] sm:$0xff]
    %v29 = vld [vmem:[%s27 + $0x8] sm:$0xff]
    %v30 = vadd.f32 %v25, 180.0
    %v31 = vadd.f32 %v26, 180.0
    %v32 = vmul.f32 %v30, 0.017453292
    %v33 = vmul.f32 %v31, 0.017453292
    %v34 = vadd.f32 %v28, 90.0
    %v35 = vadd.f32 %v29, 90.0
    %v36 = vmul.f32 %v34, 0.017453292
    %v37 = vmul.f32 %v35, 0.017453292
    %v38 = vand.u32 2147483647, %v36
    %vm39 = vcmp.le.f32.partialorder %v38, 0.7853982
    %vm40 = vcmp.lt.s32.totalorder %v36, 0
    %v41 = vand.u32 %v36, 2139095040
    %v42 = vshrl.u32 %v41, 23
    %v43 = vsub.s32 %v42, 127
    %v44 = vand.u32 2147483647, %v36
    %v45 = vand.u32 %v44, 8388607
    %v46 = vor.u32 %v45, 8388608
    %v47 = vsub.s32 0, %v46
    %v48 = vadd.s32 %v43, 1
    %vm49 = vcmp.gt.s32.totalorder %v48, 0
    %v50 = vsel %vm49, %v48, 0
    %v51 = vshrl.u32 %v50, 5
    %v52 = vand.u32 %v50, 31
    %v53 = vsub.s32 32, %v52
    %v54 = vshrl.u32 683565275, %v53
    %v55 = vshll.u32 683565275, %v52
    %v56 = vshrl.u32 2475754826, %v53
    %v57 = vor.u32 %v55, %v56
    %v58 = vshll.u32 2475754826, %v52
    %v59 = vshrl.u32 2131351028, %v53
    %v60 = vor.u32 %v58, %v59
    %v61 = vshll.u32 2131351028, %v52
    %v62 = vshrl.u32 2102212464, %v53
    %v63 = vor.u32 %v61, %v62
    %v64 = vshll.u32 2102212464, %v52
    %v65 = vshrl.u32 920167782, %v53
    %v66 = vor.u32 %v64, %v65
    %v67 = vshll.u32 920167782, %v52
    %v68 = vshrl.u32 1326507024, %v53
    %v69 = vor.u32 %v67, %v68
    %vm70 = vcmp.lt.s32.totalorder %v51, 1
    %vm71 = vcmp.lt.s32.totalorder %v51, 2
    %vm72 = vcmp.lt.s32.totalorder %v51, 3
    %vm73 = vcmp.lt.s32.totalorder %v51, 4
    %v74 = vsel %vm70, %v54, %v57
    %v75 = vsel %vm73, %v63, 2102212464
    %v76 = vsel %vm72, %v60, %v75
    %v77 = vsel %vm71, %v74, %v76
    %v78 = vsel %vm70, %v57, %v60
    %v79 = vsel %vm73, %v66, 920167782
    %v80 = vsel %vm72, %v63, %v79
    %v81 = vsel %vm71, %v78, %v80
    %v82 = vsel %vm70, %v60, %v63
    %v83 = vsel %vm73, %v69, 1326507024
    %v84 = vsel %vm72, %v66, %v83
    %v85 = vsel %vm71, %v82, %v84
    %v86 = vshll.u32 %v46, 8
    %v87 = vand.u32 %v86, 65535
    %v88 = vshrl.u32 %v86, 16
    %v89 = vand.u32 %v85, 65535
    %v90 = vshrl.u32 %v85, 16
    %v91 = vmul.u32 %v87, %v89
    %v92 = vmul.u32 %v87, %v90
    %v93 = vmul.u32 %v88, %v89
    %v94 = vmul.u32 %v88, %v90
    %v95 = vshll.u32 %v92, 16
    %v96 = vshrl.u32 %v92, 16
    %v97 = vshll.u32 %v93, 16
    %v98 = vshrl.u32 %v93, 16
    %vm99 = vc.u32 %v91, %v95
    %v100 = vsel %vm99, 1, 0
    %v101 = vadd.s32 %v91, %v95
    %v102 = vadd.s32 %v94, %v100
    %vm103 = vc.u32 %v101, %v97
    %v104 = vsel %vm103, 1, 0
    %v105 = vadd.s32 %v101, %v97
    %v106 = vadd.s32 %v102, %v104
    %v107 = vadd.s32 %v106, %v96
    %v108 = vadd.s32 %v107, %v98
    %v109 = vand.u32 %v86, 65535
    %v110 = vshrl.u32 %v86, 16
    %v111 = vand.u32 %v81, 65535
    %v112 = vshrl.u32 %v81, 16
    %v113 = vmul.u32 %v109, %v111
    %v114 = vmul.u32 %v109, %v112
    %v115 = vmul.u32 %v110, %v111
    %v116 = vmul.u32 %v110, %v112
    %v117 = vshll.u32 %v114, 16
    %v118 = vshrl.u32 %v114, 16
    %v119 = vshll.u32 %v115, 16
    %v120 = vshrl.u32 %v115, 16
    %vm121 = vc.u32 %v113, %v117
    %v122 = vsel %vm121, 1, 0
    %v123 = vadd.s32 %v113, %v117
    %v124 = vadd.s32 %v116, %v122
    %vm125 = vc.u32 %v123, %v119
    %v126 = vsel %vm125, 1, 0
    %v127 = vadd.s32 %v123, %v119
    %v128 = vadd.s32 %v124, %v126
    %v129 = vadd.s32 %v128, %v118
    %v130 = vadd.s32 %v129, %v120
    %v131 = vmul.u32 %v86, %v77
    %v132 = vadd.s32 %v108, %v127
    %vm133 = vc.u32 %v108, %v127
    %v134 = vadd.s32 %v130, 1
    %v135 = vsel %vm133, %v134, %v130
    %v136 = vadd.s32 %v131, %v135
    %v137 = vadd.s32 %v136, 536870912
    %v138 = vshrl.u32 %v137, 30
    %v139 = vshll.u32 %v138, 30
    %v140 = vsub.s32 %v136, %v139
    %vm141 = vcmp.lt.s32.totalorder %v140, 0
    %v142 = vsub.s32 0, %v140
    %v143 = vsel %vm141, %v142, %v140
    %v144 = vclz %v143
    %v145 = vsub.s32 %v144, 2
    %vm146 = vcmp.gt.s32.totalorder 0, %v145
    %v147 = vsel %vm146, 0, %v145
    %v148 = vsub.s32 32, %v147
    %v149 = vshll.u32 %v140, %v147
    %v150 = vshrl.u32 %v132, %v148
    %v151 = vor.u32 %v149, %v150
    %v152 = vsub.s32 4294967266, %v147
    %v153 = vadd.s32 %v152, 127
    %v154 = vshll.u32 %v153, 23
    %v155 = vor.u32 4788187, %v154
    %v156 = vand.u32 2147483647, %v155
    %v158 = vcvt.s32.f32 %v151
    %v159 = vmul.f32 %v158, %v156
    %v160 = vxor.u32 %v159, 2147483648
    %v161 = vsel %vm40, %v160, %v159
    %v162 = vsub.s32 4, %v138
    %v163 = vsel %vm40, %v162, %v138
    %v164 = vsel %vm39, %v36, %v161
    %v165 = vsel %vm39, 0, %v163
    %v166 = vmul.f32 %v164, %v164
    %v167 = vmul.f32 %v166, -0.001358992
    %v168 = vadd.f32 %v167, 0.041655596
    %v169 = vmul.f32 %v166, %v168
    %v170 = vadd.f32 %v169, -0.4999988
    %v171 = vmul.f32 %v166, %v170
    %v172 = vadd.f32 1.0, %v171
    %v173 = vmul.f32 %v164, %v164
    %v174 = vmul.f32 %v173, -0.00019511016
    %v175 = vadd.f32 %v174, 0.008332121
    %v176 = vmul.f32 %v173, %v175
    %v177 = vadd.f32 %v176, -0.16666654
    %v178 = vmul.f32 %v173, %v177
    %v179 = vadd.f32 %v178, 1.0
    %v180 = vmul.f32 %v179, %v164
    %vm181 = vweird.f32 %v36
    %v182 = vand.u32 %v165, 3
    %vm183 = vcmp.lt.s32.totalorder %v182, 2
    %vm184 = vcmp.eq.s32.totalorder %v182, 0
    %v185 = vxor.u32 %v180, 2147483648
    %v186 = vsel %vm184, %v172, %v185
    %vm187 = vcmp.eq.s32.totalorder %v182, 2
    %v188 = vxor.u32 %v172, 2147483648
    %v189 = vsel %vm187, %v188, %v180
    %v190 = vsel %vm183, %v186, %v189
    %v191 = vsel %vm181, nan, %v190
    %v192 = vand.u32 2147483647, %v37
    %vm193 = vcmp.le.f32.partialorder %v192, 0.7853982
    %vm194 = vcmp.lt.s32.totalorder %v37, 0
    %v195 = vand.u32 %v37, 2139095040
    %v196 = vshrl.u32 %v195, 23
    %v197 = vsub.s32 %v196, 127
    %v198 = vand.u32 2147483647, %v37
    %v199 = vand.u32 %v198, 8388607
    %v200 = vor.u32 %v199, 8388608
    %v201 = vsub.s32 0, %v200
    %v202 = vadd.s32 %v197, 1
    %vm203 = vcmp.gt.s32.totalorder %v202, 0
    %v204 = vsel %vm203, %v202, 0
    %v205 = vshrl.u32 %v204, 5
    %v206 = vand.u32 %v204, 31
    %v207 = vsub.s32 32, %v206
    %v208 = vshrl.u32 683565275, %v207
    %v209 = vshll.u32 683565275, %v206
    %v210 = vshrl.u32 2475754826, %v207
    %v211 = vor.u32 %v209, %v210
    %v212 = vshll.u32 2475754826, %v206
    %v213 = vshrl.u32 2131351028, %v207
    %v214 = vor.u32 %v212, %v213
    %v215 = vshll.u32 2131351028, %v206
    %v216 = vshrl.u32 2102212464, %v207
    %v217 = vor.u32 %v215, %v216
    %v218 = vshll.u32 2102212464, %v206
    %v219 = vshrl.u32 920167782, %v207
    %v220 = vor.u32 %v218, %v219
    %v221 = vshll.u32 920167782, %v206
    %v222 = vshrl.u32 1326507024, %v207
    %v223 = vor.u32 %v221, %v222
    %vm224 = vcmp.lt.s32.totalorder %v205, 1
    %vm225 = vcmp.lt.s32.totalorder %v205, 2
    %vm226 = vcmp.lt.s32.totalorder %v205, 3
    %vm227 = vcmp.lt.s32.totalorder %v205, 4
    %v228 = vsel %vm224, %v208, %v211
    %v229 = vsel %vm227, %v217, 2102212464
    %v230 = vsel %vm226, %v214, %v229
    %v231 = vsel %vm225, %v228, %v230
    %v232 = vsel %vm224, %v211, %v214
    %v233 = vsel %vm227, %v220, 920167782
    %v234 = vsel %vm226, %v217, %v233
    %v235 = vsel %vm225, %v232, %v234
    %v236 = vsel %vm224, %v214, %v217
    %v237 = vsel %vm227, %v223, 1326507024
    %v238 = vsel %vm226, %v220, %v237
    %v239 = vsel %vm225, %v236, %v238
    %v240 = vshll.u32 %v200, 8
    %v241 = vand.u32 %v240, 65535
    %v242 = vshrl.u32 %v240, 16
    %v243 = vand.u32 %v239, 65535
    %v244 = vshrl.u32 %v239, 16
    %v245 = vmul.u32 %v241, %v243
    %v246 = vmul.u32 %v241, %v244
    %v247 = vmul.u32 %v242, %v243
    %v248 = vmul.u32 %v242, %v244
    %v249 = vshll.u32 %v246, 16
    %v250 = vshrl.u32 %v246, 16
    %v251 = vshll.u32 %v247, 16
    %v252 = vshrl.u32 %v247, 16
    %vm253 = vc.u32 %v245, %v249
    %v254 = vsel %vm253, 1, 0
    %v255 = vadd.s32 %v245, %v249
    %v256 = vadd.s32 %v248, %v254
    %vm257 = vc.u32 %v255, %v251
    %v258 = vsel %vm257, 1, 0
    %v259 = vadd.s32 %v255, %v251
    %v260 = vadd.s32 %v256, %v258
    %v261 = vadd.s32 %v260, %v250
    %v262 = vadd.s32 %v261, %v252
    %v263 = vand.u32 %v240, 65535
    %v264 = vshrl.u32 %v240, 16
    %v265 = vand.u32 %v235, 65535
    %v266 = vshrl.u32 %v235, 16
    %v267 = vmul.u32 %v263, %v265
    %v268 = vmul.u32 %v263, %v266
    %v269 = vmul.u32 %v264, %v265
    %v270 = vmul.u32 %v264, %v266
    %v271 = vshll.u32 %v268, 16
    %v272 = vshrl.u32 %v268, 16
    %v273 = vshll.u32 %v269, 16
    %v274 = vshrl.u32 %v269, 16
    %vm275 = vc.u32 %v267, %v271
    %v276 = vsel %vm275, 1, 0
    %v277 = vadd.s32 %v267, %v271
    %v278 = vadd.s32 %v270, %v276
    %vm279 = vc.u32 %v277, %v273
    %v280 = vsel %vm279, 1, 0
    %v281 = vadd.s32 %v277, %v273
    %v282 = vadd.s32 %v278, %v280
    %v283 = vadd.s32 %v282, %v272
    %v284 = vadd.s32 %v283, %v274
    %v285 = vmul.u32 %v240, %v231
    %v286 = vadd.s32 %v262, %v281
    %vm287 = vc.u32 %v262, %v281
    %v288 = vadd.s32 %v284, 1
    %v289 = vsel %vm287, %v288, %v284
    %v290 = vadd.s32 %v285, %v289
    %v291 = vadd.s32 %v290, 536870912
    %v292 = vshrl.u32 %v291, 30
    %v293 = vshll.u32 %v292, 30
    %v294 = vsub.s32 %v290, %v293
    %vm295 = vcmp.lt.s32.totalorder %v294, 0
    %v296 = vsub.s32 0, %v294
    %v297 = vsel %vm295, %v296, %v294
    %v298 = vclz %v297
    %v299 = vsub.s32 %v298, 2
    %vm300 = vcmp.gt.s32.totalorder 0, %v299
    %v301 = vsel %vm300, 0, %v299
    %v302 = vsub.s32 32, %v301
    %v303 = vshll.u32 %v294, %v301
    %v304 = vshrl.u32 %v286, %v302
    %v305 = vor.u32 %v303, %v304
    %v306 = vsub.s32 4294967266, %v301
    %v307 = vadd.s32 %v306, 127
    %v308 = vshll.u32 %v307, 23
    %v309 = vor.u32 4788187, %v308
    %v310 = vand.u32 2147483647, %v309
    %v312 = vcvt.s32.f32 %v305
    %v313 = vmul.f32 %v312, %v310
    %v314 = vxor.u32 %v313, 2147483648
    %v315 = vsel %vm194, %v314, %v313
    %v316 = vsub.s32 4, %v292
    %v317 = vsel %vm194, %v316, %v292
    %v318 = vsel %vm193, %v37, %v315
    %v319 = vsel %vm193, 0, %v317
    %v320 = vmul.f32 %v318, %v318
    %v321 = vmul.f32 %v320, -0.001358992
    %v322 = vadd.f32 %v321, 0.041655596
    %v323 = vmul.f32 %v320, %v322
    %v324 = vadd.f32 %v323, -0.4999988
    %v325 = vmul.f32 %v320, %v324
    %v326 = vadd.f32 1.0, %v325
    %v327 = vmul.f32 %v318, %v318
    %v328 = vmul.f32 %v327, -0.00019511016
    %v329 = vadd.f32 %v328, 0.008332121
    %v330 = vmul.f32 %v327, %v329
    %v331 = vadd.f32 %v330, -0.16666654
    %v332 = vmul.f32 %v327, %v331
    %v333 = vadd.f32 %v332, 1.0
    %v334 = vmul.f32 %v333, %v318
    %vm335 = vweird.f32 %v37
    %v336 = vand.u32 %v319, 3
    %vm337 = vcmp.lt.s32.totalorder %v336, 2
    %vm338 = vcmp.eq.s32.totalorder %v336, 0
    %v339 = vxor.u32 %v334, 2147483648
    %v340 = vsel %vm338, %v326, %v339
    %vm341 = vcmp.eq.s32.totalorder %v336, 2
    %v342 = vxor.u32 %v326, 2147483648
    %v343 = vsel %vm341, %v342, %v334
    %v344 = vsel %vm337, %v340, %v343
    %v345 = vsel %vm335, nan, %v344
    %v346 = vsub.f32 1.0, %v191
    %v347 = vsub.f32 1.0, %v345
    %v348 = vadd.f32 %v191, 1.0
    %v349 = vadd.f32 %v345, 1.0
    %v350 = vmul.f32 %v346, %v348
    %v351 = vmul.f32 %v347, %v349
    %v352 = vrsqrt.pop %v350
    %v353 = vmul.f32 %v352, %v350
    %v354 = vmul.f32 %v353, %v352
    %v355 = vmul.f32 0.5, %v354
    %v356 = vsub.f32 1.5, %v355
    %v357 = vmul.f32 %v352, %v356
    %v358 = vmul.f32 %v350, %v357
    %vm359 = vcmp.eq.f32.partialorder %v350, inf
    %v360 = vsel %vm359, %v350, %v358
    %vm361 = vcmp.eq.f32.partialorder %v350, 0.0
    %v362 = vand.u32 %v350, 2147483648
    %v363 = vsel %vm361, %v362, %v360
    %v364 = vrsqrt.pop %v351
    %v365 = vmul.f32 %v364, %v351
    %v366 = vmul.f32 %v365, %v364
    %v367 = vmul.f32 0.5, %v366
    %v368 = vsub.f32 1.5, %v367
    %v369 = vmul.f32 %v364, %v368
    %v370 = vmul.f32 %v351, %v369
    %vm371 = vcmp.eq.f32.partialorder %v351, inf
    %v372 = vsel %vm371, %v351, %v370
    %vm373 = vcmp.eq.f32.partialorder %v351, 0.0
    %v374 = vand.u32 %v351, 2147483648
    %v375 = vsel %vm373, %v374, %v372
    %v376 = vand.u32 2147483647, %v32
    %vm377 = vcmp.le.f32.partialorder %v376, 0.7853982
    %vm378 = vcmp.lt.s32.totalorder %v32, 0
    %v379 = vand.u32 %v32, 2139095040
    %v380 = vshrl.u32 %v379, 23
    %v381 = vsub.s32 %v380, 127
    %v382 = vand.u32 2147483647, %v32
    %v383 = vand.u32 %v382, 8388607
    %v384 = vor.u32 %v383, 8388608
    %v385 = vsub.s32 0, %v384
    %v386 = vadd.s32 %v381, 1
    %vm387 = vcmp.gt.s32.totalorder %v386, 0
    %v388 = vsel %vm387, %v386, 0
    %v389 = vshrl.u32 %v388, 5
    %v390 = vand.u32 %v388, 31
    %v391 = vsub.s32 32, %v390
    %v392 = vshrl.u32 683565275, %v391
    %v393 = vshll.u32 683565275, %v390
    %v394 = vshrl.u32 2475754826, %v391
    %v395 = vor.u32 %v393, %v394
    %v396 = vshll.u32 2475754826, %v390
    %v397 = vshrl.u32 2131351028, %v391
    %v398 = vor.u32 %v396, %v397
    %v399 = vshll.u32 2131351028, %v390
    %v400 = vshrl.u32 2102212464, %v391
    %v401 = vor.u32 %v399, %v400
    %v402 = vshll.u32 2102212464, %v390
    %v403 = vshrl.u32 920167782, %v391
    %v404 = vor.u32 %v402, %v403
    %v405 = vshll.u32 920167782, %v390
    %v406 = vshrl.u32 1326507024, %v391
    %v407 = vor.u32 %v405, %v406
    %vm408 = vcmp.lt.s32.totalorder %v389, 1
    %vm409 = vcmp.lt.s32.totalorder %v389, 2
    %vm410 = vcmp.lt.s32.totalorder %v389, 3
    %vm411 = vcmp.lt.s32.totalorder %v389, 4
    %v412 = vsel %vm408, %v392, %v395
    %v413 = vsel %vm411, %v401, 2102212464
    %v414 = vsel %vm410, %v398, %v413
    %v415 = vsel %vm409, %v412, %v414
    %v416 = vsel %vm408, %v395, %v398
    %v417 = vsel %vm411, %v404, 920167782
    %v418 = vsel %vm410, %v401, %v417
    %v419 = vsel %vm409, %v416, %v418
    %v420 = vsel %vm408, %v398, %v401
    %v421 = vsel %vm411, %v407, 1326507024
    %v422 = vsel %vm410, %v404, %v421
    %v423 = vsel %vm409, %v420, %v422
    %v424 = vshll.u32 %v384, 8
    %v425 = vand.u32 %v424, 65535
    %v426 = vshrl.u32 %v424, 16
    %v427 = vand.u32 %v423, 65535
    %v428 = vshrl.u32 %v423, 16
    %v429 = vmul.u32 %v425, %v427
    %v430 = vmul.u32 %v425, %v428
    %v431 = vmul.u32 %v426, %v427
    %v432 = vmul.u32 %v426, %v428
    %v433 = vshll.u32 %v430, 16
    %v434 = vshrl.u32 %v430, 16
    %v435 = vshll.u32 %v431, 16
    %v436 = vshrl.u32 %v431, 16
    %vm437 = vc.u32 %v429, %v433
    %v438 = vsel %vm437, 1, 0
    %v439 = vadd.s32 %v429, %v433
    %v440 = vadd.s32 %v432, %v438
    %vm441 = vc.u32 %v439, %v435
    %v442 = vsel %vm441, 1, 0
    %v443 = vadd.s32 %v439, %v435
    %v444 = vadd.s32 %v440, %v442
    %v445 = vadd.s32 %v444, %v434
    %v446 = vadd.s32 %v445, %v436
    %v447 = vand.u32 %v424, 65535
    %v448 = vshrl.u32 %v424, 16
    %v449 = vand.u32 %v419, 65535
    %v450 = vshrl.u32 %v419, 16
    %v451 = vmul.u32 %v447, %v449
    %v452 = vmul.u32 %v447, %v450
    %v453 = vmul.u32 %v448, %v449
    %v454 = vmul.u32 %v448, %v450
    %v455 = vshll.u32 %v452, 16
    %v456 = vshrl.u32 %v452, 16
    %v457 = vshll.u32 %v453, 16
    %v458 = vshrl.u32 %v453, 16
    %vm459 = vc.u32 %v451, %v455
    %v460 = vsel %vm459, 1, 0
    %v461 = vadd.s32 %v451, %v455
    %v462 = vadd.s32 %v454, %v460
    %vm463 = vc.u32 %v461, %v457
    %v464 = vsel %vm463, 1, 0
    %v465 = vadd.s32 %v461, %v457
    %v466 = vadd.s32 %v462, %v464
    %v467 = vadd.s32 %v466, %v456
    %v468 = vadd.s32 %v467, %v458
    %v469 = vmul.u32 %v424, %v415
    %v470 = vadd.s32 %v446, %v465
    %vm471 = vc.u32 %v446, %v465
    %v472 = vadd.s32 %v468, 1
    %v473 = vsel %vm471, %v472, %v468
    %v474 = vadd.s32 %v469, %v473
    %v475 = vadd.s32 %v474, 536870912
    %v476 = vshrl.u32 %v475, 30
    %v477 = vshll.u32 %v476, 30
    %v478 = vsub.s32 %v474, %v477
    %vm479 = vcmp.lt.s32.totalorder %v478, 0
    %v480 = vsub.s32 0, %v478
    %v481 = vsel %vm479, %v480, %v478
    %v482 = vclz %v481
    %v483 = vsub.s32 %v482, 2
    %vm484 = vcmp.gt.s32.totalorder 0, %v483
    %v485 = vsel %vm484, 0, %v483
    %v486 = vsub.s32 32, %v485
    %v487 = vshll.u32 %v478, %v485
    %v488 = vshrl.u32 %v470, %v486
    %v489 = vor.u32 %v487, %v488
    %v490 = vsub.s32 4294967266, %v485
    %v491 = vadd.s32 %v490, 127
    %v492 = vshll.u32 %v491, 23
    %v493 = vor.u32 4788187, %v492
    %v494 = vand.u32 2147483647, %v493
    %v496 = vcvt.s32.f32 %v489
    %v497 = vmul.f32 %v496, %v494
    %v498 = vxor.u32 %v497, 2147483648
    %v499 = vsel %vm378, %v498, %v497
    %v500 = vsub.s32 4, %v476
    %v501 = vsel %vm378, %v500, %v476
    %v502 = vsel %vm377, %v32, %v499
    %v503 = vsel %vm377, 0, %v501
    %v504 = vmul.f32 %v502, %v502
    %v505 = vmul.f32 %v504, -0.001358992
    %v506 = vadd.f32 %v505, 0.041655596
    %v507 = vmul.f32 %v504, %v506
    %v508 = vadd.f32 %v507, -0.4999988
    %v509 = vmul.f32 %v504, %v508
    %v510 = vadd.f32 1.0, %v509
    %v511 = vmul.f32 %v502, %v502
    %v512 = vmul.f32 %v511, -0.00019511016
    %v513 = vadd.f32 %v512, 0.008332121
    %v514 = vmul.f32 %v511, %v513
    %v515 = vadd.f32 %v514, -0.16666654
    %v516 = vmul.f32 %v511, %v515
    %v517 = vadd.f32 %v516, 1.0
    %v518 = vmul.f32 %v517, %v502
    %vm519 = vweird.f32 %v32
    %v520 = vand.u32 %v503, 3
    %vm521 = vcmp.lt.s32.totalorder %v520, 2
    %vm522 = vcmp.eq.s32.totalorder %v520, 0
    %v523 = vxor.u32 %v518, 2147483648
    %v524 = vsel %vm522, %v510, %v523
    %vm525 = vcmp.eq.s32.totalorder %v520, 2
    %v526 = vxor.u32 %v510, 2147483648
    %v527 = vsel %vm525, %v526, %v518
    %v528 = vsel %vm521, %v524, %v527
    %v529 = vsel %vm519, nan, %v528
    %v530 = vand.u32 2147483647, %v33
    %vm531 = vcmp.le.f32.partialorder %v530, 0.7853982
    %vm532 = vcmp.lt.s32.totalorder %v33, 0
    %v533 = vand.u32 %v33, 2139095040
    %v534 = vshrl.u32 %v533, 23
    %v535 = vsub.s32 %v534, 127
    %v536 = vand.u32 2147483647, %v33
    %v537 = vand.u32 %v536, 8388607
    %v538 = vor.u32 %v537, 8388608
    %v539 = vsub.s32 0, %v538
    %v540 = vadd.s32 %v535, 1
    %vm541 = vcmp.gt.s32.totalorder %v540, 0
    %v542 = vsel %vm541, %v540, 0
    %v543 = vshrl.u32 %v542, 5
    %v544 = vand.u32 %v542, 31
    %v545 = vsub.s32 32, %v544
    %v546 = vshrl.u32 683565275, %v545
    %v547 = vshll.u32 683565275, %v544
    %v548 = vshrl.u32 2475754826, %v545
    %v549 = vor.u32 %v547, %v548
    %v550 = vshll.u32 2475754826, %v544
    %v551 = vshrl.u32 2131351028, %v545
    %v552 = vor.u32 %v550, %v551
    %v553 = vshll.u32 2131351028, %v544
    %v554 = vshrl.u32 2102212464, %v545
    %v555 = vor.u32 %v553, %v554
    %v556 = vshll.u32 2102212464, %v544
    %v557 = vshrl.u32 920167782, %v545
    %v558 = vor.u32 %v556, %v557
    %v559 = vshll.u32 920167782, %v544
    %v560 = vshrl.u32 1326507024, %v545
    %v561 = vor.u32 %v559, %v560
    %vm562 = vcmp.lt.s32.totalorder %v543, 1
    %vm563 = vcmp.lt.s32.totalorder %v543, 2
    %vm564 = vcmp.lt.s32.totalorder %v543, 3
    %vm565 = vcmp.lt.s32.totalorder %v543, 4
    %v566 = vsel %vm562, %v546, %v549
    %v567 = vsel %vm565, %v555, 2102212464
    %v568 = vsel %vm564, %v552, %v567
    %v569 = vsel %vm563, %v566, %v568
    %v570 = vsel %vm562, %v549, %v552
    %v571 = vsel %vm565, %v558, 920167782
    %v572 = vsel %vm564, %v555, %v571
    %v573 = vsel %vm563, %v570, %v572
    %v574 = vsel %vm562, %v552, %v555
    %v575 = vsel %vm565, %v561, 1326507024
    %v576 = vsel %vm564, %v558, %v575
    %v577 = vsel %vm563, %v574, %v576
    %v578 = vshll.u32 %v538, 8
    %v579 = vand.u32 %v578, 65535
    %v580 = vshrl.u32 %v578, 16
    %v581 = vand.u32 %v577, 65535
    %v582 = vshrl.u32 %v577, 16
    %v583 = vmul.u32 %v579, %v581
    %v584 = vmul.u32 %v579, %v582
    %v585 = vmul.u32 %v580, %v581
    %v586 = vmul.u32 %v580, %v582
    %v587 = vshll.u32 %v584, 16
    %v588 = vshrl.u32 %v584, 16
    %v589 = vshll.u32 %v585, 16
    %v590 = vshrl.u32 %v585, 16
    %vm591 = vc.u32 %v583, %v587
    %v592 = vsel %vm591, 1, 0
    %v593 = vadd.s32 %v583, %v587
    %v594 = vadd.s32 %v586, %v592
    %vm595 = vc.u32 %v593, %v589
    %v596 = vsel %vm595, 1, 0
    %v597 = vadd.s32 %v593, %v589
    %v598 = vadd.s32 %v594, %v596
    %v599 = vadd.s32 %v598, %v588
    %v600 = vadd.s32 %v599, %v590
    %v601 = vand.u32 %v578, 65535
    %v602 = vshrl.u32 %v578, 16
    %v603 = vand.u32 %v573, 65535
    %v604 = vshrl.u32 %v573, 16
    %v605 = vmul.u32 %v601, %v603
    %v606 = vmul.u32 %v601, %v604
    %v607 = vmul.u32 %v602, %v603
    %v608 = vmul.u32 %v602, %v604
    %v609 = vshll.u32 %v606, 16
    %v610 = vshrl.u32 %v606, 16
    %v611 = vshll.u32 %v607, 16
    %v612 = vshrl.u32 %v607, 16
    %vm613 = vc.u32 %v605, %v609
    %v614 = vsel %vm613, 1, 0
    %v615 = vadd.s32 %v605, %v609
    %v616 = vadd.s32 %v608, %v614
    %vm617 = vc.u32 %v615, %v611
    %v618 = vsel %vm617, 1, 0
    %v619 = vadd.s32 %v615, %v611
    %v620 = vadd.s32 %v616, %v618
    %v621 = vadd.s32 %v620, %v610
    %v622 = vadd.s32 %v621, %v612
    %v623 = vmul.u32 %v578, %v569
    %v624 = vadd.s32 %v600, %v619
    %vm625 = vc.u32 %v600, %v619
    %v626 = vadd.s32 %v622, 1
    %v627 = vsel %vm625, %v626, %v622
    %v628 = vadd.s32 %v623, %v627
    %v629 = vadd.s32 %v628, 536870912
    %v630 = vshrl.u32 %v629, 30
    %v631 = vshll.u32 %v630, 30
    %v632 = vsub.s32 %v628, %v631
    %vm633 = vcmp.lt.s32.totalorder %v632, 0
    %v634 = vsub.s32 0, %v632
    %v635 = vsel %vm633, %v634, %v632
    %v636 = vclz %v635
    %v637 = vsub.s32 %v636, 2
    %vm638 = vcmp.gt.s32.totalorder 0, %v637
    %v639 = vsel %vm638, 0, %v637
    %v640 = vsub.s32 32, %v639
    %v641 = vshll.u32 %v632, %v639
    %v642 = vshrl.u32 %v624, %v640
    %v643 = vor.u32 %v641, %v642
    %v644 = vsub.s32 4294967266, %v639
    %v645 = vadd.s32 %v644, 127
    %v646 = vshll.u32 %v645, 23
    %v647 = vor.u32 4788187, %v646
    %v648 = vand.u32 2147483647, %v647
    %v650 = vcvt.s32.f32 %v643
    %v651 = vmul.f32 %v650, %v648
    %v652 = vxor.u32 %v651, 2147483648
    %v653 = vsel %vm532, %v652, %v651
    %v654 = vsub.s32 4, %v630
    %v655 = vsel %vm532, %v654, %v630
    %v656 = vsel %vm531, %v33, %v653
    %v657 = vsel %vm531, 0, %v655
    %v658 = vmul.f32 %v656, %v656
    %v659 = vmul.f32 %v658, -0.001358992
    %v660 = vadd.f32 %v659, 0.041655596
    %v661 = vmul.f32 %v658, %v660
    %v662 = vadd.f32 %v661, -0.4999988
    %v663 = vmul.f32 %v658, %v662
    %v664 = vadd.f32 1.0, %v663
    %v665 = vmul.f32 %v656, %v656
    %v666 = vmul.f32 %v665, -0.00019511016
    %v667 = vadd.f32 %v666, 0.008332121
    %v668 = vmul.f32 %v665, %v667
    %v669 = vadd.f32 %v668, -0.16666654
    %v670 = vmul.f32 %v665, %v669
    %v671 = vadd.f32 %v670, 1.0
    %v672 = vmul.f32 %v671, %v656
    %vm673 = vweird.f32 %v33
    %v674 = vand.u32 %v657, 3
    %vm675 = vcmp.lt.s32.totalorder %v674, 2
    %vm676 = vcmp.eq.s32.totalorder %v674, 0
    %v677 = vxor.u32 %v672, 2147483648
    %v678 = vsel %vm676, %v664, %v677
    %vm679 = vcmp.eq.s32.totalorder %v674, 2
    %v680 = vxor.u32 %v664, 2147483648
    %v681 = vsel %vm679, %v680, %v672
    %v682 = vsel %vm675, %v678, %v681
    %v683 = vsel %vm673, nan, %v682
    %v684 = vand.u32 2147483647, %v32
    %vm685 = vcmp.le.f32.partialorder %v684, 0.7853982
    %vm686 = vcmp.lt.s32.totalorder %v32, 0
    %v687 = vand.u32 %v32, 2139095040
    %v688 = vshrl.u32 %v687, 23
    %v689 = vsub.s32 %v688, 127
    %v690 = vand.u32 2147483647, %v32
    %v691 = vand.u32 %v690, 8388607
    %v692 = vor.u32 %v691, 8388608
    %v693 = vsub.s32 0, %v692
    %v694 = vadd.s32 %v689, 1
    %vm695 = vcmp.gt.s32.totalorder %v694, 0
    %v696 = vsel %vm695, %v694, 0
    %v697 = vshrl.u32 %v696, 5
    %v698 = vand.u32 %v696, 31
    %v699 = vsub.s32 32, %v698
    %v700 = vshrl.u32 683565275, %v699
    %v701 = vshll.u32 683565275, %v698
    %v702 = vshrl.u32 2475754826, %v699
    %v703 = vor.u32 %v701, %v702
    %v704 = vshll.u32 2475754826, %v698
    %v705 = vshrl.u32 2131351028, %v699
    %v706 = vor.u32 %v704, %v705
    %v707 = vshll.u32 2131351028, %v698
    %v708 = vshrl.u32 2102212464, %v699
    %v709 = vor.u32 %v707, %v708
    %v710 = vshll.u32 2102212464, %v698
    %v711 = vshrl.u32 920167782, %v699
    %v712 = vor.u32 %v710, %v711
    %v713 = vshll.u32 920167782, %v698
    %v714 = vshrl.u32 1326507024, %v699
    %v715 = vor.u32 %v713, %v714
    %vm716 = vcmp.lt.s32.totalorder %v697, 1
    %vm717 = vcmp.lt.s32.totalorder %v697, 2
    %vm718 = vcmp.lt.s32.totalorder %v697, 3
    %vm719 = vcmp.lt.s32.totalorder %v697, 4
    %v720 = vsel %vm716, %v700, %v703
    %v721 = vsel %vm719, %v709, 2102212464
    %v722 = vsel %vm718, %v706, %v721
    %v723 = vsel %vm717, %v720, %v722
    %v724 = vsel %vm716, %v703, %v706
    %v725 = vsel %vm719, %v712, 920167782
    %v726 = vsel %vm718, %v709, %v725
    %v727 = vsel %vm717, %v724, %v726
    %v728 = vsel %vm716, %v706, %v709
    %v729 = vsel %vm719, %v715, 1326507024
    %v730 = vsel %vm718, %v712, %v729
    %v731 = vsel %vm717, %v728, %v730
    %v732 = vshll.u32 %v692, 8
    %v733 = vand.u32 %v732, 65535
    %v734 = vshrl.u32 %v732, 16
    %v735 = vand.u32 %v731, 65535
    %v736 = vshrl.u32 %v731, 16
    %v737 = vmul.u32 %v733, %v735
    %v738 = vmul.u32 %v733, %v736
    %v739 = vmul.u32 %v734, %v735
    %v740 = vmul.u32 %v734, %v736
    %v741 = vshll.u32 %v738, 16
    %v742 = vshrl.u32 %v738, 16
    %v743 = vshll.u32 %v739, 16
    %v744 = vshrl.u32 %v739, 16
    %vm745 = vc.u32 %v737, %v741
    %v746 = vsel %vm745, 1, 0
    %v747 = vadd.s32 %v737, %v741
    %v748 = vadd.s32 %v740, %v746
    %vm749 = vc.u32 %v747, %v743
    %v750 = vsel %vm749, 1, 0
    %v751 = vadd.s32 %v747, %v743
    %v752 = vadd.s32 %v748, %v750
    %v753 = vadd.s32 %v752, %v742
    %v754 = vadd.s32 %v753, %v744
    %v755 = vand.u32 %v732, 65535
    %v756 = vshrl.u32 %v732, 16
    %v757 = vand.u32 %v727, 65535
    %v758 = vshrl.u32 %v727, 16
    %v759 = vmul.u32 %v755, %v757
    %v760 = vmul.u32 %v755, %v758
    %v761 = vmul.u32 %v756, %v757
    %v762 = vmul.u32 %v756, %v758
    %v763 = vshll.u32 %v760, 16
    %v764 = vshrl.u32 %v760, 16
    %v765 = vshll.u32 %v761, 16
    %v766 = vshrl.u32 %v761, 16
    %vm767 = vc.u32 %v759, %v763
    %v768 = vsel %vm767, 1, 0
    %v769 = vadd.s32 %v759, %v763
    %v770 = vadd.s32 %v762, %v768
    %vm771 = vc.u32 %v769, %v765
    %v772 = vsel %vm771, 1, 0
    %v773 = vadd.s32 %v769, %v765
    %v774 = vadd.s32 %v770, %v772
    %v775 = vadd.s32 %v774, %v764
    %v776 = vadd.s32 %v775, %v766
    %v777 = vmul.u32 %v732, %v723
    %v778 = vadd.s32 %v754, %v773
    %vm779 = vc.u32 %v754, %v773
    %v780 = vadd.s32 %v776, 1
    %v781 = vsel %vm779, %v780, %v776
    %v782 = vadd.s32 %v777, %v781
    %v783 = vadd.s32 %v782, 536870912
    %v784 = vshrl.u32 %v783, 30
    %v785 = vshll.u32 %v784, 30
    %v786 = vsub.s32 %v782, %v785
    %vm787 = vcmp.lt.s32.totalorder %v786, 0
    %v788 = vsub.s32 0, %v786
    %v789 = vsel %vm787, %v788, %v786
    %v790 = vclz %v789
    %v791 = vsub.s32 %v790, 2
    %vm792 = vcmp.gt.s32.totalorder 0, %v791
    %v793 = vsel %vm792, 0, %v791
    %v794 = vsub.s32 32, %v793
    %v795 = vshll.u32 %v786, %v793
    %v796 = vshrl.u32 %v778, %v794
    %v797 = vor.u32 %v795, %v796
    %v798 = vsub.s32 4294967266, %v793
    %v799 = vadd.s32 %v798, 127
    %v800 = vshll.u32 %v799, 23
    %v801 = vor.u32 4788187, %v800
    %v802 = vand.u32 2147483647, %v801
    %v804 = vcvt.s32.f32 %v797
    %v805 = vmul.f32 %v804, %v802
    %v806 = vxor.u32 %v805, 2147483648
    %v807 = vsel %vm686, %v806, %v805
    %v808 = vsub.s32 4, %v784
    %v809 = vsel %vm686, %v808, %v784
    %v810 = vsel %vm685, %v32, %v807
    %v811 = vsel %vm685, 0, %v809
    %v812 = vmul.f32 %v810, %v810
    %v813 = vmul.f32 %v812, -0.001358992
    %v814 = vadd.f32 %v813, 0.041655596
    %v815 = vmul.f32 %v812, %v814
    %v816 = vadd.f32 %v815, -0.4999988
    %v817 = vmul.f32 %v812, %v816
    %v818 = vadd.f32 1.0, %v817
    %v819 = vmul.f32 %v810, %v810
    %v820 = vmul.f32 %v819, -0.00019511016
    %v821 = vadd.f32 %v820, 0.008332121
    %v822 = vmul.f32 %v819, %v821
    %v823 = vadd.f32 %v822, -0.16666654
    %v824 = vmul.f32 %v819, %v823
    %v825 = vadd.f32 %v824, 1.0
    %v826 = vmul.f32 %v825, %v810
    %vm827 = vweird.f32 %v32
    %v828 = vadd.s32 %v811, 3
    %v829 = vand.u32 %v828, 3
    %vm830 = vcmp.lt.s32.totalorder %v829, 2
    %vm831 = vcmp.eq.s32.totalorder %v829, 0
    %v832 = vxor.u32 %v826, 2147483648
    %v833 = vsel %vm831, %v818, %v832
    %vm834 = vcmp.eq.s32.totalorder %v829, 2
    %v835 = vxor.u32 %v818, 2147483648
    %v836 = vsel %vm834, %v835, %v826
    %v837 = vsel %vm830, %v833, %v836
    %v838 = vsel %vm827, nan, %v837
    %v839 = vand.u32 2147483647, %v33
    %vm840 = vcmp.le.f32.partialorder %v839, 0.7853982
    %vm841 = vcmp.lt.s32.totalorder %v33, 0
    %v842 = vand.u32 %v33, 2139095040
    %v843 = vshrl.u32 %v842, 23
    %v844 = vsub.s32 %v843, 127
    %v845 = vand.u32 2147483647, %v33
    %v846 = vand.u32 %v845, 8388607
    %v847 = vor.u32 %v846, 8388608
    %v848 = vsub.s32 0, %v847
    %v849 = vadd.s32 %v844, 1
    %vm850 = vcmp.gt.s32.totalorder %v849, 0
    %v851 = vsel %vm850, %v849, 0
    %v852 = vshrl.u32 %v851, 5
    %v853 = vand.u32 %v851, 31
    %v854 = vsub.s32 32, %v853
    %v855 = vshrl.u32 683565275, %v854
    %v856 = vshll.u32 683565275, %v853
    %v857 = vshrl.u32 2475754826, %v854
    %v858 = vor.u32 %v856, %v857
    %v859 = vshll.u32 2475754826, %v853
    %v860 = vshrl.u32 2131351028, %v854
    %v861 = vor.u32 %v859, %v860
    %v862 = vshll.u32 2131351028, %v853
    %v863 = vshrl.u32 2102212464, %v854
    %v864 = vor.u32 %v862, %v863
    %v865 = vshll.u32 2102212464, %v853
    %v866 = vshrl.u32 920167782, %v854
    %v867 = vor.u32 %v865, %v866
    %v868 = vshll.u32 920167782, %v853
    %v869 = vshrl.u32 1326507024, %v854
    %v870 = vor.u32 %v868, %v869
    %vm871 = vcmp.lt.s32.totalorder %v852, 1
    %vm872 = vcmp.lt.s32.totalorder %v852, 2
    %vm873 = vcmp.lt.s32.totalorder %v852, 3
    %vm874 = vcmp.lt.s32.totalorder %v852, 4
    %v875 = vsel %vm871, %v855, %v858
    %v876 = vsel %vm874, %v864, 2102212464
    %v877 = vsel %vm873, %v861, %v876
    %v878 = vsel %vm872, %v875, %v877
    %v879 = vsel %vm871, %v858, %v861
    %v880 = vsel %vm874, %v867, 920167782
    %v881 = vsel %vm873, %v864, %v880
    %v882 = vsel %vm872, %v879, %v881
    %v883 = vsel %vm871, %v861, %v864
    %v884 = vsel %vm874, %v870, 1326507024
    %v885 = vsel %vm873, %v867, %v884
    %v886 = vsel %vm872, %v883, %v885
    %v887 = vshll.u32 %v847, 8
    %v888 = vand.u32 %v887, 65535
    %v889 = vshrl.u32 %v887, 16
    %v890 = vand.u32 %v886, 65535
    %v891 = vshrl.u32 %v886, 16
    %v892 = vmul.u32 %v888, %v890
    %v893 = vmul.u32 %v888, %v891
    %v894 = vmul.u32 %v889, %v890
    %v895 = vmul.u32 %v889, %v891
    %v896 = vshll.u32 %v893, 16
    %v897 = vshrl.u32 %v893, 16
    %v898 = vshll.u32 %v894, 16
    %v899 = vshrl.u32 %v894, 16
    %vm900 = vc.u32 %v892, %v896
    %v901 = vsel %vm900, 1, 0
    %v902 = vadd.s32 %v892, %v896
    %v903 = vadd.s32 %v895, %v901
    %vm904 = vc.u32 %v902, %v898
    %v905 = vsel %vm904, 1, 0
    %v906 = vadd.s32 %v902, %v898
    %v907 = vadd.s32 %v903, %v905
    %v908 = vadd.s32 %v907, %v897
    %v909 = vadd.s32 %v908, %v899
    %v910 = vand.u32 %v887, 65535
    %v911 = vshrl.u32 %v887, 16
    %v912 = vand.u32 %v882, 65535
    %v913 = vshrl.u32 %v882, 16
    %v914 = vmul.u32 %v910, %v912
    %v915 = vmul.u32 %v910, %v913
    %v916 = vmul.u32 %v911, %v912
    %v917 = vmul.u32 %v911, %v913
    %v918 = vshll.u32 %v915, 16
    %v919 = vshrl.u32 %v915, 16
    %v920 = vshll.u32 %v916, 16
    %v921 = vshrl.u32 %v916, 16
    %vm922 = vc.u32 %v914, %v918
    %v923 = vsel %vm922, 1, 0
    %v924 = vadd.s32 %v914, %v918
    %v925 = vadd.s32 %v917, %v923
    %vm926 = vc.u32 %v924, %v920
    %v927 = vsel %vm926, 1, 0
    %v928 = vadd.s32 %v924, %v920
    %v929 = vadd.s32 %v925, %v927
    %v930 = vadd.s32 %v929, %v919
    %v931 = vadd.s32 %v930, %v921
    %v932 = vmul.u32 %v887, %v878
    %v933 = vadd.s32 %v909, %v928
    %vm934 = vc.u32 %v909, %v928
    %v935 = vadd.s32 %v931, 1
    %v936 = vsel %vm934, %v935, %v931
    %v937 = vadd.s32 %v932, %v936
    %v938 = vadd.s32 %v937, 536870912
    %v939 = vshrl.u32 %v938, 30
    %v940 = vshll.u32 %v939, 30
    %v941 = vsub.s32 %v937, %v940
    %vm942 = vcmp.lt.s32.totalorder %v941, 0
    %v943 = vsub.s32 0, %v941
    %v944 = vsel %vm942, %v943, %v941
    %v945 = vclz %v944
    %v946 = vsub.s32 %v945, 2
    %vm947 = vcmp.gt.s32.totalorder 0, %v946
    %v948 = vsel %vm947, 0, %v946
    %v949 = vsub.s32 32, %v948
    %v950 = vshll.u32 %v941, %v948
    %v951 = vshrl.u32 %v933, %v949
    %v952 = vor.u32 %v950, %v951
    %v953 = vsub.s32 4294967266, %v948
    %v954 = vadd.s32 %v953, 127
    %v955 = vshll.u32 %v954, 23
    %v956 = vor.u32 4788187, %v955
    %v957 = vand.u32 2147483647, %v956
    %v959 = vcvt.s32.f32 %v952
    %v960 = vmul.f32 %v959, %v957
    %v961 = vxor.u32 %v960, 2147483648
    %v962 = vsel %vm841, %v961, %v960
    %v963 = vsub.s32 4, %v939
    %v964 = vsel %vm841, %v963, %v939
    %v965 = vsel %vm840, %v33, %v962
    %v966 = vsel %vm840, 0, %v964
    %v967 = vmul.f32 %v965, %v965
    %v968 = vmul.f32 %v967, -0.001358992
    %v969 = vadd.f32 %v968, 0.041655596
    %v970 = vmul.f32 %v967, %v969
    %v971 = vadd.f32 %v970, -0.4999988
    %v972 = vmul.f32 %v967, %v971
    %v973 = vadd.f32 1.0, %v972
    %v974 = vmul.f32 %v965, %v965
    %v975 = vmul.f32 %v974, -0.00019511016
    %v976 = vadd.f32 %v975, 0.008332121
    %v977 = vmul.f32 %v974, %v976
    %v978 = vadd.f32 %v977, -0.16666654
    %v979 = vmul.f32 %v974, %v978
    %v980 = vadd.f32 %v979, 1.0
    %v981 = vmul.f32 %v980, %v965
    %vm982 = vweird.f32 %v33
    %v983 = vadd.s32 %v966, 3
    %v984 = vand.u32 %v983, 3
    %vm985 = vcmp.lt.s32.totalorder %v984, 2
    %vm986 = vcmp.eq.s32.totalorder %v984, 0
    %v987 = vxor.u32 %v981, 2147483648
    %v988 = vsel %vm986, %v973, %v987
    %vm989 = vcmp.eq.s32.totalorder %v984, 2
    %v990 = vxor.u32 %v973, 2147483648
    %v991 = vsel %vm989, %v990, %v981
    %v992 = vsel %vm985, %v988, %v991
    %v993 = vsel %vm982, nan, %v992
    %994 = vst [vmem:[#allocation5] sm:$0xff] 0.2820948
    %995 = vst [vmem:[#allocation5 + $0x8] sm:$0xff] 0.2820948
    %v996 = vmul.f32 %v191, 0.48860252
    %v997 = vmul.f32 %v345, 0.48860252
    %s998 = scalar_lea.vmem [#allocation5], 32
    %999 = vst [vmem:[%s998] sm:$0xff] %v996
    %1000 = vst [vmem:[%s998 + $0x8] sm:$0xff] %v997
    %v1001 = vmul.f32 %v191, 1.5
    %v1002 = vmul.f32 %v345, 1.5
    %v1003 = vmul.f32 %v1001, %v191
    %v1004 = vmul.f32 %v1002, %v345
    %v1005 = vsub.f32 %v1003, 0.5
    %v1006 = vsub.f32 %v1004, 0.5
    %v1007 = vmul.f32 %v1005, 0.63078314
    %v1008 = vmul.f32 %v1006, 0.63078314
    %s1009 = scalar_lea.vmem [#allocation5], 96
    %1010 = vst [vmem:[%s1009] sm:$0xff] %v1007
    %1011 = vst [vmem:[%s1009 + $0x8] sm:$0xff] %v1008
    %v1012 = vmul.f32 %v191, 1.6666666
    %v1013 = vmul.f32 %v345, 1.6666666
    %v1014 = vmul.f32 %v1012, %v1005
    %v1015 = vmul.f32 %v1013, %v1006
    %v1016 = vmul.f32 %v191, 0.6666667
    %v1017 = vmul.f32 %v345, 0.6666667
    %v1018 = vsub.f32 %v1014, %v1016
    %v1019 = vsub.f32 %v1015, %v1017
    %v1020 = vmul.f32 %v1018, 0.7463527
    %v1021 = vmul.f32 %v1019, 0.7463527
    %s1022 = scalar_lea.vmem [#allocation5], 192
    %1023 = vst [vmem:[%s1022] sm:$0xff] %v1020
    %1024 = vst [vmem:[%s1022 + $0x8] sm:$0xff] %v1021
    %v1025 = vmul.f32 %v191, 1.75
    %v1026 = vmul.f32 %v345, 1.75
    %v1027 = vmul.f32 %v1025, %v1018
    %v1028 = vmul.f32 %v1026, %v1019
    %v1029 = vmul.f32 %v1005, 0.75
    %v1030 = vmul.f32 %v1006, 0.75
    %v1031 = vsub.f32 %v1027, %v1029
    %v1032 = vsub.f32 %v1028, %v1030
    %v1033 = vmul.f32 %v1031, 0.8462844
    %v1034 = vmul.f32 %v1032, 0.8462844
    %s1035 = scalar_lea.vmem [#allocation5], 320
    %1036 = vst [vmem:[%s1035] sm:$0xff] %v1033
    %1037 = vst [vmem:[%s1035 + $0x8] sm:$0xff] %v1034
    %v1038 = vmul.f32 %v191, 1.8
    %v1039 = vmul.f32 %v345, 1.8
    %v1040 = vmul.f32 %v1038, %v1031
    %v1041 = vmul.f32 %v1039, %v1032
    %v1042 = vmul.f32 %v1018, 0.8
    %v1043 = vmul.f32 %v1019, 0.8
    %v1044 = vsub.f32 %v1040, %v1042
    %v1045 = vsub.f32 %v1041, %v1043
    %v1046 = vmul.f32 %v1044, 0.9356026
    %v1047 = vmul.f32 %v1045, 0.9356026
    %s1048 = scalar_lea.vmem [#allocation5], 480
    %1049 = vst [vmem:[%s1048] sm:$0xff] %v1046
    %1050 = vst [vmem:[%s1048 + $0x8] sm:$0xff] %v1047
    %v1051 = vmul.f32 %v191, 1.8333334
    %v1052 = vmul.f32 %v345, 1.8333334
    %v1053 = vmul.f32 %v1051, %v1044
    %v1054 = vmul.f32 %v1052, %v1045
    %v1055 = vmul.f32 %v1031, 0.8333333
    %v1056 = vmul.f32 %v1032, 0.8333333
    %v1057 = vsub.f32 %v1053, %v1055
    %v1058 = vsub.f32 %v1054, %v1056
    %v1059 = vmul.f32 %v1057, 1.0171072
    %v1060 = vmul.f32 %v1058, 1.0171072
    %s1061 = scalar_lea.vmem [#allocation5], 672
    %1062 = vst [vmem:[%s1061] sm:$0xff] %v1059
    %1063 = vst [vmem:[%s1061 + $0x8] sm:$0xff] %v1060
    %v1064 = vmul.f32 %v191, 1.8571428
    %v1065 = vmul.f32 %v345, 1.8571428
    %v1066 = vmul.f32 %v1064, %v1057
    %v1067 = vmul.f32 %v1065, %v1058
    %v1068 = vmul.f32 %v1044, 0.85714287
    %v1069 = vmul.f32 %v1045, 0.85714287
    %v1070 = vsub.f32 %v1066, %v1068
    %v1071 = vsub.f32 %v1067, %v1069
    %v1072 = vmul.f32 %v1070, 1.0925485
    %v1073 = vmul.f32 %v1071, 1.0925485
    %s1074 = scalar_lea.vmem [#allocation5], 896
    %1075 = vst [vmem:[%s1074] sm:$0xff] %v1072
    %1076 = vst [vmem:[%s1074 + $0x8] sm:$0xff] %v1073
    %v1077 = vmul.f32 %v191, 1.875
    %v1078 = vmul.f32 %v345, 1.875
    %v1079 = vmul.f32 %v1077, %v1070
    %v1080 = vmul.f32 %v1078, %v1071
    %v1081 = vmul.f32 %v1057, 0.875
    %v1082 = vmul.f32 %v1058, 0.875
    %v1083 = vsub.f32 %v1079, %v1081
    %v1084 = vsub.f32 %v1080, %v1082
    %v1085 = vmul.f32 %v1083, 1.1631067
    %v1086 = vmul.f32 %v1084, 1.1631067
    %s1087 = scalar_lea.vmem [#allocation5], 1152
    %1088 = vst [vmem:[%s1087] sm:$0xff] %v1085
    %1089 = vst [vmem:[%s1087 + $0x8] sm:$0xff] %v1086
    %v1090 = vmul.f32 %v191, 1.8888888
    %v1091 = vmul.f32 %v345, 1.8888888
    %v1092 = vmul.f32 %v1090, %v1083
    %v1093 = vmul.f32 %v1091, %v1084
    %v1094 = vmul.f32 %v1070, 0.8888889
    %v1095 = vmul.f32 %v1071, 0.8888889
    %v1096 = vsub.f32 %v1092, %v1094
    %v1097 = vsub.f32 %v1093, %v1095
    %v1098 = vmul.f32 %v1096, 1.2296227
    %v1099 = vmul.f32 %v1097, 1.2296227
    %s1100 = scalar_lea.vmem [#allocation5], 1440
    %1101 = vst [vmem:[%s1100] sm:$0xff] %v1098
    %1102 = vst [vmem:[%s1100 + $0x8] sm:$0xff] %v1099
    %v1103 = vmul.f32 %v363, -1.0
    %v1104 = vmul.f32 %v375, -1.0
    %v1105 = vmul.f32 %v529, 0.48860252
    %v1106 = vmul.f32 %v683, 0.48860252
    %v1107 = vmul.f32 %v1105, %v1103
    %v1108 = vmul.f32 %v1106, %v1104
    %s1109 = scalar_lea.vmem [#allocation5], 48
    %1110 = vst [vmem:[%s1109] sm:$0xff] %v1107
    %1111 = vst [vmem:[%s1109 + $0x8] sm:$0xff] %v1108
    %v1112 = vmul.f32 %v838, 0.48860252
    %v1113 = vmul.f32 %v993, 0.48860252
    %v1114 = vmul.f32 %v1112, %v1103
    %v1115 = vmul.f32 %v1113, %v1104
    %s1116 = scalar_lea.vmem [#allocation5], 16
    %1117 = vst [vmem:[%s1116] sm:$0xff] %v1114
    %1118 = vst [vmem:[%s1116 + $0x8] sm:$0xff] %v1115
    %v1119 = vmul.f32 %v191, 3.0
    %v1120 = vmul.f32 %v345, 3.0
    %v1121 = vmul.f32 %v1119, %v1103
    %v1122 = vmul.f32 %v1120, %v1104
    %v1123 = vmul.f32 %v529, 0.3641828
    %v1124 = vmul.f32 %v683, 0.3641828
    %v1125 = vmul.f32 %v1123, %v1121
    %v1126 = vmul.f32 %v1124, %v1122
    %s1127 = scalar_lea.vmem [#allocation5], 112
    %1128 = vst [vmem:[%s1127] sm:$0xff] %v1125
    %1129 = vst [vmem:[%s1127 + $0x8] sm:$0xff] %v1126
    %v1130 = vmul.f32 %v838, 0.3641828
    %v1131 = vmul.f32 %v993, 0.3641828
    %v1132 = vmul.f32 %v1130, %v1121
    %v1133 = vmul.f32 %v1131, %v1122
    %s1134 = scalar_lea.vmem [#allocation5], 80
    %1135 = vst [vmem:[%s1134] sm:$0xff] %v1132
    %1136 = vst [vmem:[%s1134 + $0x8] sm:$0xff] %v1133
    %v1137 = vmul.f32 %v191, 2.5
    %v1138 = vmul.f32 %v345, 2.5
    %v1139 = vmul.f32 %v1137, %v1121
    %v1140 = vmul.f32 %v1138, %v1122
    %v1141 = vmul.f32 %v1103, 1.5
    %v1142 = vmul.f32 %v1104, 1.5
    %v1143 = vsub.f32 %v1139, %v1141
    %v1144 = vsub.f32 %v1140, %v1142
    %v1145 = vmul.f32 %v529, 0.3046972
    %v1146 = vmul.f32 %v683, 0.3046972
    %v1147 = vmul.f32 %v1145, %v1143
    %v1148 = vmul.f32 %v1146, %v1144
    %s1149 = scalar_lea.vmem [#allocation5], 208
    %1150 = vst [vmem:[%s1149] sm:$0xff] %v1147
    %1151 = vst [vmem:[%s1149 + $0x8] sm:$0xff] %v1148
    %v1152 = vmul.f32 %v838, 0.3046972
    %v1153 = vmul.f32 %v993, 0.3046972
    %v1154 = vmul.f32 %v1152, %v1143
    %v1155 = vmul.f32 %v1153, %v1144
    %s1156 = scalar_lea.vmem [#allocation5], 176
    %1157 = vst [vmem:[%s1156] sm:$0xff] %v1154
    %1158 = vst [vmem:[%s1156 + $0x8] sm:$0xff] %v1155
    %v1159 = vmul.f32 %v191, 2.3333333
    %v1160 = vmul.f32 %v345, 2.3333333
    %v1161 = vmul.f32 %v1159, %v1143
    %v1162 = vmul.f32 %v1160, %v1144
    %v1163 = vmul.f32 %v1121, 1.3333334
    %v1164 = vmul.f32 %v1122, 1.3333334
    %v1165 = vsub.f32 %v1161, %v1163
    %v1166 = vsub.f32 %v1162, %v1164
    %v1167 = vmul.f32 %v529, 0.26761863
    %v1168 = vmul.f32 %v683, 0.26761863
    %v1169 = vmul.f32 %v1167, %v1165
    %v1170 = vmul.f32 %v1168, %v1166
    %s1171 = scalar_lea.vmem [#allocation5], 336
    %1172 = vst [vmem:[%s1171] sm:$0xff] %v1169
    %1173 = vst [vmem:[%s1171 + $0x8] sm:$0xff] %v1170
    %v1174 = vmul.f32 %v838, 0.26761863
    %v1175 = vmul.f32 %v993, 0.26761863
    %v1176 = vmul.f32 %v1174, %v1165
    %v1177 = vmul.f32 %v1175, %v1166
    %s1178 = scalar_lea.vmem [#allocation5], 304
    %1179 = vst [vmem:[%s1178] sm:$0xff] %v1176
    %1180 = vst [vmem:[%s1178 + $0x8] sm:$0xff] %v1177
    %v1181 = vmul.f32 %v191, 2.25
    %v1182 = vmul.f32 %v345, 2.25
    %v1183 = vmul.f32 %v1181, %v1165
    %v1184 = vmul.f32 %v1182, %v1166
    %v1185 = vmul.f32 %v1143, 1.25
    %v1186 = vmul.f32 %v1144, 1.25
    %v1187 = vsub.f32 %v1183, %v1185
    %v1188 = vsub.f32 %v1184, %v1186
    %v1189 = vmul.f32 %v529, 0.24157155
    %v1190 = vmul.f32 %v683, 0.24157155
    %v1191 = vmul.f32 %v1189, %v1187
    %v1192 = vmul.f32 %v1190, %v1188
    %s1193 = scalar_lea.vmem [#allocation5], 496
    %1194 = vst [vmem:[%s1193] sm:$0xff] %v1191
    %1195 = vst [vmem:[%s1193 + $0x8] sm:$0xff] %v1192
    %v1196 = vmul.f32 %v838, 0.24157155
    %v1197 = vmul.f32 %v993, 0.24157155
    %v1198 = vmul.f32 %v1196, %v1187
    %v1199 = vmul.f32 %v1197, %v1188
    %s1200 = scalar_lea.vmem [#allocation5], 464
    %1201 = vst [vmem:[%s1200] sm:$0xff] %v1198
    %1202 = vst [vmem:[%s1200 + $0x8] sm:$0xff] %v1199
    %v1203 = vmul.f32 %v191, 2.2
    %v1204 = vmul.f32 %v345, 2.2
    %v1205 = vmul.f32 %v1203, %v1187
    %v1206 = vmul.f32 %v1204, %v1188
    %v1207 = vmul.f32 %v1165, 1.2
    %v1208 = vmul.f32 %v1166, 1.2
    %v1209 = vsub.f32 %v1205, %v1207
    %v1210 = vsub.f32 %v1206, %v1208
    %v1211 = vmul.f32 %v529, 0.221951
    %v1212 = vmul.f32 %v683, 0.221951
    %v1213 = vmul.f32 %v1211, %v1209
    %v1214 = vmul.f32 %v1212, %v1210
    %s1215 = scalar_lea.vmem [#allocation5], 688
    %1216 = vst [vmem:[%s1215] sm:$0xff] %v1213
    %1217 = vst [vmem:[%s1215 + $0x8] sm:$0xff] %v1214
    %v1218 = vmul.f32 %v838, 0.221951
    %v1219 = vmul.f32 %v993, 0.221951
    %v1220 = vmul.f32 %v1218, %v1209
    %v1221 = vmul.f32 %v1219, %v1210
    %s1222 = scalar_lea.vmem [#allocation5], 656
    %1223 = vst [vmem:[%s1222] sm:$0xff] %v1220
    %1224 = vst [vmem:[%s1222 + $0x8] sm:$0xff] %v1221
    %v1225 = vmul.f32 %v191, 2.1666667
    %v1226 = vmul.f32 %v345, 2.1666667
    %v1227 = vmul.f32 %v1225, %v1209
    %v1228 = vmul.f32 %v1226, %v1210
    %v1229 = vmul.f32 %v1187, 1.1666666
    %v1230 = vmul.f32 %v1188, 1.1666666
    %v1231 = vsub.f32 %v1227, %v1229
    %v1232 = vsub.f32 %v1228, %v1230
    %v1233 = vmul.f32 %v529, 0.20647225
    %v1234 = vmul.f32 %v683, 0.20647225
    %v1235 = vmul.f32 %v1233, %v1231
    %v1236 = vmul.f32 %v1234, %v1232
    %s1237 = scalar_lea.vmem [#allocation5], 912
    %1238 = vst [vmem:[%s1237] sm:$0xff] %v1235
    %1239 = vst [vmem:[%s1237 + $0x8] sm:$0xff] %v1236
    %v1240 = vmul.f32 %v838, 0.20647225
    %v1241 = vmul.f32 %v993, 0.20647225
    %v1242 = vmul.f32 %v1240, %v1231
    %v1243 = vmul.f32 %v1241, %v1232
    %s1244 = scalar_lea.vmem [#allocation5], 880
    %1245 = vst [vmem:[%s1244] sm:$0xff] %v1242
    %1246 = vst [vmem:[%s1244 + $0x8] sm:$0xff] %v1243
    %v1247 = vmul.f32 %v191, 2.142857
    %v1248 = vmul.f32 %v345, 2.142857
    %v1249 = vmul.f32 %v1247, %v1231
    %v1250 = vmul.f32 %v1248, %v1232
    %v1251 = vmul.f32 %v1209, 1.1428572
    %v1252 = vmul.f32 %v1210, 1.1428572
    %v1253 = vsub.f32 %v1249, %v1251
    %v1254 = vsub.f32 %v1250, %v1252
    %v1255 = vmul.f32 %v529, 0.1938511
    %v1256 = vmul.f32 %v683, 0.1938511
    %v1257 = vmul.f32 %v1255, %v1253
    %v1258 = vmul.f32 %v1256, %v1254
    %s1259 = scalar_lea.vmem [#allocation5], 1168
    %1260 = vst [vmem:[%s1259] sm:$0xff] %v1257
    %1261 = vst [vmem:[%s1259 + $0x8] sm:$0xff] %v1258
    %v1262 = vmul.f32 %v838, 0.1938511
    %v1263 = vmul.f32 %v993, 0.1938511
    %v1264 = vmul.f32 %v1262, %v1253
    %v1265 = vmul.f32 %v1263, %v1254
    %s1266 = scalar_lea.vmem [#allocation5], 1136
    %1267 = vst [vmem:[%s1266] sm:$0xff] %v1264
    %1268 = vst [vmem:[%s1266 + $0x8] sm:$0xff] %v1265
    %v1269 = vmul.f32 %v191, 2.125
    %v1270 = vmul.f32 %v345, 2.125
    %v1271 = vmul.f32 %v1269, %v1253
    %v1272 = vmul.f32 %v1270, %v1254
    %v1273 = vmul.f32 %v1231, 1.125
    %v1274 = vmul.f32 %v1232, 1.125
    %v1275 = vsub.f32 %v1271, %v1273
    %v1276 = vsub.f32 %v1272, %v1274
    %v1277 = vmul.f32 %v529, 0.18330133
    %v1278 = vmul.f32 %v683, 0.18330133
    %v1279 = vmul.f32 %v1277, %v1275
    %v1280 = vmul.f32 %v1278, %v1276
    %s1281 = scalar_lea.vmem [#allocation5], 1456
    %1282 = vst [vmem:[%s1281] sm:$0xff] %v1279
    %1283 = vst [vmem:[%s1281 + $0x8] sm:$0xff] %v1280
    %v1284 = vmul.f32 %v838, 0.18330133
    %v1285 = vmul.f32 %v993, 0.18330133
    %v1286 = vmul.f32 %v1284, %v1275
    %v1287 = vmul.f32 %v1285, %v1276
    %s1288 = scalar_lea.vmem [#allocation5], 1424
    %1289 = vst [vmem:[%s1288] sm:$0xff] %v1286
    %1290 = vst [vmem:[%s1288 + $0x8] sm:$0xff] %v1287
    %v1291 = vmul.f32 %v529, 2.0
    %v1292 = vmul.f32 %v683, 2.0
    %v1293 = vmul.f32 %v1291, %v529
    %v1294 = vmul.f32 %v1292, %v683
    %v1295 = vsub.f32 %v1293, 1.0
    %v1296 = vsub.f32 %v1294, 1.0
    %v1297 = vmul.f32 %v1291, %v838
    %v1298 = vmul.f32 %v1292, %v993
    %v1299 = vmul.f32 %v1103, -3.0
    %v1300 = vmul.f32 %v1104, -3.0
    %v1301 = vmul.f32 %v1299, %v363
    %v1302 = vmul.f32 %v1300, %v375
    %v1303 = vmul.f32 %v1295, 0.1820914
    %v1304 = vmul.f32 %v1296, 0.1820914
    %v1305 = vmul.f32 %v1303, %v1301
    %v1306 = vmul.f32 %v1304, %v1302
    %s1307 = scalar_lea.vmem [#allocation5], 128
    %1308 = vst [vmem:[%s1307] sm:$0xff] %v1305
    %1309 = vst [vmem:[%s1307 + $0x8] sm:$0xff] %v1306
    %v1310 = vmul.f32 %v1297, 0.1820914
    %v1311 = vmul.f32 %v1298, 0.1820914
    %v1312 = vmul.f32 %v1310, %v1301
    %v1313 = vmul.f32 %v1311, %v1302
    %s1314 = scalar_lea.vmem [#allocation5], 64
    %1315 = vst [vmem:[%s1314] sm:$0xff] %v1312
    %1316 = vst [vmem:[%s1314 + $0x8] sm:$0xff] %v1313
    %v1317 = vmul.f32 %v191, 5.0
    %v1318 = vmul.f32 %v345, 5.0
    %v1319 = vmul.f32 %v1317, %v1301
    %v1320 = vmul.f32 %v1318, %v1302
    %v1321 = vmul.f32 %v1295, 0.09635372
    %v1322 = vmul.f32 %v1296, 0.09635372
    %v1323 = vmul.f32 %v1321, %v1319
    %v1324 = vmul.f32 %v1322, %v1320
    %s1325 = scalar_lea.vmem [#allocation5], 224
    %1326 = vst [vmem:[%s1325] sm:$0xff] %v1323
    %1327 = vst [vmem:[%s1325 + $0x8] sm:$0xff] %v1324
    %v1328 = vmul.f32 %v1297, 0.09635372
    %v1329 = vmul.f32 %v1298, 0.09635372
    %v1330 = vmul.f32 %v1328, %v1319
    %v1331 = vmul.f32 %v1329, %v1320
    %s1332 = scalar_lea.vmem [#allocation5], 160
    %1333 = vst [vmem:[%s1332] sm:$0xff] %v1330
    %1334 = vst [vmem:[%s1332 + $0x8] sm:$0xff] %v1331
    %v1335 = vmul.f32 %v191, 3.5
    %v1336 = vmul.f32 %v345, 3.5
    %v1337 = vmul.f32 %v1335, %v1319
    %v1338 = vmul.f32 %v1336, %v1320
    %v1339 = vmul.f32 %v1301, 2.5
    %v1340 = vmul.f32 %v1302, 2.5
    %v1341 = vsub.f32 %v1337, %v1339
    %v1342 = vsub.f32 %v1338, %v1340
    %v1343 = vmul.f32 %v1295, 0.063078314
    %v1344 = vmul.f32 %v1296, 0.063078314
    %v1345 = vmul.f32 %v1343, %v1341
    %v1346 = vmul.f32 %v1344, %v1342
    %s1347 = scalar_lea.vmem [#allocation5], 352
    %1348 = vst [vmem:[%s1347] sm:$0xff] %v1345
    %1349 = vst [vmem:[%s1347 + $0x8] sm:$0xff] %v1346
    %v1350 = vmul.f32 %v1297, 0.063078314
    %v1351 = vmul.f32 %v1298, 0.063078314
    %v1352 = vmul.f32 %v1350, %v1341
    %v1353 = vmul.f32 %v1351, %v1342
    %s1354 = scalar_lea.vmem [#allocation5], 288
    %1355 = vst [vmem:[%s1354] sm:$0xff] %v1352
    %1356 = vst [vmem:[%s1354 + $0x8] sm:$0xff] %v1353
    %v1357 = vmul.f32 %v1119, %v1341
    %v1358 = vmul.f32 %v1120, %v1342
    %v1359 = vmul.f32 %v1319, 2.0
    %v1360 = vmul.f32 %v1320, 2.0
    %v1361 = vsub.f32 %v1357, %v1359
    %v1362 = vsub.f32 %v1358, %v1360
    %v1363 = vmul.f32 %v1295, 0.045652732
    %v1364 = vmul.f32 %v1296, 0.045652732
    %v1365 = vmul.f32 %v1363, %v1361
    %v1366 = vmul.f32 %v1364, %v1362
    %s1367 = scalar_lea.vmem [#allocation5], 512
    %1368 = vst [vmem:[%s1367] sm:$0xff] %v1365
    %1369 = vst [vmem:[%s1367 + $0x8] sm:$0xff] %v1366
    %v1370 = vmul.f32 %v1297, 0.045652732
    %v1371 = vmul.f32 %v1298, 0.045652732
    %v1372 = vmul.f32 %v1370, %v1361
    %v1373 = vmul.f32 %v1371, %v1362
    %s1374 = scalar_lea.vmem [#allocation5], 448
    %1375 = vst [vmem:[%s1374] sm:$0xff] %v1372
    %1376 = vst [vmem:[%s1374 + $0x8] sm:$0xff] %v1373
    %v1377 = vmul.f32 %v191, 2.75
    %v1378 = vmul.f32 %v345, 2.75
    %v1379 = vmul.f32 %v1377, %v1361
    %v1380 = vmul.f32 %v1378, %v1362
    %v1381 = vmul.f32 %v1341, 1.75
    %v1382 = vmul.f32 %v1342, 1.75
    %v1383 = vsub.f32 %v1379, %v1381
    %v1384 = vsub.f32 %v1380, %v1382
    %v1385 = vmul.f32 %v1295, 0.035093535
    %v1386 = vmul.f32 %v1296, 0.035093535
    %v1387 = vmul.f32 %v1385, %v1383
    %v1388 = vmul.f32 %v1386, %v1384
    %s1389 = scalar_lea.vmem [#allocation5], 704
    %1390 = vst [vmem:[%s1389] sm:$0xff] %v1387
    %1391 = vst [vmem:[%s1389 + $0x8] sm:$0xff] %v1388
    %v1392 = vmul.f32 %v1297, 0.035093535
    %v1393 = vmul.f32 %v1298, 0.035093535
    %v1394 = vmul.f32 %v1392, %v1383
    %v1395 = vmul.f32 %v1393, %v1384
    %s1396 = scalar_lea.vmem [#allocation5], 640
    %1397 = vst [vmem:[%s1396] sm:$0xff] %v1394
    %1398 = vst [vmem:[%s1396 + $0x8] sm:$0xff] %v1395
    %v1399 = vmul.f32 %v191, 2.6
    %v1400 = vmul.f32 %v345, 2.6
    %v1401 = vmul.f32 %v1399, %v1383
    %v1402 = vmul.f32 %v1400, %v1384
    %v1403 = vmul.f32 %v1361, 1.6
    %v1404 = vmul.f32 %v1362, 1.6
    %v1405 = vsub.f32 %v1401, %v1403
    %v1406 = vsub.f32 %v1402, %v1404
    %v1407 = vmul.f32 %v1295, 0.028097313
    %v1408 = vmul.f32 %v1296, 0.028097313
    %v1409 = vmul.f32 %v1407, %v1405
    %v1410 = vmul.f32 %v1408, %v1406
    %s1411 = scalar_lea.vmem [#allocation5], 928
    %1412 = vst [vmem:[%s1411] sm:$0xff] %v1409
    %1413 = vst [vmem:[%s1411 + $0x8] sm:$0xff] %v1410
    %v1414 = vmul.f32 %v1297, 0.028097313
    %v1415 = vmul.f32 %v1298, 0.028097313
    %v1416 = vmul.f32 %v1414, %v1405
    %v1417 = vmul.f32 %v1415, %v1406
    %s1418 = scalar_lea.vmem [#allocation5], 864
    %1419 = vst [vmem:[%s1418] sm:$0xff] %v1416
    %1420 = vst [vmem:[%s1418 + $0x8] sm:$0xff] %v1417
    %v1421 = vmul.f32 %v1137, %v1405
    %v1422 = vmul.f32 %v1138, %v1406
    %v1423 = vmul.f32 %v1383, 1.5
    %v1424 = vmul.f32 %v1384, 1.5
    %v1425 = vsub.f32 %v1421, %v1423
    %v1426 = vsub.f32 %v1422, %v1424
    %v1427 = vmul.f32 %v1295, 0.023169639
    %v1428 = vmul.f32 %v1296, 0.023169639
    %v1429 = vmul.f32 %v1427, %v1425
    %v1430 = vmul.f32 %v1428, %v1426
    %s1431 = scalar_lea.vmem [#allocation5], 1184
    %1432 = vst [vmem:[%s1431] sm:$0xff] %v1429
    %1433 = vst [vmem:[%s1431 + $0x8] sm:$0xff] %v1430
    %v1434 = vmul.f32 %v1297, 0.023169639
    %v1435 = vmul.f32 %v1298, 0.023169639
    %v1436 = vmul.f32 %v1434, %v1425
    %v1437 = vmul.f32 %v1435, %v1426
    %s1438 = scalar_lea.vmem [#allocation5], 1120
    %1439 = vst [vmem:[%s1438] sm:$0xff] %v1436
    %1440 = vst [vmem:[%s1438 + $0x8] sm:$0xff] %v1437
    %v1441 = vmul.f32 %v191, 2.4285715
    %v1442 = vmul.f32 %v345, 2.4285715
    %v1443 = vmul.f32 %v1441, %v1425
    %v1444 = vmul.f32 %v1442, %v1426
    %v1445 = vmul.f32 %v1405, 1.4285715
    %v1446 = vmul.f32 %v1406, 1.4285715
    %v1447 = vsub.f32 %v1443, %v1445
    %v1448 = vsub.f32 %v1444, %v1446
    %v1449 = vmul.f32 %v1295, 0.019539988
    %v1450 = vmul.f32 %v1296, 0.019539988
    %v1451 = vmul.f32 %v1449, %v1447
    %v1452 = vmul.f32 %v1450, %v1448
    %s1453 = scalar_lea.vmem [#allocation5], 1472
    %1454 = vst [vmem:[%s1453] sm:$0xff] %v1451
    %1455 = vst [vmem:[%s1453 + $0x8] sm:$0xff] %v1452
    %v1456 = vmul.f32 %v1297, 0.019539988
    %v1457 = vmul.f32 %v1298, 0.019539988
    %v1458 = vmul.f32 %v1456, %v1447
    %v1459 = vmul.f32 %v1457, %v1448
    %s1460 = scalar_lea.vmem [#allocation5], 1408
    %1461 = vst [vmem:[%s1460] sm:$0xff] %v1458
    %1462 = vst [vmem:[%s1460 + $0x8] sm:$0xff] %v1459
    %v1463 = vmul.f32 %v1291, %v1295
    %v1464 = vmul.f32 %v1292, %v1296
    %v1465 = vsub.f32 %v1463, %v529
    %v1466 = vsub.f32 %v1464, %v683
    %v1467 = vmul.f32 %v1291, %v1297
    %v1468 = vmul.f32 %v1292, %v1298
    %v1469 = vsub.f32 %v1467, %v838
    %v1470 = vsub.f32 %v1468, %v993
    %v1471 = vmul.f32 %v1301, -5.0
    %v1472 = vmul.f32 %v1302, -5.0
    %v1473 = vmul.f32 %v1471, %v363
    %v1474 = vmul.f32 %v1472, %v375
    %v1475 = vmul.f32 %v1465, 0.039336238
    %v1476 = vmul.f32 %v1466, 0.039336238
    %v1477 = vmul.f32 %v1475, %v1473
    %v1478 = vmul.f32 %v1476, %v1474
    %s1479 = scalar_lea.vmem [#allocation5], 240
    %1480 = vst [vmem:[%s1479] sm:$0xff] %v1477
    %1481 = vst [vmem:[%s1479 + $0x8] sm:$0xff] %v1478
    %v1482 = vmul.f32 %v1469, 0.039336238
    %v1483 = vmul.f32 %v1470, 0.039336238
    %v1484 = vmul.f32 %v1482, %v1473
    %v1485 = vmul.f32 %v1483, %v1474
    %s1486 = scalar_lea.vmem [#allocation5], 144
    %1487 = vst [vmem:[%s1486] sm:$0xff] %v1484
    %1488 = vst [vmem:[%s1486 + $0x8] sm:$0xff] %v1485
    %v1489 = vmul.f32 %v191, 7.0
    %v1490 = vmul.f32 %v345, 7.0
    %v1491 = vmul.f32 %v1489, %v1473
    %v1492 = vmul.f32 %v1490, %v1474
    %v1493 = vmul.f32 %v1465, 0.016858388
    %v1494 = vmul.f32 %v1466, 0.016858388
    %v1495 = vmul.f32 %v1493, %v1491
    %v1496 = vmul.f32 %v1494, %v1492
    %s1497 = scalar_lea.vmem [#allocation5], 368
    %1498 = vst [vmem:[%s1497] sm:$0xff] %v1495
    %1499 = vst [vmem:[%s1497 + $0x8] sm:$0xff] %v1496
    %v1500 = vmul.f32 %v1469, 0.016858388
    %v1501 = vmul.f32 %v1470, 0.016858388
    %v1502 = vmul.f32 %v1500, %v1491
    %v1503 = vmul.f32 %v1501, %v1492
    %s1504 = scalar_lea.vmem [#allocation5], 272
    %1505 = vst [vmem:[%s1504] sm:$0xff] %v1502
    %1506 = vst [vmem:[%s1504 + $0x8] sm:$0xff] %v1503
    %v1507 = vmul.f32 %v191, 4.5
    %v1508 = vmul.f32 %v345, 4.5
    %v1509 = vmul.f32 %v1507, %v1491
    %v1510 = vmul.f32 %v1508, %v1492
    %v1511 = vmul.f32 %v1473, 3.5
    %v1512 = vmul.f32 %v1474, 3.5
    %v1513 = vsub.f32 %v1509, %v1511
    %v1514 = vsub.f32 %v1510, %v1512
    %v1515 = vmul.f32 %v1465, 0.009318825
    %v1516 = vmul.f32 %v1466, 0.009318825
    %v1517 = vmul.f32 %v1515, %v1513
    %v1518 = vmul.f32 %v1516, %v1514
    %s1519 = scalar_lea.vmem [#allocation5], 528
    %1520 = vst [vmem:[%s1519] sm:$0xff] %v1517
    %1521 = vst [vmem:[%s1519 + $0x8] sm:$0xff] %v1518
    %v1522 = vmul.f32 %v1469, 0.009318825
    %v1523 = vmul.f32 %v1470, 0.009318825
    %v1524 = vmul.f32 %v1522, %v1513
    %v1525 = vmul.f32 %v1523, %v1514
    %s1526 = scalar_lea.vmem [#allocation5], 432
    %1527 = vst [vmem:[%s1526] sm:$0xff] %v1524
    %1528 = vst [vmem:[%s1526 + $0x8] sm:$0xff] %v1525
    %v1529 = vmul.f32 %v191, 3.6666667
    %v1530 = vmul.f32 %v345, 3.6666667
    %v1531 = vmul.f32 %v1529, %v1513
    %v1532 = vmul.f32 %v1530, %v1514
    %v1533 = vmul.f32 %v1491, 2.6666667
    %v1534 = vmul.f32 %v1492, 2.6666667
    %v1535 = vsub.f32 %v1531, %v1533
    %v1536 = vsub.f32 %v1532, %v1534
    %v1537 = vmul.f32 %v1465, 0.0058489223
    %v1538 = vmul.f32 %v1466, 0.0058489223
    %v1539 = vmul.f32 %v1537, %v1535
    %v1540 = vmul.f32 %v1538, %v1536
    %s1541 = scalar_lea.vmem [#allocation5], 720
    %1542 = vst [vmem:[%s1541] sm:$0xff] %v1539
    %1543 = vst [vmem:[%s1541 + $0x8] sm:$0xff] %v1540
    %v1544 = vmul.f32 %v1469, 0.0058489223
    %v1545 = vmul.f32 %v1470, 0.0058489223
    %v1546 = vmul.f32 %v1544, %v1535
    %v1547 = vmul.f32 %v1545, %v1536
    %s1548 = scalar_lea.vmem [#allocation5], 624
    %1549 = vst [vmem:[%s1548] sm:$0xff] %v1546
    %1550 = vst [vmem:[%s1548 + $0x8] sm:$0xff] %v1547
    %v1551 = vmul.f32 %v191, 3.25
    %v1552 = vmul.f32 %v345, 3.25
    %v1553 = vmul.f32 %v1551, %v1535
    %v1554 = vmul.f32 %v1552, %v1536
    %v1555 = vmul.f32 %v1513, 2.25
    %v1556 = vmul.f32 %v1514, 2.25
    %v1557 = vsub.f32 %v1553, %v1555
    %v1558 = vsub.f32 %v1554, %v1556
    %v1559 = vmul.f32 %v1465, 0.0039735604
    %v1560 = vmul.f32 %v1466, 0.0039735604
    %v1561 = vmul.f32 %v1559, %v1557
    %v1562 = vmul.f32 %v1560, %v1558
    %s1563 = scalar_lea.vmem [#allocation5], 944
    %1564 = vst [vmem:[%s1563] sm:$0xff] %v1561
    %1565 = vst [vmem:[%s1563 + $0x8] sm:$0xff] %v1562
    %v1566 = vmul.f32 %v1469, 0.0039735604
    %v1567 = vmul.f32 %v1470, 0.0039735604
    %v1568 = vmul.f32 %v1566, %v1557
    %v1569 = vmul.f32 %v1567, %v1558
    %s1570 = scalar_lea.vmem [#allocation5], 848
    %1571 = vst [vmem:[%s1570] sm:$0xff] %v1568
    %1572 = vst [vmem:[%s1570 + $0x8] sm:$0xff] %v1569
    %v1573 = vmul.f32 %v1119, %v1557
    %v1574 = vmul.f32 %v1120, %v1558
    %v1575 = vmul.f32 %v1535, 2.0
    %v1576 = vmul.f32 %v1536, 2.0
    %v1577 = vsub.f32 %v1573, %v1575
    %v1578 = vsub.f32 %v1574, %v1576
    %v1579 = vmul.f32 %v1465, 0.0028519854
    %v1580 = vmul.f32 %v1466, 0.0028519854
    %v1581 = vmul.f32 %v1579, %v1577
    %v1582 = vmul.f32 %v1580, %v1578
    %s1583 = scalar_lea.vmem [#allocation5], 1200
    %1584 = vst [vmem:[%s1583] sm:$0xff] %v1581
    %1585 = vst [vmem:[%s1583 + $0x8] sm:$0xff] %v1582
    %v1586 = vmul.f32 %v1469, 0.0028519854
    %v1587 = vmul.f32 %v1470, 0.0028519854
    %v1588 = vmul.f32 %v1586, %v1577
    %v1589 = vmul.f32 %v1587, %v1578
    %s1590 = scalar_lea.vmem [#allocation5], 1104
    %1591 = vst [vmem:[%s1590] sm:$0xff] %v1588
    %1592 = vst [vmem:[%s1590 + $0x8] sm:$0xff] %v1589
    %v1593 = vmul.f32 %v191, 2.8333333
    %v1594 = vmul.f32 %v345, 2.8333333
    %v1595 = vmul.f32 %v1593, %v1577
    %v1596 = vmul.f32 %v1594, %v1578
    %v1597 = vmul.f32 %v1557, 1.8333334
    %v1598 = vmul.f32 %v1558, 1.8333334
    %v1599 = vsub.f32 %v1595, %v1597
    %v1600 = vsub.f32 %v1596, %v1598
    %v1601 = vmul.f32 %v1465, 0.0021319874
    %v1602 = vmul.f32 %v1466, 0.0021319874
    %v1603 = vmul.f32 %v1601, %v1599
    %v1604 = vmul.f32 %v1602, %v1600
    %s1605 = scalar_lea.vmem [#allocation5], 1488
    %1606 = vst [vmem:[%s1605] sm:$0xff] %v1603
    %1607 = vst [vmem:[%s1605 + $0x8] sm:$0xff] %v1604
    %v1608 = vmul.f32 %v1469, 0.0021319874
    %v1609 = vmul.f32 %v1470, 0.0021319874
    %v1610 = vmul.f32 %v1608, %v1599
    %v1611 = vmul.f32 %v1609, %v1600
    %s1612 = scalar_lea.vmem [#allocation5], 1392
    %1613 = vst [vmem:[%s1612] sm:$0xff] %v1610
    %1614 = vst [vmem:[%s1612 + $0x8] sm:$0xff] %v1611
    %v1615 = vmul.f32 %v1291, %v1465
    %v1616 = vmul.f32 %v1292, %v1466
    %v1617 = vsub.f32 %v1615, %v1295
    %v1618 = vsub.f32 %v1616, %v1296
    %v1619 = vmul.f32 %v1291, %v1469
    %v1620 = vmul.f32 %v1292, %v1470
    %v1621 = vsub.f32 %v1619, %v1297
    %v1622 = vsub.f32 %v1620, %v1298
    %v1623 = vmul.f32 %v1473, -7.0
    %v1624 = vmul.f32 %v1474, -7.0
    %v1625 = vmul.f32 %v1623, %v363
    %v1626 = vmul.f32 %v1624, %v375
    %v1627 = vmul.f32 %v1617, 0.00596034
    %v1628 = vmul.f32 %v1618, 0.00596034
    %v1629 = vmul.f32 %v1627, %v1625
    %v1630 = vmul.f32 %v1628, %v1626
    %s1631 = scalar_lea.vmem [#allocation5], 384
    %1632 = vst [vmem:[%s1631] sm:$0xff] %v1629
    %1633 = vst [vmem:[%s1631 + $0x8] sm:$0xff] %v1630
    %v1634 = vmul.f32 %v1621, 0.00596034
    %v1635 = vmul.f32 %v1622, 0.00596034
    %v1636 = vmul.f32 %v1634, %v1625
    %v1637 = vmul.f32 %v1635, %v1626
    %s1638 = scalar_lea.vmem [#allocation5], 256
    %1639 = vst [vmem:[%s1638] sm:$0xff] %v1636
    %1640 = vst [vmem:[%s1638 + $0x8] sm:$0xff] %v1637
    %v1641 = vmul.f32 %v191, 9.0
    %v1642 = vmul.f32 %v345, 9.0
    %v1643 = vmul.f32 %v1641, %v1625
    %v1644 = vmul.f32 %v1642, %v1626
    %v1645 = vmul.f32 %v1617, 0.002196468
    %v1646 = vmul.f32 %v1618, 0.002196468
    %v1647 = vmul.f32 %v1645, %v1643
    %v1648 = vmul.f32 %v1646, %v1644
    %s1649 = scalar_lea.vmem [#allocation5], 544
    %1650 = vst [vmem:[%s1649] sm:$0xff] %v1647
    %1651 = vst [vmem:[%s1649 + $0x8] sm:$0xff] %v1648
    %v1652 = vmul.f32 %v1621, 0.002196468
    %v1653 = vmul.f32 %v1622, 0.002196468
    %v1654 = vmul.f32 %v1652, %v1643
    %v1655 = vmul.f32 %v1653, %v1644
    %s1656 = scalar_lea.vmem [#allocation5], 416
    %1657 = vst [vmem:[%s1656] sm:$0xff] %v1654
    %1658 = vst [vmem:[%s1656 + $0x8] sm:$0xff] %v1655
    %v1659 = vmul.f32 %v191, 5.5
    %v1660 = vmul.f32 %v345, 5.5
    %v1661 = vmul.f32 %v1659, %v1643
    %v1662 = vmul.f32 %v1660, %v1644
    %v1663 = vmul.f32 %v1625, 4.5
    %v1664 = vmul.f32 %v1626, 4.5
    %v1665 = vsub.f32 %v1661, %v1663
    %v1666 = vsub.f32 %v1662, %v1664
    %v1667 = vmul.f32 %v1617, 0.0010678623
    %v1668 = vmul.f32 %v1618, 0.0010678623
    %v1669 = vmul.f32 %v1667, %v1665
    %v1670 = vmul.f32 %v1668, %v1666
    %s1671 = scalar_lea.vmem [#allocation5], 736
    %1672 = vst [vmem:[%s1671] sm:$0xff] %v1669
    %1673 = vst [vmem:[%s1671 + $0x8] sm:$0xff] %v1670
    %v1674 = vmul.f32 %v1621, 0.0010678623
    %v1675 = vmul.f32 %v1622, 0.0010678623
    %v1676 = vmul.f32 %v1674, %v1665
    %v1677 = vmul.f32 %v1675, %v1666
    %s1678 = scalar_lea.vmem [#allocation5], 608
    %1679 = vst [vmem:[%s1678] sm:$0xff] %v1676
    %1680 = vst [vmem:[%s1678 + $0x8] sm:$0xff] %v1677
    %v1681 = vmul.f32 %v191, 4.3333335
    %v1682 = vmul.f32 %v345, 4.3333335
    %v1683 = vmul.f32 %v1681, %v1665
    %v1684 = vmul.f32 %v1682, %v1666
    %v1685 = vmul.f32 %v1643, 3.3333333
    %v1686 = vmul.f32 %v1644, 3.3333333
    %v1687 = vsub.f32 %v1683, %v1685
    %v1688 = vsub.f32 %v1684, %v1686
    %v1689 = vmul.f32 %v1617, 0.00059903675
    %v1690 = vmul.f32 %v1618, 0.00059903675
    %v1691 = vmul.f32 %v1689, %v1687
    %v1692 = vmul.f32 %v1690, %v1688
    %s1693 = scalar_lea.vmem [#allocation5], 960
    %1694 = vst [vmem:[%s1693] sm:$0xff] %v1691
    %1695 = vst [vmem:[%s1693 + $0x8] sm:$0xff] %v1692
    %v1696 = vmul.f32 %v1621, 0.00059903675
    %v1697 = vmul.f32 %v1622, 0.00059903675
    %v1698 = vmul.f32 %v1696, %v1687
    %v1699 = vmul.f32 %v1697, %v1688
    %s1700 = scalar_lea.vmem [#allocation5], 832
    %1701 = vst [vmem:[%s1700] sm:$0xff] %v1698
    %1702 = vst [vmem:[%s1700 + $0x8] sm:$0xff] %v1699
    %v1703 = vmul.f32 %v191, 3.75
    %v1704 = vmul.f32 %v345, 3.75
    %v1705 = vmul.f32 %v1703, %v1687
    %v1706 = vmul.f32 %v1704, %v1688
    %v1707 = vmul.f32 %v1665, 2.75
    %v1708 = vmul.f32 %v1666, 2.75
    %v1709 = vsub.f32 %v1705, %v1707
    %v1710 = vsub.f32 %v1706, %v1708
    %v1711 = vmul.f32 %v1617, 0.00036818974
    %v1712 = vmul.f32 %v1618, 0.00036818974
    %v1713 = vmul.f32 %v1711, %v1709
    %v1714 = vmul.f32 %v1712, %v1710
    %s1715 = scalar_lea.vmem [#allocation5], 1216
    %1716 = vst [vmem:[%s1715] sm:$0xff] %v1713
    %1717 = vst [vmem:[%s1715 + $0x8] sm:$0xff] %v1714
    %v1718 = vmul.f32 %v1621, 0.00036818974
    %v1719 = vmul.f32 %v1622, 0.00036818974
    %v1720 = vmul.f32 %v1718, %v1709
    %v1721 = vmul.f32 %v1719, %v1710
    %s1722 = scalar_lea.vmem [#allocation5], 1088
    %1723 = vst [vmem:[%s1722] sm:$0xff] %v1720
    %1724 = vst [vmem:[%s1722 + $0x8] sm:$0xff] %v1721
    %v1725 = vmul.f32 %v191, 3.4
    %v1726 = vmul.f32 %v345, 3.4
    %v1727 = vmul.f32 %v1725, %v1709
    %v1728 = vmul.f32 %v1726, %v1710
    %v1729 = vmul.f32 %v1687, 2.4
    %v1730 = vmul.f32 %v1688, 2.4
    %v1731 = vsub.f32 %v1727, %v1729
    %v1732 = vsub.f32 %v1728, %v1730
    %v1733 = vmul.f32 %v1617, 0.00024140003
    %v1734 = vmul.f32 %v1618, 0.00024140003
    %v1735 = vmul.f32 %v1733, %v1731
    %v1736 = vmul.f32 %v1734, %v1732
    %s1737 = scalar_lea.vmem [#allocation5], 1504
    %1738 = vst [vmem:[%s1737] sm:$0xff] %v1735
    %1739 = vst [vmem:[%s1737 + $0x8] sm:$0xff] %v1736
    %v1740 = vmul.f32 %v1621, 0.00024140003
    %v1741 = vmul.f32 %v1622, 0.00024140003
    %v1742 = vmul.f32 %v1740, %v1731
    %v1743 = vmul.f32 %v1741, %v1732
    %s1744 = scalar_lea.vmem [#allocation5], 1376
    %1745 = vst [vmem:[%s1744] sm:$0xff] %v1742
    %1746 = vst [vmem:[%s1744 + $0x8] sm:$0xff] %v1743
    %v1747 = vmul.f32 %v1291, %v1617
    %v1748 = vmul.f32 %v1292, %v1618
    %v1749 = vsub.f32 %v1747, %v1465
    %v1750 = vsub.f32 %v1748, %v1466
    %v1751 = vmul.f32 %v1291, %v1621
    %v1752 = vmul.f32 %v1292, %v1622
    %v1753 = vsub.f32 %v1751, %v1469
    %v1754 = vsub.f32 %v1752, %v1470
    %v1755 = vmul.f32 %v1625, -9.0
    %v1756 = vmul.f32 %v1626, -9.0
    %v1757 = vmul.f32 %v1755, %v363
    %v1758 = vmul.f32 %v1756, %v375
    %v1759 = vmul.f32 %v1749, 0.00069458416
    %v1760 = vmul.f32 %v1750, 0.00069458416
    %v1761 = vmul.f32 %v1759, %v1757
    %v1762 = vmul.f32 %v1760, %v1758
    %s1763 = scalar_lea.vmem [#allocation5], 560
    %1764 = vst [vmem:[%s1763] sm:$0xff] %v1761
    %1765 = vst [vmem:[%s1763 + $0x8] sm:$0xff] %v1762
    %v1766 = vmul.f32 %v1753, 0.00069458416
    %v1767 = vmul.f32 %v1754, 0.00069458416
    %v1768 = vmul.f32 %v1766, %v1757
    %v1769 = vmul.f32 %v1767, %v1758
    %s1770 = scalar_lea.vmem [#allocation5], 400
    %1771 = vst [vmem:[%s1770] sm:$0xff] %v1768
    %1772 = vst [vmem:[%s1770 + $0x8] sm:$0xff] %v1769
    %v1773 = vmul.f32 %v191, 11.0
    %v1774 = vmul.f32 %v345, 11.0
    %v1775 = vmul.f32 %v1773, %v1757
    %v1776 = vmul.f32 %v1774, %v1758
    %v1777 = vmul.f32 %v1749, 0.00022766899
    %v1778 = vmul.f32 %v1750, 0.00022766899
    %v1779 = vmul.f32 %v1777, %v1775
    %v1780 = vmul.f32 %v1778, %v1776
    %s1781 = scalar_lea.vmem [#allocation5], 752
    %1782 = vst [vmem:[%s1781] sm:$0xff] %v1779
    %1783 = vst [vmem:[%s1781 + $0x8] sm:$0xff] %v1780
    %v1784 = vmul.f32 %v1753, 0.00022766899
    %v1785 = vmul.f32 %v1754, 0.00022766899
    %v1786 = vmul.f32 %v1784, %v1775
    %v1787 = vmul.f32 %v1785, %v1776
    %s1788 = scalar_lea.vmem [#allocation5], 592
    %1789 = vst [vmem:[%s1788] sm:$0xff] %v1786
    %1790 = vst [vmem:[%s1788 + $0x8] sm:$0xff] %v1787
    %v1791 = vmul.f32 %v191, 6.5
    %v1792 = vmul.f32 %v345, 6.5
    %v1793 = vmul.f32 %v1791, %v1775
    %v1794 = vmul.f32 %v1792, %v1776
    %v1795 = vmul.f32 %v1757, 5.5
    %v1796 = vmul.f32 %v1758, 5.5
    %v1797 = vsub.f32 %v1793, %v1795
    %v1798 = vsub.f32 %v1794, %v1796
    %v1799 = vmul.f32 %v1749, 9.983946e-05
    %v1800 = vmul.f32 %v1750, 9.983946e-05
    %v1801 = vmul.f32 %v1799, %v1797
    %v1802 = vmul.f32 %v1800, %v1798
    %s1803 = scalar_lea.vmem [#allocation5], 976
    %1804 = vst [vmem:[%s1803] sm:$0xff] %v1801
    %1805 = vst [vmem:[%s1803 + $0x8] sm:$0xff] %v1802
    %v1806 = vmul.f32 %v1753, 9.983946e-05
    %v1807 = vmul.f32 %v1754, 9.983946e-05
    %v1808 = vmul.f32 %v1806, %v1797
    %v1809 = vmul.f32 %v1807, %v1798
    %s1810 = scalar_lea.vmem [#allocation5], 816
    %1811 = vst [vmem:[%s1810] sm:$0xff] %v1808
    %1812 = vst [vmem:[%s1810 + $0x8] sm:$0xff] %v1809
    %v1813 = vmul.f32 %v1317, %v1797
    %v1814 = vmul.f32 %v1318, %v1798
    %v1815 = vmul.f32 %v1775, 4.0
    %v1816 = vmul.f32 %v1776, 4.0
    %v1817 = vsub.f32 %v1813, %v1815
    %v1818 = vsub.f32 %v1814, %v1816
    %v1819 = vmul.f32 %v1749, 5.1058727e-05
    %v1820 = vmul.f32 %v1750, 5.1058727e-05
    %v1821 = vmul.f32 %v1819, %v1817
    %v1822 = vmul.f32 %v1820, %v1818
    %s1823 = scalar_lea.vmem [#allocation5], 1232
    %1824 = vst [vmem:[%s1823] sm:$0xff] %v1821
    %1825 = vst [vmem:[%s1823 + $0x8] sm:$0xff] %v1822
    %v1826 = vmul.f32 %v1753, 5.1058727e-05
    %v1827 = vmul.f32 %v1754, 5.1058727e-05
    %v1828 = vmul.f32 %v1826, %v1817
    %v1829 = vmul.f32 %v1827, %v1818
    %s1830 = scalar_lea.vmem [#allocation5], 1072
    %1831 = vst [vmem:[%s1830] sm:$0xff] %v1828
    %1832 = vst [vmem:[%s1830 + $0x8] sm:$0xff] %v1829
    %v1833 = vmul.f32 %v191, 4.25
    %v1834 = vmul.f32 %v345, 4.25
    %v1835 = vmul.f32 %v1833, %v1817
    %v1836 = vmul.f32 %v1834, %v1818
    %v1837 = vmul.f32 %v1797, 3.25
    %v1838 = vmul.f32 %v1798, 3.25
    %v1839 = vsub.f32 %v1835, %v1837
    %v1840 = vsub.f32 %v1836, %v1838
    %v1841 = vmul.f32 %v1749, 2.8852823e-05
    %v1842 = vmul.f32 %v1750, 2.8852823e-05
    %v1843 = vmul.f32 %v1841, %v1839
    %v1844 = vmul.f32 %v1842, %v1840
    %s1845 = scalar_lea.vmem [#allocation5], 1520
    %1846 = vst [vmem:[%s1845] sm:$0xff] %v1843
    %1847 = vst [vmem:[%s1845 + $0x8] sm:$0xff] %v1844
    %v1848 = vmul.f32 %v1753, 2.8852823e-05
    %v1849 = vmul.f32 %v1754, 2.8852823e-05
    %v1850 = vmul.f32 %v1848, %v1839
    %v1851 = vmul.f32 %v1849, %v1840
    %s1852 = scalar_lea.vmem [#allocation5], 1360
    %1853 = vst [vmem:[%s1852] sm:$0xff] %v1850
    %1854 = vst [vmem:[%s1852 + $0x8] sm:$0xff] %v1851
    %v1855 = vmul.f32 %v1291, %v1749
    %v1856 = vmul.f32 %v1292, %v1750
    %v1857 = vsub.f32 %v1855, %v1617
    %v1858 = vsub.f32 %v1856, %v1618
    %v1859 = vmul.f32 %v1291, %v1753
    %v1860 = vmul.f32 %v1292, %v1754
    %v1861 = vsub.f32 %v1859, %v1621
    %v1862 = vsub.f32 %v1860, %v1622
    %v1863 = vmul.f32 %v1757, -11.0
    %v1864 = vmul.f32 %v1758, -11.0
    %v1865 = vmul.f32 %v1863, %v363
    %v1866 = vmul.f32 %v1864, %v375
    %v1867 = vmul.f32 %v1857, 6.572238e-05
    %v1868 = vmul.f32 %v1858, 6.572238e-05
    %v1869 = vmul.f32 %v1867, %v1865
    %v1870 = vmul.f32 %v1868, %v1866
    %s1871 = scalar_lea.vmem [#allocation5], 768
    %1872 = vst [vmem:[%s1871] sm:$0xff] %v1869
    %1873 = vst [vmem:[%s1871 + $0x8] sm:$0xff] %v1870
    %v1874 = vmul.f32 %v1861, 6.572238e-05
    %v1875 = vmul.f32 %v1862, 6.572238e-05
    %v1876 = vmul.f32 %v1874, %v1865
    %v1877 = vmul.f32 %v1875, %v1866
    %s1878 = scalar_lea.vmem [#allocation5], 576
    %1879 = vst [vmem:[%s1878] sm:$0xff] %v1876
    %1880 = vst [vmem:[%s1878 + $0x8] sm:$0xff] %v1877
    %v1881 = vmul.f32 %v191, 13.0
    %v1882 = vmul.f32 %v345, 13.0
    %v1883 = vmul.f32 %v1881, %v1865
    %v1884 = vmul.f32 %v1882, %v1866
    %v1885 = vmul.f32 %v1857, 1.9580128e-05
    %v1886 = vmul.f32 %v1858, 1.9580128e-05
    %v1887 = vmul.f32 %v1885, %v1883
    %v1888 = vmul.f32 %v1886, %v1884
    %s1889 = scalar_lea.vmem [#allocation5], 992
    %1890 = vst [vmem:[%s1889] sm:$0xff] %v1887
    %1891 = vst [vmem:[%s1889 + $0x8] sm:$0xff] %v1888
    %v1892 = vmul.f32 %v1861, 1.9580128e-05
    %v1893 = vmul.f32 %v1862, 1.9580128e-05
    %v1894 = vmul.f32 %v1892, %v1883
    %v1895 = vmul.f32 %v1893, %v1884
    %s1896 = scalar_lea.vmem [#allocation5], 800
    %1897 = vst [vmem:[%s1896] sm:$0xff] %v1894
    %1898 = vst [vmem:[%s1896 + $0x8] sm:$0xff] %v1895
    %v1899 = vmul.f32 %v191, 7.5
    %v1900 = vmul.f32 %v345, 7.5
    %v1901 = vmul.f32 %v1899, %v1883
    %v1902 = vmul.f32 %v1900, %v1884
    %v1903 = vmul.f32 %v1865, 6.5
    %v1904 = vmul.f32 %v1866, 6.5
    %v1905 = vsub.f32 %v1901, %v1903
    %v1906 = vsub.f32 %v1902, %v1904
    %v1907 = vmul.f32 %v1857, 7.878532e-06
    %v1908 = vmul.f32 %v1858, 7.878532e-06
    %v1909 = vmul.f32 %v1907, %v1905
    %v1910 = vmul.f32 %v1908, %v1906
    %s1911 = scalar_lea.vmem [#allocation5], 1248
    %1912 = vst [vmem:[%s1911] sm:$0xff] %v1909
    %1913 = vst [vmem:[%s1911 + $0x8] sm:$0xff] %v1910
    %v1914 = vmul.f32 %v1861, 7.878532e-06
    %v1915 = vmul.f32 %v1862, 7.878532e-06
    %v1916 = vmul.f32 %v1914, %v1905
    %v1917 = vmul.f32 %v1915, %v1906
    %s1918 = scalar_lea.vmem [#allocation5], 1056
    %1919 = vst [vmem:[%s1918] sm:$0xff] %v1916
    %1920 = vst [vmem:[%s1918 + $0x8] sm:$0xff] %v1917
    %v1921 = vmul.f32 %v191, 5.6666665
    %v1922 = vmul.f32 %v345, 5.6666665
    %v1923 = vmul.f32 %v1921, %v1905
    %v1924 = vmul.f32 %v1922, %v1906
    %v1925 = vmul.f32 %v1883, 4.6666665
    %v1926 = vmul.f32 %v1884, 4.6666665
    %v1927 = vsub.f32 %v1923, %v1925
    %v1928 = vsub.f32 %v1924, %v1926
    %v1929 = vmul.f32 %v1857, 3.7248835e-06
    %v1930 = vmul.f32 %v1858, 3.7248835e-06
    %v1931 = vmul.f32 %v1929, %v1927
    %v1932 = vmul.f32 %v1930, %v1928
    %s1933 = scalar_lea.vmem [#allocation5], 1536
    %1934 = vst [vmem:[%s1933] sm:$0xff] %v1931
    %1935 = vst [vmem:[%s1933 + $0x8] sm:$0xff] %v1932
    %v1936 = vmul.f32 %v1861, 3.7248835e-06
    %v1937 = vmul.f32 %v1862, 3.7248835e-06
    %v1938 = vmul.f32 %v1936, %v1927
    %v1939 = vmul.f32 %v1937, %v1928
    %s1940 = scalar_lea.vmem [#allocation5], 1344
    %1941 = vst [vmem:[%s1940] sm:$0xff] %v1938
    %1942 = vst [vmem:[%s1940 + $0x8] sm:$0xff] %v1939
    %v1943 = vmul.f32 %v1291, %v1857
    %v1944 = vmul.f32 %v1292, %v1858
    %v1945 = vsub.f32 %v1943, %v1749
    %v1946 = vsub.f32 %v1944, %v1750
    %v1947 = vmul.f32 %v1291, %v1861
    %v1948 = vmul.f32 %v1292, %v1862
    %v1949 = vsub.f32 %v1947, %v1753
    %v1950 = vsub.f32 %v1948, %v1754
    %v1951 = vmul.f32 %v1865, -13.0
    %v1952 = vmul.f32 %v1866, -13.0
    %v1953 = vmul.f32 %v1951, %v363
    %v1954 = vmul.f32 %v1952, %v375
    %v1955 = vmul.f32 %v1945, 5.2330092e-06
    %v1956 = vmul.f32 %v1946, 5.2330092e-06
    %v1957 = vmul.f32 %v1955, %v1953
    %v1958 = vmul.f32 %v1956, %v1954
    %s1959 = scalar_lea.vmem [#allocation5], 1008
    %1960 = vst [vmem:[%s1959] sm:$0xff] %v1957
    %1961 = vst [vmem:[%s1959 + $0x8] sm:$0xff] %v1958
    %v1962 = vmul.f32 %v1949, 5.2330092e-06
    %v1963 = vmul.f32 %v1950, 5.2330092e-06
    %v1964 = vmul.f32 %v1962, %v1953
    %v1965 = vmul.f32 %v1963, %v1954
    %s1966 = scalar_lea.vmem [#allocation5], 784
    %1967 = vst [vmem:[%s1966] sm:$0xff] %v1964
    %1968 = vst [vmem:[%s1966 + $0x8] sm:$0xff] %v1965
    %v1969 = vmul.f32 %v191, 15.0
    %v1970 = vmul.f32 %v345, 15.0
    %v1971 = vmul.f32 %v1969, %v1953
    %v1972 = vmul.f32 %v1970, %v1954
    %v1973 = vmul.f32 %v1945, 1.4384167e-06
    %v1974 = vmul.f32 %v1946, 1.4384167e-06
    %v1975 = vmul.f32 %v1973, %v1971
    %v1976 = vmul.f32 %v1974, %v1972
    %s1977 = scalar_lea.vmem [#allocation5], 1264
    %1978 = vst [vmem:[%s1977] sm:$0xff] %v1975
    %1979 = vst [vmem:[%s1977 + $0x8] sm:$0xff] %v1976
    %v1980 = vmul.f32 %v1949, 1.4384167e-06
    %v1981 = vmul.f32 %v1950, 1.4384167e-06
    %v1982 = vmul.f32 %v1980, %v1971
    %v1983 = vmul.f32 %v1981, %v1972
    %s1984 = scalar_lea.vmem [#allocation5], 1040
    %1985 = vst [vmem:[%s1984] sm:$0xff] %v1982
    %1986 = vst [vmem:[%s1984 + $0x8] sm:$0xff] %v1983
    %v1987 = vmul.f32 %v191, 8.5
    %v1988 = vmul.f32 %v345, 8.5
    %v1989 = vmul.f32 %v1987, %v1971
    %v1990 = vmul.f32 %v1988, %v1972
    %v1991 = vmul.f32 %v1953, 7.5
    %v1992 = vmul.f32 %v1954, 7.5
    %v1993 = vsub.f32 %v1989, %v1991
    %v1994 = vsub.f32 %v1990, %v1992
    %v1995 = vmul.f32 %v1945, 5.3764063e-07
    %v1996 = vmul.f32 %v1946, 5.3764063e-07
    %v1997 = vmul.f32 %v1995, %v1993
    %v1998 = vmul.f32 %v1996, %v1994
    %s1999 = scalar_lea.vmem [#allocation5], 1552
    %2000 = vst [vmem:[%s1999] sm:$0xff] %v1997
    %2001 = vst [vmem:[%s1999 + $0x8] sm:$0xff] %v1998
    %v2002 = vmul.f32 %v1949, 5.3764063e-07
    %v2003 = vmul.f32 %v1950, 5.3764063e-07
    %v2004 = vmul.f32 %v2002, %v1993
    %v2005 = vmul.f32 %v2003, %v1994
    %s2006 = scalar_lea.vmem [#allocation5], 1328
    %2007 = vst [vmem:[%s2006] sm:$0xff] %v2004
    %2008 = vst [vmem:[%s2006 + $0x8] sm:$0xff] %v2005
    %v2009 = vmul.f32 %v1291, %v1945
    %v2010 = vmul.f32 %v1292, %v1946
    %v2011 = vsub.f32 %v2009, %v1857
    %v2012 = vsub.f32 %v2010, %v1858
    %v2013 = vmul.f32 %v1291, %v1949
    %v2014 = vmul.f32 %v1292, %v1950
    %v2015 = vsub.f32 %v2013, %v1861
    %v2016 = vsub.f32 %v2014, %v1862
    %v2017 = vmul.f32 %v1953, -15.0
    %v2018 = vmul.f32 %v1954, -15.0
    %v2019 = vmul.f32 %v2017, %v363
    %v2020 = vmul.f32 %v2018, %v375
    %v2021 = vmul.f32 %v2011, 3.5960417e-07
    %v2022 = vmul.f32 %v2012, 3.5960417e-07
    %v2023 = vmul.f32 %v2021, %v2019
    %v2024 = vmul.f32 %v2022, %v2020
    %s2025 = scalar_lea.vmem [#allocation5], 1280
    %2026 = vst [vmem:[%s2025] sm:$0xff] %v2023
    %2027 = vst [vmem:[%s2025 + $0x8] sm:$0xff] %v2024
    %v2028 = vmul.f32 %v2015, 3.5960417e-07
    %v2029 = vmul.f32 %v2016, 3.5960417e-07
    %v2030 = vmul.f32 %v2028, %v2019
    %v2031 = vmul.f32 %v2029, %v2020
    %s2032 = scalar_lea.vmem [#allocation5], 1024
    %2033 = vst [vmem:[%s2032] sm:$0xff] %v2030
    %2034 = vst [vmem:[%s2032 + $0x8] sm:$0xff] %v2031
    %v2035 = vmul.f32 %v191, 17.0
    %v2036 = vmul.f32 %v345, 17.0
    %v2037 = vmul.f32 %v2035, %v2019
    %v2038 = vmul.f32 %v2036, %v2020
    %v2039 = vmul.f32 %v2011, 9.22046e-08
    %v2040 = vmul.f32 %v2012, 9.22046e-08
    %v2041 = vmul.f32 %v2039, %v2037
    %v2042 = vmul.f32 %v2040, %v2038
    %s2043 = scalar_lea.vmem [#allocation5], 1568
    %2044 = vst [vmem:[%s2043] sm:$0xff] %v2041
    %2045 = vst [vmem:[%s2043 + $0x8] sm:$0xff] %v2042
    %v2046 = vmul.f32 %v2015, 9.22046e-08
    %v2047 = vmul.f32 %v2016, 9.22046e-08
    %v2048 = vmul.f32 %v2046, %v2037
    %v2049 = vmul.f32 %v2047, %v2038
    %s2050 = scalar_lea.vmem [#allocation5], 1312
    %2051 = vst [vmem:[%s2050] sm:$0xff] %v2048
    %2052 = vst [vmem:[%s2050 + $0x8] sm:$0xff] %v2049
    %v2053 = vmul.f32 %v1291, %v2011
    %v2054 = vmul.f32 %v1292, %v2012
    %v2055 = vsub.f32 %v2053, %v1945
    %v2056 = vsub.f32 %v2054, %v1946
    %v2057 = vmul.f32 %v1291, %v2015
    %v2058 = vmul.f32 %v1292, %v2016
    %v2059 = vsub.f32 %v2057, %v1949
    %v2060 = vsub.f32 %v2058, %v1950
    %v2061 = vmul.f32 %v2019, -17.0
    %v2062 = vmul.f32 %v2020, -17.0
    %v2063 = vmul.f32 %v2061, %v363
    %v2064 = vmul.f32 %v2062, %v375
    %v2065 = vmul.f32 %v2055, 2.1732834e-08
    %v2066 = vmul.f32 %v2056, 2.1732834e-08
    %v2067 = vmul.f32 %v2065, %v2063
    %v2068 = vmul.f32 %v2066, %v2064
    %s2069 = scalar_lea.vmem [#allocation5], 1584
    %2070 = vst [vmem:[%s2069] sm:$0xff] %v2067
    %2071 = vst [vmem:[%s2069 + $0x8] sm:$0xff] %v2068
    %v2072 = vmul.f32 %v2059, 2.1732834e-08
    %v2073 = vmul.f32 %v2060, 2.1732834e-08
    %v2074 = vmul.f32 %v2072, %v2063
    %v2075 = vmul.f32 %v2073, %v2064
    %s2076 = scalar_lea.vmem [#allocation5], 1296
    %2077 = vst [vmem:[%s2076] sm:$0xff] %v2074
    %2078 = vst [vmem:[%s2076 + $0x8] sm:$0xff] %v2075
    // Predicated region
    $region10: #{tpu_custom_call.1} parent=1 // pred_check
      _
    $region11: #{tpu_custom_call.1} parent=1 // pred_check_branch
      %2080 = sbr.rel (0) target = $region13
    $region12: #{tpu_custom_call.1} parent=1 // pred_region
      %2082 = vsyncadd [#allocation4], 0
      %s2083 = sshll.u32 [#allocation5], 4
      %s2084 = int_to_ptr.vmem [resolvable:$true] %s2083
      %s2085 = sshll.u32 %s1, 4
      %s2086 = int_to_ptr.hbm [resolvable:$true] %s2085
      %2091 = dma.vmem_to_hbm [thread:$0]  %s2084, 25600, %s2086, [#allocation4], 128, 128, 8
    $region13: #{tpu_custom_call.1} parent=1 // pred_fallthru
      _
    // Predicated region
    $region14: #{tpu_custom_call.1} parent=1 // pred_check
      _
    $region15: #{tpu_custom_call.1} parent=1 // pred_check_branch
      %2093 = sbr.rel (0) target = $region17
    $region16: #{tpu_custom_call.1} parent=1 // pred_region
      %2095 = dma.done [#allocation4], 25600
    $region17: #{tpu_custom_call.1} parent=1 // pred_fallthru
      _
    %2096 = vsyncpa [#allocation3], 1
    %2097 = vsyncpa [#allocation4], 1

</llo_original>
